<compile_context>
chip_gen: v6e
topology: v6e:2x2x1
jax: 0.10.0
libtpu: 0.0.40
codegen_flags: <defaults>
</compile_context>

<pallas_src>
import functools

import jax
import jax.numpy as jnp
from jax import lax
from jax.experimental import pallas as pl
from jax.experimental.pallas import tpu as pltpu


WORD_EMB_DIM = 100
CHAR_EMB_DIM = 100
ENCODER_DIM = 16
DECODER_DIM = 16
LANE = 128
EMB_PAD = 128          # embedding dim padded 100 -> 128 (lane-dense)


def _round_up(x, m):
    return ((x + m - 1) // m) * m


# ----------------------------------------------------------------------------
# Fused kernel: embeddings -> encoder LSTM -> encoder head -> decoder LSTM -> head
# ----------------------------------------------------------------------------
def _seq2seq_kernel(B, T_src, T_tgt, vc_rows, vw_rows, pad,
                    src_idx_ref, tgt_idx_ref, emb_ref, lstm_ref, head_ref,
                    out_char_ref, out_word_ref):
    f32 = jnp.float32
    H = ENCODER_DIM
    E = EMB_PAD
    lstm_sec = E + H + 8          # rows per packed LSTM section (wih | whh | bias)
    head_sec = H + 8 + pad + 8    # rows per packed head section (w1 | b1 | w2 | b2)

    def embed(idx_ref, emb_tbl):
        # Embedding gather as a one-hot matmul: lookup stays on the MXU, no XLA gather
        # or HBM round trip of the embedded activations.  Padded table rows are zero
        # and never selected (valid indices < real vocab).
        n = idx_ref.shape[0]
        v = emb_tbl.shape[0]
        lanes = lax.broadcasted_iota(jnp.int32, (n, v), 1)
        onehot = jnp.where(idx_ref[...] == lanes, 1.0, 0.0).astype(f32)
        return jnp.dot(onehot, emb_tbl, preferred_element_type=f32)

    def lstm(x_emb, sec, h, c, T):
        wih = lstm_ref[sec:sec + E, :]                       # [128, 4H]
        whh = lstm_ref[sec + E:sec + E + H, :]               # [H, 4H]
        b = lstm_ref[sec + E + H:sec + E + H + 1, :]         # [1, 4H] (bih + bhh)
        # Hoisted input projection: ONE [T*B, 128] @ [128, 4H] matmul outside the loop.
        x_proj = jnp.dot(x_emb, wih, preferred_element_type=f32) + b
        # Fully unrolled recurrence; h, c and all h_t live in vregs (no scratch stores).
        # Gate column order (after host-side permute): i, f, o, g.
        feats = []
        for t in range(T):
            g = (x_proj[t * B:(t + 1) * B, :]
                 + jnp.dot(h, whh, preferred_element_type=f32))          # [B, 4H]
            # sigmoid(x) == 0.5*tanh(0.5*x) + 0.5  -> one EUP push for all 3 sigmoid
            # gates, one more for the cell gate.
            sig = 0.5 * jnp.tanh(0.5 * g[:, :3 * H]) + 0.5               # i | f | o
            g_g = jnp.tanh(g[:, 3 * H:])
            c = sig[:, H:2 * H] * c + sig[:, :H] * g_g
            h = sig[:, 2 * H:3 * H] * jnp.tanh(c)
            feats.append(h)
        return h, c, jnp.concatenate(feats, axis=0)                      # [T*B, H]

    def head(feats, sec):
        # Hidden dim and vocab are zero-padded to `pad` lanes host-side, so both matmuls
        # and the final store are full-width / unmasked with no slicing.
        w1 = head_ref[sec:sec + H, :]                                    # [H, pad]
        b1 = head_ref[sec + H:sec + H + 1, :]                            # [1, pad]
        w2 = head_ref[sec + H + 8:sec + H + 8 + pad, :]                  # [pad, pad]
        b2 = head_ref[sec + H + 8 + pad:sec + H + 8 + pad + 1, :]        # [1, pad]
        hid = jnp.maximum(jnp.dot(feats, w1, preferred_element_type=f32) + b1, 0.0)
        return jnp.dot(hid, w2, preferred_element_type=f32) + b2

    char_tbl = emb_ref[0:vc_rows, :]
    word_tbl = emb_ref[vc_rows:vc_rows + vw_rows, :]

    # ---- encoder: char embedding -> LSTM -> encoder head ----
    src_emb = embed(src_idx_ref, char_tbl)                               # [Ts*B, 128]
    h0 = jnp.zeros((B, H), f32)
    c0 = jnp.zeros((B, H), f32)
    h_n, c_n, enc_feats = lstm(src_emb, 0, h0, c0, T_src)
    out_char_ref[...] = head(enc_feats, 0)                               # [Ts*B, pad]

    # ---- decoder: word embedding -> LSTM (init = encoder final state) -> head ----
    tgt_emb = embed(tgt_idx_ref, word_tbl)                               # [Tt*B, 128]
    _, _, dec_feats = lstm(tgt_emb, lstm_sec, h_n, c_n, T_tgt)
    out_word_ref[...] = head(dec_feats, head_sec)                        # [Tt*B, pad]


# ----------------------------------------------------------------------------
# Host-side parameter packing (done ONCE, outside jit)
# ----------------------------------------------------------------------------
def _perm_gates(w):
    """Permute LSTM gate columns from PyTorch order [i,f,g,o] to [i,f,o,g]."""
    H = ENCODER_DIM
    return jnp.concatenate([w[..., 0:2 * H], w[..., 3 * H:4 * H], w[..., 2 * H:3 * H]],
                           axis=-1)


def _pad_to(x, rows, cols):
    return jnp.pad(x, ((0, rows - x.shape[0]), (0, cols - x.shape[1])))


def pack_params(params):
    """Pack 18 small arrays into 3 lane-/sublane-dense buffers; returns (buffers, meta)."""
    H = ENCODER_DIM
    E = EMB_PAD
    v_char = params["ehead_w2"].shape[1]
    v_word = params["head_w2"].shape[1]
    pad = max(LANE, _round_up(max(v_char, v_word), LANE))
    vc_rows = _round_up(params["char_emb"].shape[0], 8)
    vw_rows = _round_up(params["word_emb"].shape[0], 8)

    # embeddings: [vc_rows + vw_rows, 128]
    emb_buf = jnp.concatenate([_pad_to(params["char_emb"], vc_rows, E),
                               _pad_to(params["word_emb"], vw_rows, E)], axis=0)

    # one section per LSTM: [128 (wih) | 16 (whh) | 8 (bias row 0)] x [4H]
    def lstm_sec(wih, whh, bih, bhh):
        return jnp.concatenate([_pad_to(_perm_gates(wih), E, 4 * H),
                                _pad_to(_perm_gates(whh), H, 4 * H),
                                _pad_to(_perm_gates(bih + bhh), 8, 4 * H)], axis=0)

    lstm_buf = jnp.concatenate(
        [lstm_sec(params["enc_wih"], params["enc_whh"], params["enc_bih"], params["enc_bhh"]),
         lstm_sec(params["dec_wih"], params["dec_whh"], params["dec_bih"], params["dec_bhh"])],
        axis=0)

    # one section per head: [16 (w1) | 8 (b1) | pad (w2) | 8 (b2)] x [pad]
    # hidden dim (32) and vocab are zero-padded to `pad` -> math is exact, stores unmasked.
    def head_sec(w1, b1, w2, b2):
        return jnp.concatenate([_pad_to(w1, H, pad),
                                _pad_to(b1, 8, pad),
                                _pad_to(w2, pad, pad),
                                _pad_to(b2, 8, pad)], axis=0)

    head_buf = jnp.concatenate(
        [head_sec(params["ehead_w1"], params["ehead_b1"], params["ehead_w2"], params["ehead_b2"]),
         head_sec(params["head_w1"], params["head_b1"], params["head_w2"], params["head_b2"])],
        axis=0)

    packed = {"emb": emb_buf, "lstm": lstm_buf, "head": head_buf}
    meta = {"v_char": v_char, "v_word": v_word,
            "vc_rows": vc_rows, "vw_rows": vw_rows, "pad": pad}
    return packed, meta


# ----------------------------------------------------------------------------
# Wrapper
# ----------------------------------------------------------------------------
@functools.partial(jax.jit, static_argnames=("v_char", "v_word", "vc_rows", "vw_rows", "pad"))
def seq2seq_forward(packed, source, target_input, *, v_char, v_word, vc_rows, vw_rows, pad):
    B, T_src = source.shape
    _, T_tgt = target_input.shape

    # tiny int glue: time-major flattened indices (row t*B + b  <->  token [b, t])
    src_idx = jnp.transpose(source).reshape(T_src * B, 1).astype(jnp.int32)
    tgt_idx = jnp.transpose(target_input).reshape(T_tgt * B, 1).astype(jnp.int32)

    vmem = pl.BlockSpec(memory_space=pltpu.MemorySpace.VMEM)
    kernel = functools.partial(_seq2seq_kernel, B, T_src, T_tgt, vc_rows, vw_rows, pad)

    out_char_p, out_word_p = pl.pallas_call(
        kernel,
        out_shape=(jax.ShapeDtypeStruct((T_src * B, pad), jnp.float32),
                   jax.ShapeDtypeStruct((T_tgt * B, pad), jnp.float32)),
        in_specs=[vmem] * 5,
        out_specs=(vmem, vmem),
    )(src_idx, tgt_idx, packed["emb"], packed["lstm"], packed["head"])

    # slice padded vocab lanes, restore batch-first [B, T, V]
    output_char = jnp.transpose(
        out_char_p.reshape(T_src, B, pad)[:, :, :v_char], (1, 0, 2))
    output = jnp.transpose(
        out_word_p.reshape(T_tgt, B, pad)[:, :, :v_word], (1, 0, 2))
    return output, output_char


# ----------------------------------------------------------------------------
# Parameter construction (deterministic, synthetic)
# TODO(synk): GloVe file loading from embedding_path is external I/O; synthetic
#             embedding tables are used instead (padding row 0 zeroed like padding_idx).
# ----------------------------------------------------------------------------
def init_params(key, char_vocab, word_vocab):
    ks = jax.random.split(key, 20)
    s = 0.1

    def nrm(k, shape):
        return (s * jax.random.normal(k, shape)).astype(jnp.float32)

    p = {}
    p["char_emb"] = nrm(ks[0], (char_vocab, CHAR_EMB_DIM)).at[0].set(0.0)
    p["word_emb"] = nrm(ks[1], (word_vocab, WORD_EMB_DIM)).at[0].set(0.0)
    # encoder LSTM (weights stored pre-transposed: [in, 4H], [H, 4H]; gate order i,f,g,o)
    p["enc_wih"] = nrm(ks[2], (CHAR_EMB_DIM, 4 * ENCODER_DIM))
    p["enc_whh"] = nrm(ks[3], (ENCODER_DIM, 4 * ENCODER_DIM))
    p["enc_bih"] = nrm(ks[4], (1, 4 * ENCODER_DIM))
    p["enc_bhh"] = nrm(ks[5], (1, 4 * ENCODER_DIM))
    # encoder_head: Linear(16,32) -> ReLU -> Linear(32, char_vocab)
    p["ehead_w1"] = nrm(ks[6], (ENCODER_DIM, 2 * ENCODER_DIM))
    p["ehead_b1"] = nrm(ks[7], (1, 2 * ENCODER_DIM))
    p["ehead_w2"] = nrm(ks[8], (2 * ENCODER_DIM, char_vocab))
    p["ehead_b2"] = nrm(ks[9], (1, char_vocab))
    # decoder LSTM
    p["dec_wih"] = nrm(ks[10], (WORD_EMB_DIM, 4 * DECODER_DIM))
    p["dec_whh"] = nrm(ks[11], (DECODER_DIM, 4 * DECODER_DIM))
    p["dec_bih"] = nrm(ks[12], (1, 4 * DECODER_DIM))
    p["dec_bhh"] = nrm(ks[13], (1, 4 * DECODER_DIM))
    # head: Linear(16,32) -> ReLU -> Linear(32, word_vocab)
    p["head_w1"] = nrm(ks[14], (DECODER_DIM, 2 * DECODER_DIM))
    p["head_b1"] = nrm(ks[15], (1, 2 * DECODER_DIM))
    p["head_w2"] = nrm(ks[16], (2 * DECODER_DIM, word_vocab))
    p["head_b2"] = nrm(ks[17], (1, word_vocab))
    return p


# ----------------------------------------------------------------------------
# Pure-JAX reference (for correctness check) -- uses the original unpacked params
# ----------------------------------------------------------------------------
def _lstm_ref(x, wih, whh, bih, bhh, h0, c0):
    H = h0.shape[1]

    def step(carry, x_t):
        h, c = carry
        gates = x_t @ wih + h @ whh + bih[0] + bhh[0]
        i_g = jax.nn.sigmoid(gates[:, :H])
        f_g = jax.nn.sigmoid(gates[:, H:2 * H])
        g_g = jnp.tanh(gates[:, 2 * H:3 * H])
        o_g = jax.nn.sigmoid(gates[:, 3 * H:])
        c = f_g * c + i_g * g_g
        h = o_g * jnp.tanh(c)
        return (h, c), h

    (hT, cT), ys = lax.scan(step, (h0, c0), jnp.swapaxes(x, 0, 1))
    return jnp.swapaxes(ys, 0, 1), hT, cT


def _ref_forward(p, source, target_input):
    B = source.shape[0]
    src = jnp.take(p["char_emb"], source, axis=0)
    h0 = jnp.zeros((B, ENCODER_DIM), jnp.float32)
    c0 = jnp.zeros((B, ENCODER_DIM), jnp.float32)
    sf, hn, cn = _lstm_ref(src, p["enc_wih"], p["enc_whh"], p["enc_bih"], p["enc_bhh"], h0, c0)
    oc = jnp.maximum(sf @ p["ehead_w1"] + p["ehead_b1"][0], 0.0) @ p["ehead_w2"] + p["ehead_b2"][0]
    tgt = jnp.take(p["word_emb"], target_input, axis=0)
    tf, _, _ = _lstm_ref(tgt, p["dec_wih"], p["dec_whh"], p["dec_bih"], p["dec_bhh"], hn, cn)
    out = jnp.maximum(tf @ p["head_w1"] + p["head_b1"][0], 0.0) @ p["head_w2"] + p["head_b2"][0]
    return out, oc


if __name__ == "__main__":
    key = jax.random.PRNGKey(0)
    k_par, k_src, k_tgt = jax.random.split(key, 3)

    CHAR_VOCAB = 30
    WORD_VOCAB = 40
    B, S_SRC, S_TGT = 2, 16, 8

    params = init_params(k_par, CHAR_VOCAB, WORD_VOCAB)
    packed, meta = pack_params(params)     # one-time packing, outside the jitted forward

    source = jax.random.randint(k_src, (B, S_SRC), 0, CHAR_VOCAB, dtype=jnp.int32)
    target_input = jax.random.randint(k_tgt, (B, S_TGT), 0, WORD_VOCAB, dtype=jnp.int32)

    output, output_char = seq2seq_forward(packed, source, target_input, **meta)
    output = jax.block_until_ready(output)
    output_char = jax.block_until_ready(output_char)

    assert output.shape == (B, S_TGT, WORD_VOCAB)
    assert output_char.shape == (B, S_SRC, CHAR_VOCAB)

    ref_out, ref_oc = _ref_forward(params, source, target_input)
    assert jnp.allclose(output, ref_out, atol=1e-3, rtol=1e-3)
    assert jnp.allclose(output_char, ref_oc, atol=1e-3, rtol=1e-3)

    print("KERNEL_OK")
</pallas_src>

<mosaic_0001>
module attributes {stable_mosaic.version = 11 : i64} {
  func.func @_seq2seq_kernel(%arg0: memref<32x1xi32, #tpu.memory_space<vmem>>, %arg1: memref<16x1xi32, #tpu.memory_space<vmem>>, %arg2: memref<72x128xf32, #tpu.memory_space<vmem>>, %arg3: memref<304x64xf32, #tpu.memory_space<vmem>>, %arg4: memref<320x128xf32, #tpu.memory_space<vmem>>, %arg5: memref<32x128xf32, #tpu.memory_space<vmem>>, %arg6: memref<16x128xf32, #tpu.memory_space<vmem>>) attributes {dimension_semantics = [], scalar_prefetch = 0 : i64, scratch_operands = 0 : i64, tpu.core_type = #tpu.core_type<tc>} {
    %c0 = arith.constant 0 : index
    %c0_0 = arith.constant 0 : index
    %0 = vector.load %arg2[%c0, %c0_0] : memref<72x128xf32, #tpu.memory_space<vmem>>, vector<32x128xf32>
    %c32 = arith.constant 32 : index
    %c0_1 = arith.constant 0 : index
    %1 = vector.load %arg2[%c32, %c0_1] : memref<72x128xf32, #tpu.memory_space<vmem>>, vector<40x128xf32>
    %2 = tpu.iota {dimensions = array<i32: 1>} : vector<32x32xi32>
    %c0_2 = arith.constant 0 : index
    %c0_3 = arith.constant 0 : index
    %3 = vector.load %arg0[%c0_2, %c0_3] : memref<32x1xi32, #tpu.memory_space<vmem>>, vector<32x1xi32>
    %4 = vector.broadcast %3 : vector<32x1xi32> to vector<32x32xi32>
    %5 = arith.cmpi eq, %4, %2 : vector<32x32xi32>
    %cst = arith.constant 1.000000e+00 : f32
    %cst_4 = arith.constant 0.000000e+00 : f32
    %6 = vector.broadcast %cst : f32 to vector<32x32xf32>
    %7 = vector.broadcast %cst_4 : f32 to vector<32x32xf32>
    %8 = arith.select %5, %6, %7 : vector<32x32xi1>, vector<32x32xf32>
    %cst_5 = arith.constant dense<0.000000e+00> : vector<32x128xf32>
    %9 = tpu.matmul %8, %0, %cst_5 {dimension_numbers = #tpu.dot_dimension_numbers<[1], [0], [0], [1], [0, 0, 1, 1], [], []>} : vector<32x32xf32>, vector<32x128xf32>, vector<32x128xf32> -> vector<32x128xf32>
    %cst_6 = arith.constant 0.000000e+00 : f32
    %10 = vector.broadcast %cst_6 : f32 to vector<2x16xf32>
    %cst_7 = arith.constant 0.000000e+00 : f32
    %11 = vector.broadcast %cst_7 : f32 to vector<2x16xf32>
    %c0_8 = arith.constant 0 : index
    %c0_9 = arith.constant 0 : index
    %12 = vector.load %arg3[%c0_8, %c0_9] : memref<304x64xf32, #tpu.memory_space<vmem>>, vector<128x64xf32>
    %c128 = arith.constant 128 : index
    %c0_10 = arith.constant 0 : index
    %13 = vector.load %arg3[%c128, %c0_10] : memref<304x64xf32, #tpu.memory_space<vmem>>, vector<16x64xf32>
    %c144 = arith.constant 144 : index
    %c0_11 = arith.constant 0 : index
    %14 = vector.load %arg3[%c144, %c0_11] : memref<304x64xf32, #tpu.memory_space<vmem>>, vector<1x64xf32>
    %cst_12 = arith.constant dense<0.000000e+00> : vector<32x64xf32>
    %15 = tpu.matmul %9, %12, %cst_12 {dimension_numbers = #tpu.dot_dimension_numbers<[1], [0], [0], [1], [0, 0, 1, 1], [], []>} : vector<32x128xf32>, vector<128x64xf32>, vector<32x64xf32> -> vector<32x64xf32>
    %16 = vector.broadcast %14 : vector<1x64xf32> to vector<32x64xf32>
    %17 = arith.addf %15, %16 : vector<32x64xf32>
    %18 = vector.extract_strided_slice %17 {offsets = [0, 0], sizes = [2, 64], strides = [1, 1]} : vector<32x64xf32> to vector<2x64xf32>
    %cst_13 = arith.constant dense<0.000000e+00> : vector<2x64xf32>
    %19 = tpu.matmul %10, %13, %cst_13 {dimension_numbers = #tpu.dot_dimension_numbers<[1], [0], [0], [1], [0, 0, 1, 1], [], []>} : vector<2x16xf32>, vector<16x64xf32>, vector<2x64xf32> -> vector<2x64xf32>
    %20 = arith.addf %18, %19 : vector<2x64xf32>
    %21 = vector.extract_strided_slice %20 {offsets = [0, 0], sizes = [2, 48], strides = [1, 1]} : vector<2x64xf32> to vector<2x48xf32>
    %cst_14 = arith.constant 5.000000e-01 : f32
    %22 = vector.broadcast %cst_14 : f32 to vector<2x48xf32>
    %23 = arith.mulf %22, %21 : vector<2x48xf32>
    %24 = math.tanh %23 : vector<2x48xf32>
    %cst_15 = arith.constant 5.000000e-01 : f32
    %25 = vector.broadcast %cst_15 : f32 to vector<2x48xf32>
    %26 = arith.mulf %25, %24 : vector<2x48xf32>
    %cst_16 = arith.constant 5.000000e-01 : f32
    %27 = vector.broadcast %cst_16 : f32 to vector<2x48xf32>
    %28 = arith.addf %26, %27 : vector<2x48xf32>
    %29 = vector.extract_strided_slice %20 {offsets = [0, 48], sizes = [2, 16], strides = [1, 1]} : vector<2x64xf32> to vector<2x16xf32>
    %30 = math.tanh %29 : vector<2x16xf32>
    %31 = vector.extract_strided_slice %28 {offsets = [0, 16], sizes = [2, 16], strides = [1, 1]} : vector<2x48xf32> to vector<2x16xf32>
    %32 = arith.mulf %31, %11 : vector<2x16xf32>
    %33 = vector.extract_strided_slice %28 {offsets = [0, 0], sizes = [2, 16], strides = [1, 1]} : vector<2x48xf32> to vector<2x16xf32>
    %34 = arith.mulf %33, %30 : vector<2x16xf32>
    %35 = arith.addf %32, %34 : vector<2x16xf32>
    %36 = vector.extract_strided_slice %28 {offsets = [0, 32], sizes = [2, 16], strides = [1, 1]} : vector<2x48xf32> to vector<2x16xf32>
    %37 = math.tanh %35 : vector<2x16xf32>
    %38 = arith.mulf %36, %37 : vector<2x16xf32>
    %39 = vector.extract_strided_slice %17 {offsets = [2, 0], sizes = [2, 64], strides = [1, 1]} : vector<32x64xf32> to vector<2x64xf32>
    %cst_17 = arith.constant dense<0.000000e+00> : vector<2x64xf32>
    %40 = tpu.matmul %38, %13, %cst_17 {dimension_numbers = #tpu.dot_dimension_numbers<[1], [0], [0], [1], [0, 0, 1, 1], [], []>} : vector<2x16xf32>, vector<16x64xf32>, vector<2x64xf32> -> vector<2x64xf32>
    %41 = arith.addf %39, %40 : vector<2x64xf32>
    %42 = vector.extract_strided_slice %41 {offsets = [0, 0], sizes = [2, 48], strides = [1, 1]} : vector<2x64xf32> to vector<2x48xf32>
    %cst_18 = arith.constant 5.000000e-01 : f32
    %43 = vector.broadcast %cst_18 : f32 to vector<2x48xf32>
    %44 = arith.mulf %43, %42 : vector<2x48xf32>
    %45 = math.tanh %44 : vector<2x48xf32>
    %cst_19 = arith.constant 5.000000e-01 : f32
    %46 = vector.broadcast %cst_19 : f32 to vector<2x48xf32>
    %47 = arith.mulf %46, %45 : vector<2x48xf32>
    %cst_20 = arith.constant 5.000000e-01 : f32
    %48 = vector.broadcast %cst_20 : f32 to vector<2x48xf32>
    %49 = arith.addf %47, %48 : vector<2x48xf32>
    %50 = vector.extract_strided_slice %41 {offsets = [0, 48], sizes = [2, 16], strides = [1, 1]} : vector<2x64xf32> to vector<2x16xf32>
    %51 = math.tanh %50 : vector<2x16xf32>
    %52 = vector.extract_strided_slice %49 {offsets = [0, 16], sizes = [2, 16], strides = [1, 1]} : vector<2x48xf32> to vector<2x16xf32>
    %53 = arith.mulf %52, %35 : vector<2x16xf32>
    %54 = vector.extract_strided_slice %49 {offsets = [0, 0], sizes = [2, 16], strides = [1, 1]} : vector<2x48xf32> to vector<2x16xf32>
    %55 = arith.mulf %54, %51 : vector<2x16xf32>
    %56 = arith.addf %53, %55 : vector<2x16xf32>
    %57 = vector.extract_strided_slice %49 {offsets = [0, 32], sizes = [2, 16], strides = [1, 1]} : vector<2x48xf32> to vector<2x16xf32>
    %58 = math.tanh %56 : vector<2x16xf32>
    %59 = arith.mulf %57, %58 : vector<2x16xf32>
    %60 = vector.extract_strided_slice %17 {offsets = [4, 0], sizes = [2, 64], strides = [1, 1]} : vector<32x64xf32> to vector<2x64xf32>
    %cst_21 = arith.constant dense<0.000000e+00> : vector<2x64xf32>
    %61 = tpu.matmul %59, %13, %cst_21 {dimension_numbers = #tpu.dot_dimension_numbers<[1], [0], [0], [1], [0, 0, 1, 1], [], []>} : vector<2x16xf32>, vector<16x64xf32>, vector<2x64xf32> -> vector<2x64xf32>
    %62 = arith.addf %60, %61 : vector<2x64xf32>
    %63 = vector.extract_strided_slice %62 {offsets = [0, 0], sizes = [2, 48], strides = [1, 1]} : vector<2x64xf32> to vector<2x48xf32>
    %cst_22 = arith.constant 5.000000e-01 : f32
    %64 = vector.broadcast %cst_22 : f32 to vector<2x48xf32>
    %65 = arith.mulf %64, %63 : vector<2x48xf32>
    %66 = math.tanh %65 : vector<2x48xf32>
    %cst_23 = arith.constant 5.000000e-01 : f32
    %67 = vector.broadcast %cst_23 : f32 to vector<2x48xf32>
    %68 = arith.mulf %67, %66 : vector<2x48xf32>
    %cst_24 = arith.constant 5.000000e-01 : f32
    %69 = vector.broadcast %cst_24 : f32 to vector<2x48xf32>
    %70 = arith.addf %68, %69 : vector<2x48xf32>
    %71 = vector.extract_strided_slice %62 {offsets = [0, 48], sizes = [2, 16], strides = [1, 1]} : vector<2x64xf32> to vector<2x16xf32>
    %72 = math.tanh %71 : vector<2x16xf32>
    %73 = vector.extract_strided_slice %70 {offsets = [0, 16], sizes = [2, 16], strides = [1, 1]} : vector<2x48xf32> to vector<2x16xf32>
    %74 = arith.mulf %73, %56 : vector<2x16xf32>
    %75 = vector.extract_strided_slice %70 {offsets = [0, 0], sizes = [2, 16], strides = [1, 1]} : vector<2x48xf32> to vector<2x16xf32>
    %76 = arith.mulf %75, %72 : vector<2x16xf32>
    %77 = arith.addf %74, %76 : vector<2x16xf32>
    %78 = vector.extract_strided_slice %70 {offsets = [0, 32], sizes = [2, 16], strides = [1, 1]} : vector<2x48xf32> to vector<2x16xf32>
    %79 = math.tanh %77 : vector<2x16xf32>
    %80 = arith.mulf %78, %79 : vector<2x16xf32>
    %81 = vector.extract_strided_slice %17 {offsets = [6, 0], sizes = [2, 64], strides = [1, 1]} : vector<32x64xf32> to vector<2x64xf32>
    %cst_25 = arith.constant dense<0.000000e+00> : vector<2x64xf32>
    %82 = tpu.matmul %80, %13, %cst_25 {dimension_numbers = #tpu.dot_dimension_numbers<[1], [0], [0], [1], [0, 0, 1, 1], [], []>} : vector<2x16xf32>, vector<16x64xf32>, vector<2x64xf32> -> vector<2x64xf32>
    %83 = arith.addf %81, %82 : vector<2x64xf32>
    %84 = vector.extract_strided_slice %83 {offsets = [0, 0], sizes = [2, 48], strides = [1, 1]} : vector<2x64xf32> to vector<2x48xf32>
    %cst_26 = arith.constant 5.000000e-01 : f32
    %85 = vector.broadcast %cst_26 : f32 to vector<2x48xf32>
    %86 = arith.mulf %85, %84 : vector<2x48xf32>
    %87 = math.tanh %86 : vector<2x48xf32>
    %cst_27 = arith.constant 5.000000e-01 : f32
    %88 = vector.broadcast %cst_27 : f32 to vector<2x48xf32>
    %89 = arith.mulf %88, %87 : vector<2x48xf32>
    %cst_28 = arith.constant 5.000000e-01 : f32
    %90 = vector.broadcast %cst_28 : f32 to vector<2x48xf32>
    %91 = arith.addf %89, %90 : vector<2x48xf32>
    %92 = vector.extract_strided_slice %83 {offsets = [0, 48], sizes = [2, 16], strides = [1, 1]} : vector<2x64xf32> to vector<2x16xf32>
    %93 = math.tanh %92 : vector<2x16xf32>
    %94 = vector.extract_strided_slice %91 {offsets = [0, 16], sizes = [2, 16], strides = [1, 1]} : vector<2x48xf32> to vector<2x16xf32>
    %95 = arith.mulf %94, %77 : vector<2x16xf32>
    %96 = vector.extract_strided_slice %91 {offsets = [0, 0], sizes = [2, 16], strides = [1, 1]} : vector<2x48xf32> to vector<2x16xf32>
    %97 = arith.mulf %96, %93 : vector<2x16xf32>
    %98 = arith.addf %95, %97 : vector<2x16xf32>
    %99 = vector.extract_strided_slice %91 {offsets = [0, 32], sizes = [2, 16], strides = [1, 1]} : vector<2x48xf32> to vector<2x16xf32>
    %100 = math.tanh %98 : vector<2x16xf32>
    %101 = arith.mulf %99, %100 : vector<2x16xf32>
    %102 = vector.extract_strided_slice %17 {offsets = [8, 0], sizes = [2, 64], strides = [1, 1]} : vector<32x64xf32> to vector<2x64xf32>
    %cst_29 = arith.constant dense<0.000000e+00> : vector<2x64xf32>
    %103 = tpu.matmul %101, %13, %cst_29 {dimension_numbers = #tpu.dot_dimension_numbers<[1], [0], [0], [1], [0, 0, 1, 1], [], []>} : vector<2x16xf32>, vector<16x64xf32>, vector<2x64xf32> -> vector<2x64xf32>
    %104 = arith.addf %102, %103 : vector<2x64xf32>
    %105 = vector.extract_strided_slice %104 {offsets = [0, 0], sizes = [2, 48], strides = [1, 1]} : vector<2x64xf32> to vector<2x48xf32>
    %cst_30 = arith.constant 5.000000e-01 : f32
    %106 = vector.broadcast %cst_30 : f32 to vector<2x48xf32>
    %107 = arith.mulf %106, %105 : vector<2x48xf32>
    %108 = math.tanh %107 : vector<2x48xf32>
    %cst_31 = arith.constant 5.000000e-01 : f32
    %109 = vector.broadcast %cst_31 : f32 to vector<2x48xf32>
    %110 = arith.mulf %109, %108 : vector<2x48xf32>
    %cst_32 = arith.constant 5.000000e-01 : f32
    %111 = vector.broadcast %cst_32 : f32 to vector<2x48xf32>
    %112 = arith.addf %110, %111 : vector<2x48xf32>
    %113 = vector.extract_strided_slice %104 {offsets = [0, 48], sizes = [2, 16], strides = [1, 1]} : vector<2x64xf32> to vector<2x16xf32>
    %114 = math.tanh %113 : vector<2x16xf32>
    %115 = vector.extract_strided_slice %112 {offsets = [0, 16], sizes = [2, 16], strides = [1, 1]} : vector<2x48xf32> to vector<2x16xf32>
    %116 = arith.mulf %115, %98 : vector<2x16xf32>
    %117 = vector.extract_strided_slice %112 {offsets = [0, 0], sizes = [2, 16], strides = [1, 1]} : vector<2x48xf32> to vector<2x16xf32>
    %118 = arith.mulf %117, %114 : vector<2x16xf32>
    %119 = arith.addf %116, %118 : vector<2x16xf32>
    %120 = vector.extract_strided_slice %112 {offsets = [0, 32], sizes = [2, 16], strides = [1, 1]} : vector<2x48xf32> to vector<2x16xf32>
    %121 = math.tanh %119 : vector<2x16xf32>
    %122 = arith.mulf %120, %121 : vector<2x16xf32>
    %123 = vector.extract_strided_slice %17 {offsets = [10, 0], sizes = [2, 64], strides = [1, 1]} : vector<32x64xf32> to vector<2x64xf32>
    %cst_33 = arith.constant dense<0.000000e+00> : vector<2x64xf32>
    %124 = tpu.matmul %122, %13, %cst_33 {dimension_numbers = #tpu.dot_dimension_numbers<[1], [0], [0], [1], [0, 0, 1, 1], [], []>} : vector<2x16xf32>, vector<16x64xf32>, vector<2x64xf32> -> vector<2x64xf32>
    %125 = arith.addf %123, %124 : vector<2x64xf32>
    %126 = vector.extract_strided_slice %125 {offsets = [0, 0], sizes = [2, 48], strides = [1, 1]} : vector<2x64xf32> to vector<2x48xf32>
    %cst_34 = arith.constant 5.000000e-01 : f32
    %127 = vector.broadcast %cst_34 : f32 to vector<2x48xf32>
    %128 = arith.mulf %127, %126 : vector<2x48xf32>
    %129 = math.tanh %128 : vector<2x48xf32>
    %cst_35 = arith.constant 5.000000e-01 : f32
    %130 = vector.broadcast %cst_35 : f32 to vector<2x48xf32>
    %131 = arith.mulf %130, %129 : vector<2x48xf32>
    %cst_36 = arith.constant 5.000000e-01 : f32
    %132 = vector.broadcast %cst_36 : f32 to vector<2x48xf32>
    %133 = arith.addf %131, %132 : vector<2x48xf32>
    %134 = vector.extract_strided_slice %125 {offsets = [0, 48], sizes = [2, 16], strides = [1, 1]} : vector<2x64xf32> to vector<2x16xf32>
    %135 = math.tanh %134 : vector<2x16xf32>
    %136 = vector.extract_strided_slice %133 {offsets = [0, 16], sizes = [2, 16], strides = [1, 1]} : vector<2x48xf32> to vector<2x16xf32>
    %137 = arith.mulf %136, %119 : vector<2x16xf32>
    %138 = vector.extract_strided_slice %133 {offsets = [0, 0], sizes = [2, 16], strides = [1, 1]} : vector<2x48xf32> to vector<2x16xf32>
    %139 = arith.mulf %138, %135 : vector<2x16xf32>
    %140 = arith.addf %137, %139 : vector<2x16xf32>
    %141 = vector.extract_strided_slice %133 {offsets = [0, 32], sizes = [2, 16], strides = [1, 1]} : vector<2x48xf32> to vector<2x16xf32>
    %142 = math.tanh %140 : vector<2x16xf32>
    %143 = arith.mulf %141, %142 : vector<2x16xf32>
    %144 = vector.extract_strided_slice %17 {offsets = [12, 0], sizes = [2, 64], strides = [1, 1]} : vector<32x64xf32> to vector<2x64xf32>
    %cst_37 = arith.constant dense<0.000000e+00> : vector<2x64xf32>
    %145 = tpu.matmul %143, %13, %cst_37 {dimension_numbers = #tpu.dot_dimension_numbers<[1], [0], [0], [1], [0, 0, 1, 1], [], []>} : vector<2x16xf32>, vector<16x64xf32>, vector<2x64xf32> -> vector<2x64xf32>
    %146 = arith.addf %144, %145 : vector<2x64xf32>
    %147 = vector.extract_strided_slice %146 {offsets = [0, 0], sizes = [2, 48], strides = [1, 1]} : vector<2x64xf32> to vector<2x48xf32>
    %cst_38 = arith.constant 5.000000e-01 : f32
    %148 = vector.broadcast %cst_38 : f32 to vector<2x48xf32>
    %149 = arith.mulf %148, %147 : vector<2x48xf32>
    %150 = math.tanh %149 : vector<2x48xf32>
    %cst_39 = arith.constant 5.000000e-01 : f32
    %151 = vector.broadcast %cst_39 : f32 to vector<2x48xf32>
    %152 = arith.mulf %151, %150 : vector<2x48xf32>
    %cst_40 = arith.constant 5.000000e-01 : f32
    %153 = vector.broadcast %cst_40 : f32 to vector<2x48xf32>
    %154 = arith.addf %152, %153 : vector<2x48xf32>
    %155 = vector.extract_strided_slice %146 {offsets = [0, 48], sizes = [2, 16], strides = [1, 1]} : vector<2x64xf32> to vector<2x16xf32>
    %156 = math.tanh %155 : vector<2x16xf32>
    %157 = vector.extract_strided_slice %154 {offsets = [0, 16], sizes = [2, 16], strides = [1, 1]} : vector<2x48xf32> to vector<2x16xf32>
    %158 = arith.mulf %157, %140 : vector<2x16xf32>
    %159 = vector.extract_strided_slice %154 {offsets = [0, 0], sizes = [2, 16], strides = [1, 1]} : vector<2x48xf32> to vector<2x16xf32>
    %160 = arith.mulf %159, %156 : vector<2x16xf32>
    %161 = arith.addf %158, %160 : vector<2x16xf32>
    %162 = vector.extract_strided_slice %154 {offsets = [0, 32], sizes = [2, 16], strides = [1, 1]} : vector<2x48xf32> to vector<2x16xf32>
    %163 = math.tanh %161 : vector<2x16xf32>
    %164 = arith.mulf %162, %163 : vector<2x16xf32>
    %165 = vector.extract_strided_slice %17 {offsets = [14, 0], sizes = [2, 64], strides = [1, 1]} : vector<32x64xf32> to vector<2x64xf32>
    %cst_41 = arith.constant dense<0.000000e+00> : vector<2x64xf32>
    %166 = tpu.matmul %164, %13, %cst_41 {dimension_numbers = #tpu.dot_dimension_numbers<[1], [0], [0], [1], [0, 0, 1, 1], [], []>} : vector<2x16xf32>, vector<16x64xf32>, vector<2x64xf32> -> vector<2x64xf32>
    %167 = arith.addf %165, %166 : vector<2x64xf32>
    %168 = vector.extract_strided_slice %167 {offsets = [0, 0], sizes = [2, 48], strides = [1, 1]} : vector<2x64xf32> to vector<2x48xf32>
    %cst_42 = arith.constant 5.000000e-01 : f32
    %169 = vector.broadcast %cst_42 : f32 to vector<2x48xf32>
    %170 = arith.mulf %169, %168 : vector<2x48xf32>
    %171 = math.tanh %170 : vector<2x48xf32>
    %cst_43 = arith.constant 5.000000e-01 : f32
    %172 = vector.broadcast %cst_43 : f32 to vector<2x48xf32>
    %173 = arith.mulf %172, %171 : vector<2x48xf32>
    %cst_44 = arith.constant 5.000000e-01 : f32
    %174 = vector.broadcast %cst_44 : f32 to vector<2x48xf32>
    %175 = arith.addf %173, %174 : vector<2x48xf32>
    %176 = vector.extract_strided_slice %167 {offsets = [0, 48], sizes = [2, 16], strides = [1, 1]} : vector<2x64xf32> to vector<2x16xf32>
    %177 = math.tanh %176 : vector<2x16xf32>
    %178 = vector.extract_strided_slice %175 {offsets = [0, 16], sizes = [2, 16], strides = [1, 1]} : vector<2x48xf32> to vector<2x16xf32>
    %179 = arith.mulf %178, %161 : vector<2x16xf32>
    %180 = vector.extract_strided_slice %175 {offsets = [0, 0], sizes = [2, 16], strides = [1, 1]} : vector<2x48xf32> to vector<2x16xf32>
    %181 = arith.mulf %180, %177 : vector<2x16xf32>
    %182 = arith.addf %179, %181 : vector<2x16xf32>
    %183 = vector.extract_strided_slice %175 {offsets = [0, 32], sizes = [2, 16], strides = [1, 1]} : vector<2x48xf32> to vector<2x16xf32>
    %184 = math.tanh %182 : vector<2x16xf32>
    %185 = arith.mulf %183, %184 : vector<2x16xf32>
    %186 = vector.extract_strided_slice %17 {offsets = [16, 0], sizes = [2, 64], strides = [1, 1]} : vector<32x64xf32> to vector<2x64xf32>
    %cst_45 = arith.constant dense<0.000000e+00> : vector<2x64xf32>
    %187 = tpu.matmul %185, %13, %cst_45 {dimension_numbers = #tpu.dot_dimension_numbers<[1], [0], [0], [1], [0, 0, 1, 1], [], []>} : vector<2x16xf32>, vector<16x64xf32>, vector<2x64xf32> -> vector<2x64xf32>
    %188 = arith.addf %186, %187 : vector<2x64xf32>
    %189 = vector.extract_strided_slice %188 {offsets = [0, 0], sizes = [2, 48], strides = [1, 1]} : vector<2x64xf32> to vector<2x48xf32>
    %cst_46 = arith.constant 5.000000e-01 : f32
    %190 = vector.broadcast %cst_46 : f32 to vector<2x48xf32>
    %191 = arith.mulf %190, %189 : vector<2x48xf32>
    %192 = math.tanh %191 : vector<2x48xf32>
    %cst_47 = arith.constant 5.000000e-01 : f32
    %193 = vector.broadcast %cst_47 : f32 to vector<2x48xf32>
    %194 = arith.mulf %193, %192 : vector<2x48xf32>
    %cst_48 = arith.constant 5.000000e-01 : f32
    %195 = vector.broadcast %cst_48 : f32 to vector<2x48xf32>
    %196 = arith.addf %194, %195 : vector<2x48xf32>
    %197 = vector.extract_strided_slice %188 {offsets = [0, 48], sizes = [2, 16], strides = [1, 1]} : vector<2x64xf32> to vector<2x16xf32>
    %198 = math.tanh %197 : vector<2x16xf32>
    %199 = vector.extract_strided_slice %196 {offsets = [0, 16], sizes = [2, 16], strides = [1, 1]} : vector<2x48xf32> to vector<2x16xf32>
    %200 = arith.mulf %199, %182 : vector<2x16xf32>
    %201 = vector.extract_strided_slice %196 {offsets = [0, 0], sizes = [2, 16], strides = [1, 1]} : vector<2x48xf32> to vector<2x16xf32>
    %202 = arith.mulf %201, %198 : vector<2x16xf32>
    %203 = arith.addf %200, %202 : vector<2x16xf32>
    %204 = vector.extract_strided_slice %196 {offsets = [0, 32], sizes = [2, 16], strides = [1, 1]} : vector<2x48xf32> to vector<2x16xf32>
    %205 = math.tanh %203 : vector<2x16xf32>
    %206 = arith.mulf %204, %205 : vector<2x16xf32>
    %207 = vector.extract_strided_slice %17 {offsets = [18, 0], sizes = [2, 64], strides = [1, 1]} : vector<32x64xf32> to vector<2x64xf32>
    %cst_49 = arith.constant dense<0.000000e+00> : vector<2x64xf32>
    %208 = tpu.matmul %206, %13, %cst_49 {dimension_numbers = #tpu.dot_dimension_numbers<[1], [0], [0], [1], [0, 0, 1, 1], [], []>} : vector<2x16xf32>, vector<16x64xf32>, vector<2x64xf32> -> vector<2x64xf32>
    %209 = arith.addf %207, %208 : vector<2x64xf32>
    %210 = vector.extract_strided_slice %209 {offsets = [0, 0], sizes = [2, 48], strides = [1, 1]} : vector<2x64xf32> to vector<2x48xf32>
    %cst_50 = arith.constant 5.000000e-01 : f32
    %211 = vector.broadcast %cst_50 : f32 to vector<2x48xf32>
    %212 = arith.mulf %211, %210 : vector<2x48xf32>
    %213 = math.tanh %212 : vector<2x48xf32>
    %cst_51 = arith.constant 5.000000e-01 : f32
    %214 = vector.broadcast %cst_51 : f32 to vector<2x48xf32>
    %215 = arith.mulf %214, %213 : vector<2x48xf32>
    %cst_52 = arith.constant 5.000000e-01 : f32
    %216 = vector.broadcast %cst_52 : f32 to vector<2x48xf32>
    %217 = arith.addf %215, %216 : vector<2x48xf32>
    %218 = vector.extract_strided_slice %209 {offsets = [0, 48], sizes = [2, 16], strides = [1, 1]} : vector<2x64xf32> to vector<2x16xf32>
    %219 = math.tanh %218 : vector<2x16xf32>
    %220 = vector.extract_strided_slice %217 {offsets = [0, 16], sizes = [2, 16], strides = [1, 1]} : vector<2x48xf32> to vector<2x16xf32>
    %221 = arith.mulf %220, %203 : vector<2x16xf32>
    %222 = vector.extract_strided_slice %217 {offsets = [0, 0], sizes = [2, 16], strides = [1, 1]} : vector<2x48xf32> to vector<2x16xf32>
    %223 = arith.mulf %222, %219 : vector<2x16xf32>
    %224 = arith.addf %221, %223 : vector<2x16xf32>
    %225 = vector.extract_strided_slice %217 {offsets = [0, 32], sizes = [2, 16], strides = [1, 1]} : vector<2x48xf32> to vector<2x16xf32>
    %226 = math.tanh %224 : vector<2x16xf32>
    %227 = arith.mulf %225, %226 : vector<2x16xf32>
    %228 = vector.extract_strided_slice %17 {offsets = [20, 0], sizes = [2, 64], strides = [1, 1]} : vector<32x64xf32> to vector<2x64xf32>
    %cst_53 = arith.constant dense<0.000000e+00> : vector<2x64xf32>
    %229 = tpu.matmul %227, %13, %cst_53 {dimension_numbers = #tpu.dot_dimension_numbers<[1], [0], [0], [1], [0, 0, 1, 1], [], []>} : vector<2x16xf32>, vector<16x64xf32>, vector<2x64xf32> -> vector<2x64xf32>
    %230 = arith.addf %228, %229 : vector<2x64xf32>
    %231 = vector.extract_strided_slice %230 {offsets = [0, 0], sizes = [2, 48], strides = [1, 1]} : vector<2x64xf32> to vector<2x48xf32>
    %cst_54 = arith.constant 5.000000e-01 : f32
    %232 = vector.broadcast %cst_54 : f32 to vector<2x48xf32>
    %233 = arith.mulf %232, %231 : vector<2x48xf32>
    %234 = math.tanh %233 : vector<2x48xf32>
    %cst_55 = arith.constant 5.000000e-01 : f32
    %235 = vector.broadcast %cst_55 : f32 to vector<2x48xf32>
    %236 = arith.mulf %235, %234 : vector<2x48xf32>
    %cst_56 = arith.constant 5.000000e-01 : f32
    %237 = vector.broadcast %cst_56 : f32 to vector<2x48xf32>
    %238 = arith.addf %236, %237 : vector<2x48xf32>
    %239 = vector.extract_strided_slice %230 {offsets = [0, 48], sizes = [2, 16], strides = [1, 1]} : vector<2x64xf32> to vector<2x16xf32>
    %240 = math.tanh %239 : vector<2x16xf32>
    %241 = vector.extract_strided_slice %238 {offsets = [0, 16], sizes = [2, 16], strides = [1, 1]} : vector<2x48xf32> to vector<2x16xf32>
    %242 = arith.mulf %241, %224 : vector<2x16xf32>
    %243 = vector.extract_strided_slice %238 {offsets = [0, 0], sizes = [2, 16], strides = [1, 1]} : vector<2x48xf32> to vector<2x16xf32>
    %244 = arith.mulf %243, %240 : vector<2x16xf32>
    %245 = arith.addf %242, %244 : vector<2x16xf32>
    %246 = vector.extract_strided_slice %238 {offsets = [0, 32], sizes = [2, 16], strides = [1, 1]} : vector<2x48xf32> to vector<2x16xf32>
    %247 = math.tanh %245 : vector<2x16xf32>
    %248 = arith.mulf %246, %247 : vector<2x16xf32>
    %249 = vector.extract_strided_slice %17 {offsets = [22, 0], sizes = [2, 64], strides = [1, 1]} : vector<32x64xf32> to vector<2x64xf32>
    %cst_57 = arith.constant dense<0.000000e+00> : vector<2x64xf32>
    %250 = tpu.matmul %248, %13, %cst_57 {dimension_numbers = #tpu.dot_dimension_numbers<[1], [0], [0], [1], [0, 0, 1, 1], [], []>} : vector<2x16xf32>, vector<16x64xf32>, vector<2x64xf32> -> vector<2x64xf32>
    %251 = arith.addf %249, %250 : vector<2x64xf32>
    %252 = vector.extract_strided_slice %251 {offsets = [0, 0], sizes = [2, 48], strides = [1, 1]} : vector<2x64xf32> to vector<2x48xf32>
    %cst_58 = arith.constant 5.000000e-01 : f32
    %253 = vector.broadcast %cst_58 : f32 to vector<2x48xf32>
    %254 = arith.mulf %253, %252 : vector<2x48xf32>
    %255 = math.tanh %254 : vector<2x48xf32>
    %cst_59 = arith.constant 5.000000e-01 : f32
    %256 = vector.broadcast %cst_59 : f32 to vector<2x48xf32>
    %257 = arith.mulf %256, %255 : vector<2x48xf32>
    %cst_60 = arith.constant 5.000000e-01 : f32
    %258 = vector.broadcast %cst_60 : f32 to vector<2x48xf32>
    %259 = arith.addf %257, %258 : vector<2x48xf32>
    %260 = vector.extract_strided_slice %251 {offsets = [0, 48], sizes = [2, 16], strides = [1, 1]} : vector<2x64xf32> to vector<2x16xf32>
    %261 = math.tanh %260 : vector<2x16xf32>
    %262 = vector.extract_strided_slice %259 {offsets = [0, 16], sizes = [2, 16], strides = [1, 1]} : vector<2x48xf32> to vector<2x16xf32>
    %263 = arith.mulf %262, %245 : vector<2x16xf32>
    %264 = vector.extract_strided_slice %259 {offsets = [0, 0], sizes = [2, 16], strides = [1, 1]} : vector<2x48xf32> to vector<2x16xf32>
    %265 = arith.mulf %264, %261 : vector<2x16xf32>
    %266 = arith.addf %263, %265 : vector<2x16xf32>
    %267 = vector.extract_strided_slice %259 {offsets = [0, 32], sizes = [2, 16], strides = [1, 1]} : vector<2x48xf32> to vector<2x16xf32>
    %268 = math.tanh %266 : vector<2x16xf32>
    %269 = arith.mulf %267, %268 : vector<2x16xf32>
    %270 = vector.extract_strided_slice %17 {offsets = [24, 0], sizes = [2, 64], strides = [1, 1]} : vector<32x64xf32> to vector<2x64xf32>
    %cst_61 = arith.constant dense<0.000000e+00> : vector<2x64xf32>
    %271 = tpu.matmul %269, %13, %cst_61 {dimension_numbers = #tpu.dot_dimension_numbers<[1], [0], [0], [1], [0, 0, 1, 1], [], []>} : vector<2x16xf32>, vector<16x64xf32>, vector<2x64xf32> -> vector<2x64xf32>
    %272 = arith.addf %270, %271 : vector<2x64xf32>
    %273 = vector.extract_strided_slice %272 {offsets = [0, 0], sizes = [2, 48], strides = [1, 1]} : vector<2x64xf32> to vector<2x48xf32>
    %cst_62 = arith.constant 5.000000e-01 : f32
    %274 = vector.broadcast %cst_62 : f32 to vector<2x48xf32>
    %275 = arith.mulf %274, %273 : vector<2x48xf32>
    %276 = math.tanh %275 : vector<2x48xf32>
    %cst_63 = arith.constant 5.000000e-01 : f32
    %277 = vector.broadcast %cst_63 : f32 to vector<2x48xf32>
    %278 = arith.mulf %277, %276 : vector<2x48xf32>
    %cst_64 = arith.constant 5.000000e-01 : f32
    %279 = vector.broadcast %cst_64 : f32 to vector<2x48xf32>
    %280 = arith.addf %278, %279 : vector<2x48xf32>
    %281 = vector.extract_strided_slice %272 {offsets = [0, 48], sizes = [2, 16], strides = [1, 1]} : vector<2x64xf32> to vector<2x16xf32>
    %282 = math.tanh %281 : vector<2x16xf32>
    %283 = vector.extract_strided_slice %280 {offsets = [0, 16], sizes = [2, 16], strides = [1, 1]} : vector<2x48xf32> to vector<2x16xf32>
    %284 = arith.mulf %283, %266 : vector<2x16xf32>
    %285 = vector.extract_strided_slice %280 {offsets = [0, 0], sizes = [2, 16], strides = [1, 1]} : vector<2x48xf32> to vector<2x16xf32>
    %286 = arith.mulf %285, %282 : vector<2x16xf32>
    %287 = arith.addf %284, %286 : vector<2x16xf32>
    %288 = vector.extract_strided_slice %280 {offsets = [0, 32], sizes = [2, 16], strides = [1, 1]} : vector<2x48xf32> to vector<2x16xf32>
    %289 = math.tanh %287 : vector<2x16xf32>
    %290 = arith.mulf %288, %289 : vector<2x16xf32>
    %291 = vector.extract_strided_slice %17 {offsets = [26, 0], sizes = [2, 64], strides = [1, 1]} : vector<32x64xf32> to vector<2x64xf32>
    %cst_65 = arith.constant dense<0.000000e+00> : vector<2x64xf32>
    %292 = tpu.matmul %290, %13, %cst_65 {dimension_numbers = #tpu.dot_dimension_numbers<[1], [0], [0], [1], [0, 0, 1, 1], [], []>} : vector<2x16xf32>, vector<16x64xf32>, vector<2x64xf32> -> vector<2x64xf32>
    %293 = arith.addf %291, %292 : vector<2x64xf32>
    %294 = vector.extract_strided_slice %293 {offsets = [0, 0], sizes = [2, 48], strides = [1, 1]} : vector<2x64xf32> to vector<2x48xf32>
    %cst_66 = arith.constant 5.000000e-01 : f32
    %295 = vector.broadcast %cst_66 : f32 to vector<2x48xf32>
    %296 = arith.mulf %295, %294 : vector<2x48xf32>
    %297 = math.tanh %296 : vector<2x48xf32>
    %cst_67 = arith.constant 5.000000e-01 : f32
    %298 = vector.broadcast %cst_67 : f32 to vector<2x48xf32>
    %299 = arith.mulf %298, %297 : vector<2x48xf32>
    %cst_68 = arith.constant 5.000000e-01 : f32
    %300 = vector.broadcast %cst_68 : f32 to vector<2x48xf32>
    %301 = arith.addf %299, %300 : vector<2x48xf32>
    %302 = vector.extract_strided_slice %293 {offsets = [0, 48], sizes = [2, 16], strides = [1, 1]} : vector<2x64xf32> to vector<2x16xf32>
    %303 = math.tanh %302 : vector<2x16xf32>
    %304 = vector.extract_strided_slice %301 {offsets = [0, 16], sizes = [2, 16], strides = [1, 1]} : vector<2x48xf32> to vector<2x16xf32>
    %305 = arith.mulf %304, %287 : vector<2x16xf32>
    %306 = vector.extract_strided_slice %301 {offsets = [0, 0], sizes = [2, 16], strides = [1, 1]} : vector<2x48xf32> to vector<2x16xf32>
    %307 = arith.mulf %306, %303 : vector<2x16xf32>
    %308 = arith.addf %305, %307 : vector<2x16xf32>
    %309 = vector.extract_strided_slice %301 {offsets = [0, 32], sizes = [2, 16], strides = [1, 1]} : vector<2x48xf32> to vector<2x16xf32>
    %310 = math.tanh %308 : vector<2x16xf32>
    %311 = arith.mulf %309, %310 : vector<2x16xf32>
    %312 = vector.extract_strided_slice %17 {offsets = [28, 0], sizes = [2, 64], strides = [1, 1]} : vector<32x64xf32> to vector<2x64xf32>
    %cst_69 = arith.constant dense<0.000000e+00> : vector<2x64xf32>
    %313 = tpu.matmul %311, %13, %cst_69 {dimension_numbers = #tpu.dot_dimension_numbers<[1], [0], [0], [1], [0, 0, 1, 1], [], []>} : vector<2x16xf32>, vector<16x64xf32>, vector<2x64xf32> -> vector<2x64xf32>
    %314 = arith.addf %312, %313 : vector<2x64xf32>
    %315 = vector.extract_strided_slice %314 {offsets = [0, 0], sizes = [2, 48], strides = [1, 1]} : vector<2x64xf32> to vector<2x48xf32>
    %cst_70 = arith.constant 5.000000e-01 : f32
    %316 = vector.broadcast %cst_70 : f32 to vector<2x48xf32>
    %317 = arith.mulf %316, %315 : vector<2x48xf32>
    %318 = math.tanh %317 : vector<2x48xf32>
    %cst_71 = arith.constant 5.000000e-01 : f32
    %319 = vector.broadcast %cst_71 : f32 to vector<2x48xf32>
    %320 = arith.mulf %319, %318 : vector<2x48xf32>
    %cst_72 = arith.constant 5.000000e-01 : f32
    %321 = vector.broadcast %cst_72 : f32 to vector<2x48xf32>
    %322 = arith.addf %320, %321 : vector<2x48xf32>
    %323 = vector.extract_strided_slice %314 {offsets = [0, 48], sizes = [2, 16], strides = [1, 1]} : vector<2x64xf32> to vector<2x16xf32>
    %324 = math.tanh %323 : vector<2x16xf32>
    %325 = vector.extract_strided_slice %322 {offsets = [0, 16], sizes = [2, 16], strides = [1, 1]} : vector<2x48xf32> to vector<2x16xf32>
    %326 = arith.mulf %325, %308 : vector<2x16xf32>
    %327 = vector.extract_strided_slice %322 {offsets = [0, 0], sizes = [2, 16], strides = [1, 1]} : vector<2x48xf32> to vector<2x16xf32>
    %328 = arith.mulf %327, %324 : vector<2x16xf32>
    %329 = arith.addf %326, %328 : vector<2x16xf32>
    %330 = vector.extract_strided_slice %322 {offsets = [0, 32], sizes = [2, 16], strides = [1, 1]} : vector<2x48xf32> to vector<2x16xf32>
    %331 = math.tanh %329 : vector<2x16xf32>
    %332 = arith.mulf %330, %331 : vector<2x16xf32>
    %333 = vector.extract_strided_slice %17 {offsets = [30, 0], sizes = [2, 64], strides = [1, 1]} : vector<32x64xf32> to vector<2x64xf32>
    %cst_73 = arith.constant dense<0.000000e+00> : vector<2x64xf32>
    %334 = tpu.matmul %332, %13, %cst_73 {dimension_numbers = #tpu.dot_dimension_numbers<[1], [0], [0], [1], [0, 0, 1, 1], [], []>} : vector<2x16xf32>, vector<16x64xf32>, vector<2x64xf32> -> vector<2x64xf32>
    %335 = arith.addf %333, %334 : vector<2x64xf32>
    %336 = vector.extract_strided_slice %335 {offsets = [0, 0], sizes = [2, 48], strides = [1, 1]} : vector<2x64xf32> to vector<2x48xf32>
    %cst_74 = arith.constant 5.000000e-01 : f32
    %337 = vector.broadcast %cst_74 : f32 to vector<2x48xf32>
    %338 = arith.mulf %337, %336 : vector<2x48xf32>
    %339 = math.tanh %338 : vector<2x48xf32>
    %cst_75 = arith.constant 5.000000e-01 : f32
    %340 = vector.broadcast %cst_75 : f32 to vector<2x48xf32>
    %341 = arith.mulf %340, %339 : vector<2x48xf32>
    %cst_76 = arith.constant 5.000000e-01 : f32
    %342 = vector.broadcast %cst_76 : f32 to vector<2x48xf32>
    %343 = arith.addf %341, %342 : vector<2x48xf32>
    %344 = vector.extract_strided_slice %335 {offsets = [0, 48], sizes = [2, 16], strides = [1, 1]} : vector<2x64xf32> to vector<2x16xf32>
    %345 = math.tanh %344 : vector<2x16xf32>
    %346 = vector.extract_strided_slice %343 {offsets = [0, 16], sizes = [2, 16], strides = [1, 1]} : vector<2x48xf32> to vector<2x16xf32>
    %347 = arith.mulf %346, %329 : vector<2x16xf32>
    %348 = vector.extract_strided_slice %343 {offsets = [0, 0], sizes = [2, 16], strides = [1, 1]} : vector<2x48xf32> to vector<2x16xf32>
    %349 = arith.mulf %348, %345 : vector<2x16xf32>
    %350 = arith.addf %347, %349 : vector<2x16xf32>
    %351 = vector.extract_strided_slice %343 {offsets = [0, 32], sizes = [2, 16], strides = [1, 1]} : vector<2x48xf32> to vector<2x16xf32>
    %352 = math.tanh %350 : vector<2x16xf32>
    %353 = arith.mulf %351, %352 : vector<2x16xf32>
    %354 = tpu.concatenate %38, %59, %80, %101, %122, %143, %164, %185, %206, %227, %248, %269, %290, %311, %332, %353 in 0 : vector<2x16xf32>, vector<2x16xf32>, vector<2x16xf32>, vector<2x16xf32>, vector<2x16xf32>, vector<2x16xf32>, vector<2x16xf32>, vector<2x16xf32>, vector<2x16xf32>, vector<2x16xf32>, vector<2x16xf32>, vector<2x16xf32>, vector<2x16xf32>, vector<2x16xf32>, vector<2x16xf32>, vector<2x16xf32> -> vector<32x16xf32>
    %c0_77 = arith.constant 0 : index
    %c0_78 = arith.constant 0 : index
    %355 = vector.load %arg4[%c0_77, %c0_78] : memref<320x128xf32, #tpu.memory_space<vmem>>, vector<16x128xf32>
    %c16 = arith.constant 16 : index
    %c0_79 = arith.constant 0 : index
    %356 = vector.load %arg4[%c16, %c0_79] : memref<320x128xf32, #tpu.memory_space<vmem>>, vector<1x128xf32>
    %c24 = arith.constant 24 : index
    %c0_80 = arith.constant 0 : index
    %357 = vector.load %arg4[%c24, %c0_80] : memref<320x128xf32, #tpu.memory_space<vmem>>, vector<128x128xf32>
    %c152 = arith.constant 152 : index
    %c0_81 = arith.constant 0 : index
    %358 = vector.load %arg4[%c152, %c0_81] : memref<320x128xf32, #tpu.memory_space<vmem>>, vector<1x128xf32>
    %cst_82 = arith.constant dense<0.000000e+00> : vector<32x128xf32>
    %359 = tpu.matmul %354, %355, %cst_82 {dimension_numbers = #tpu.dot_dimension_numbers<[1], [0], [0], [1], [0, 0, 1, 1], [], []>} : vector<32x16xf32>, vector<16x128xf32>, vector<32x128xf32> -> vector<32x128xf32>
    %360 = vector.broadcast %356 : vector<1x128xf32> to vector<32x128xf32>
    %361 = arith.addf %359, %360 : vector<32x128xf32>
    %cst_83 = arith.constant 0.000000e+00 : f32
    %362 = vector.broadcast %cst_83 : f32 to vector<32x128xf32>
    %363 = arith.maximumf %361, %362 : vector<32x128xf32>
    %cst_84 = arith.constant dense<0.000000e+00> : vector<32x128xf32>
    %364 = tpu.matmul %363, %357, %cst_84 {dimension_numbers = #tpu.dot_dimension_numbers<[1], [0], [0], [1], [0, 0, 1, 1], [], []>} : vector<32x128xf32>, vector<128x128xf32>, vector<32x128xf32> -> vector<32x128xf32>
    %365 = vector.broadcast %358 : vector<1x128xf32> to vector<32x128xf32>
    %366 = arith.addf %364, %365 : vector<32x128xf32>
    %c0_85 = arith.constant 0 : index
    %c0_86 = arith.constant 0 : index
    %367 = vector.load %arg5[%c0_85, %c0_86] : memref<32x128xf32, #tpu.memory_space<vmem>>, vector<32x128xf32>
    tpu.vector_store %arg5[%c0_85, %c0_86], %366 {strides = array<i32>} : memref<32x128xf32, #tpu.memory_space<vmem>>, vector<32x128xf32>,
    %368 = tpu.iota {dimensions = array<i32: 1>} : vector<16x40xi32>
    %c0_87 = arith.constant 0 : index
    %c0_88 = arith.constant 0 : index
    %369 = vector.load %arg1[%c0_87, %c0_88] : memref<16x1xi32, #tpu.memory_space<vmem>>, vector<16x1xi32>
    %370 = vector.broadcast %369 : vector<16x1xi32> to vector<16x40xi32>
    %371 = arith.cmpi eq, %370, %368 : vector<16x40xi32>
    %cst_89 = arith.constant 1.000000e+00 : f32
    %cst_90 = arith.constant 0.000000e+00 : f32
    %372 = vector.broadcast %cst_89 : f32 to vector<16x40xf32>
    %373 = vector.broadcast %cst_90 : f32 to vector<16x40xf32>
    %374 = arith.select %371, %372, %373 : vector<16x40xi1>, vector<16x40xf32>
    %cst_91 = arith.constant dense<0.000000e+00> : vector<16x128xf32>
    %375 = tpu.matmul %374, %1, %cst_91 {dimension_numbers = #tpu.dot_dimension_numbers<[1], [0], [0], [1], [0, 0, 1, 1], [], []>} : vector<16x40xf32>, vector<40x128xf32>, vector<16x128xf32> -> vector<16x128xf32>
    %c152_92 = arith.constant 152 : index
    %c0_93 = arith.constant 0 : index
    %376 = vector.load %arg3[%c152_92, %c0_93] : memref<304x64xf32, #tpu.memory_space<vmem>>, vector<128x64xf32>
    %c280 = arith.constant 280 : index
    %c0_94 = arith.constant 0 : index
    %377 = vector.load %arg3[%c280, %c0_94] : memref<304x64xf32, #tpu.memory_space<vmem>>, vector<16x64xf32>
    %c296 = arith.constant 296 : index
    %c0_95 = arith.constant 0 : index
    %378 = vector.load %arg3[%c296, %c0_95] : memref<304x64xf32, #tpu.memory_space<vmem>>, vector<1x64xf32>
    %cst_96 = arith.constant dense<0.000000e+00> : vector<16x64xf32>
    %379 = tpu.matmul %375, %376, %cst_96 {dimension_numbers = #tpu.dot_dimension_numbers<[1], [0], [0], [1], [0, 0, 1, 1], [], []>} : vector<16x128xf32>, vector<128x64xf32>, vector<16x64xf32> -> vector<16x64xf32>
    %380 = vector.broadcast %378 : vector<1x64xf32> to vector<16x64xf32>
    %381 = arith.addf %379, %380 : vector<16x64xf32>
    %382 = vector.extract_strided_slice %381 {offsets = [0, 0], sizes = [2, 64], strides = [1, 1]} : vector<16x64xf32> to vector<2x64xf32>
    %cst_97 = arith.constant dense<0.000000e+00> : vector<2x64xf32>
    %383 = tpu.matmul %353, %377, %cst_97 {dimension_numbers = #tpu.dot_dimension_numbers<[1], [0], [0], [1], [0, 0, 1, 1], [], []>} : vector<2x16xf32>, vector<16x64xf32>, vector<2x64xf32> -> vector<2x64xf32>
    %384 = arith.addf %382, %383 : vector<2x64xf32>
    %385 = vector.extract_strided_slice %384 {offsets = [0, 0], sizes = [2, 48], strides = [1, 1]} : vector<2x64xf32> to vector<2x48xf32>
    %cst_98 = arith.constant 5.000000e-01 : f32
    %386 = vector.broadcast %cst_98 : f32 to vector<2x48xf32>
    %387 = arith.mulf %386, %385 : vector<2x48xf32>
    %388 = math.tanh %387 : vector<2x48xf32>
    %cst_99 = arith.constant 5.000000e-01 : f32
    %389 = vector.broadcast %cst_99 : f32 to vector<2x48xf32>
    %390 = arith.mulf %389, %388 : vector<2x48xf32>
    %cst_100 = arith.constant 5.000000e-01 : f32
    %391 = vector.broadcast %cst_100 : f32 to vector<2x48xf32>
    %392 = arith.addf %390, %391 : vector<2x48xf32>
    %393 = vector.extract_strided_slice %384 {offsets = [0, 48], sizes = [2, 16], strides = [1, 1]} : vector<2x64xf32> to vector<2x16xf32>
    %394 = math.tanh %393 : vector<2x16xf32>
    %395 = vector.extract_strided_slice %392 {offsets = [0, 16], sizes = [2, 16], strides = [1, 1]} : vector<2x48xf32> to vector<2x16xf32>
    %396 = arith.mulf %395, %350 : vector<2x16xf32>
    %397 = vector.extract_strided_slice %392 {offsets = [0, 0], sizes = [2, 16], strides = [1, 1]} : vector<2x48xf32> to vector<2x16xf32>
    %398 = arith.mulf %397, %394 : vector<2x16xf32>
    %399 = arith.addf %396, %398 : vector<2x16xf32>
    %400 = vector.extract_strided_slice %392 {offsets = [0, 32], sizes = [2, 16], strides = [1, 1]} : vector<2x48xf32> to vector<2x16xf32>
    %401 = math.tanh %399 : vector<2x16xf32>
    %402 = arith.mulf %400, %401 : vector<2x16xf32>
    %403 = vector.extract_strided_slice %381 {offsets = [2, 0], sizes = [2, 64], strides = [1, 1]} : vector<16x64xf32> to vector<2x64xf32>
    %cst_101 = arith.constant dense<0.000000e+00> : vector<2x64xf32>
    %404 = tpu.matmul %402, %377, %cst_101 {dimension_numbers = #tpu.dot_dimension_numbers<[1], [0], [0], [1], [0, 0, 1, 1], [], []>} : vector<2x16xf32>, vector<16x64xf32>, vector<2x64xf32> -> vector<2x64xf32>
    %405 = arith.addf %403, %404 : vector<2x64xf32>
    %406 = vector.extract_strided_slice %405 {offsets = [0, 0], sizes = [2, 48], strides = [1, 1]} : vector<2x64xf32> to vector<2x48xf32>
    %cst_102 = arith.constant 5.000000e-01 : f32
    %407 = vector.broadcast %cst_102 : f32 to vector<2x48xf32>
    %408 = arith.mulf %407, %406 : vector<2x48xf32>
    %409 = math.tanh %408 : vector<2x48xf32>
    %cst_103 = arith.constant 5.000000e-01 : f32
    %410 = vector.broadcast %cst_103 : f32 to vector<2x48xf32>
    %411 = arith.mulf %410, %409 : vector<2x48xf32>
    %cst_104 = arith.constant 5.000000e-01 : f32
    %412 = vector.broadcast %cst_104 : f32 to vector<2x48xf32>
    %413 = arith.addf %411, %412 : vector<2x48xf32>
    %414 = vector.extract_strided_slice %405 {offsets = [0, 48], sizes = [2, 16], strides = [1, 1]} : vector<2x64xf32> to vector<2x16xf32>
    %415 = math.tanh %414 : vector<2x16xf32>
    %416 = vector.extract_strided_slice %413 {offsets = [0, 16], sizes = [2, 16], strides = [1, 1]} : vector<2x48xf32> to vector<2x16xf32>
    %417 = arith.mulf %416, %399 : vector<2x16xf32>
    %418 = vector.extract_strided_slice %413 {offsets = [0, 0], sizes = [2, 16], strides = [1, 1]} : vector<2x48xf32> to vector<2x16xf32>
    %419 = arith.mulf %418, %415 : vector<2x16xf32>
    %420 = arith.addf %417, %419 : vector<2x16xf32>
    %421 = vector.extract_strided_slice %413 {offsets = [0, 32], sizes = [2, 16], strides = [1, 1]} : vector<2x48xf32> to vector<2x16xf32>
    %422 = math.tanh %420 : vector<2x16xf32>
    %423 = arith.mulf %421, %422 : vector<2x16xf32>
    %424 = vector.extract_strided_slice %381 {offsets = [4, 0], sizes = [2, 64], strides = [1, 1]} : vector<16x64xf32> to vector<2x64xf32>
    %cst_105 = arith.constant dense<0.000000e+00> : vector<2x64xf32>
    %425 = tpu.matmul %423, %377, %cst_105 {dimension_numbers = #tpu.dot_dimension_numbers<[1], [0], [0], [1], [0, 0, 1, 1], [], []>} : vector<2x16xf32>, vector<16x64xf32>, vector<2x64xf32> -> vector<2x64xf32>
    %426 = arith.addf %424, %425 : vector<2x64xf32>
    %427 = vector.extract_strided_slice %426 {offsets = [0, 0], sizes = [2, 48], strides = [1, 1]} : vector<2x64xf32> to vector<2x48xf32>
    %cst_106 = arith.constant 5.000000e-01 : f32
    %428 = vector.broadcast %cst_106 : f32 to vector<2x48xf32>
    %429 = arith.mulf %428, %427 : vector<2x48xf32>
    %430 = math.tanh %429 : vector<2x48xf32>
    %cst_107 = arith.constant 5.000000e-01 : f32
    %431 = vector.broadcast %cst_107 : f32 to vector<2x48xf32>
    %432 = arith.mulf %431, %430 : vector<2x48xf32>
    %cst_108 = arith.constant 5.000000e-01 : f32
    %433 = vector.broadcast %cst_108 : f32 to vector<2x48xf32>
    %434 = arith.addf %432, %433 : vector<2x48xf32>
    %435 = vector.extract_strided_slice %426 {offsets = [0, 48], sizes = [2, 16], strides = [1, 1]} : vector<2x64xf32> to vector<2x16xf32>
    %436 = math.tanh %435 : vector<2x16xf32>
    %437 = vector.extract_strided_slice %434 {offsets = [0, 16], sizes = [2, 16], strides = [1, 1]} : vector<2x48xf32> to vector<2x16xf32>
    %438 = arith.mulf %437, %420 : vector<2x16xf32>
    %439 = vector.extract_strided_slice %434 {offsets = [0, 0], sizes = [2, 16], strides = [1, 1]} : vector<2x48xf32> to vector<2x16xf32>
    %440 = arith.mulf %439, %436 : vector<2x16xf32>
    %441 = arith.addf %438, %440 : vector<2x16xf32>
    %442 = vector.extract_strided_slice %434 {offsets = [0, 32], sizes = [2, 16], strides = [1, 1]} : vector<2x48xf32> to vector<2x16xf32>
    %443 = math.tanh %441 : vector<2x16xf32>
    %444 = arith.mulf %442, %443 : vector<2x16xf32>
    %445 = vector.extract_strided_slice %381 {offsets = [6, 0], sizes = [2, 64], strides = [1, 1]} : vector<16x64xf32> to vector<2x64xf32>
    %cst_109 = arith.constant dense<0.000000e+00> : vector<2x64xf32>
    %446 = tpu.matmul %444, %377, %cst_109 {dimension_numbers = #tpu.dot_dimension_numbers<[1], [0], [0], [1], [0, 0, 1, 1], [], []>} : vector<2x16xf32>, vector<16x64xf32>, vector<2x64xf32> -> vector<2x64xf32>
    %447 = arith.addf %445, %446 : vector<2x64xf32>
    %448 = vector.extract_strided_slice %447 {offsets = [0, 0], sizes = [2, 48], strides = [1, 1]} : vector<2x64xf32> to vector<2x48xf32>
    %cst_110 = arith.constant 5.000000e-01 : f32
    %449 = vector.broadcast %cst_110 : f32 to vector<2x48xf32>
    %450 = arith.mulf %449, %448 : vector<2x48xf32>
    %451 = math.tanh %450 : vector<2x48xf32>
    %cst_111 = arith.constant 5.000000e-01 : f32
    %452 = vector.broadcast %cst_111 : f32 to vector<2x48xf32>
    %453 = arith.mulf %452, %451 : vector<2x48xf32>
    %cst_112 = arith.constant 5.000000e-01 : f32
    %454 = vector.broadcast %cst_112 : f32 to vector<2x48xf32>
    %455 = arith.addf %453, %454 : vector<2x48xf32>
    %456 = vector.extract_strided_slice %447 {offsets = [0, 48], sizes = [2, 16], strides = [1, 1]} : vector<2x64xf32> to vector<2x16xf32>
    %457 = math.tanh %456 : vector<2x16xf32>
    %458 = vector.extract_strided_slice %455 {offsets = [0, 16], sizes = [2, 16], strides = [1, 1]} : vector<2x48xf32> to vector<2x16xf32>
    %459 = arith.mulf %458, %441 : vector<2x16xf32>
    %460 = vector.extract_strided_slice %455 {offsets = [0, 0], sizes = [2, 16], strides = [1, 1]} : vector<2x48xf32> to vector<2x16xf32>
    %461 = arith.mulf %460, %457 : vector<2x16xf32>
    %462 = arith.addf %459, %461 : vector<2x16xf32>
    %463 = vector.extract_strided_slice %455 {offsets = [0, 32], sizes = [2, 16], strides = [1, 1]} : vector<2x48xf32> to vector<2x16xf32>
    %464 = math.tanh %462 : vector<2x16xf32>
    %465 = arith.mulf %463, %464 : vector<2x16xf32>
    %466 = vector.extract_strided_slice %381 {offsets = [8, 0], sizes = [2, 64], strides = [1, 1]} : vector<16x64xf32> to vector<2x64xf32>
    %cst_113 = arith.constant dense<0.000000e+00> : vector<2x64xf32>
    %467 = tpu.matmul %465, %377, %cst_113 {dimension_numbers = #tpu.dot_dimension_numbers<[1], [0], [0], [1], [0, 0, 1, 1], [], []>} : vector<2x16xf32>, vector<16x64xf32>, vector<2x64xf32> -> vector<2x64xf32>
    %468 = arith.addf %466, %467 : vector<2x64xf32>
    %469 = vector.extract_strided_slice %468 {offsets = [0, 0], sizes = [2, 48], strides = [1, 1]} : vector<2x64xf32> to vector<2x48xf32>
    %cst_114 = arith.constant 5.000000e-01 : f32
    %470 = vector.broadcast %cst_114 : f32 to vector<2x48xf32>
    %471 = arith.mulf %470, %469 : vector<2x48xf32>
    %472 = math.tanh %471 : vector<2x48xf32>
    %cst_115 = arith.constant 5.000000e-01 : f32
    %473 = vector.broadcast %cst_115 : f32 to vector<2x48xf32>
    %474 = arith.mulf %473, %472 : vector<2x48xf32>
    %cst_116 = arith.constant 5.000000e-01 : f32
    %475 = vector.broadcast %cst_116 : f32 to vector<2x48xf32>
    %476 = arith.addf %474, %475 : vector<2x48xf32>
    %477 = vector.extract_strided_slice %468 {offsets = [0, 48], sizes = [2, 16], strides = [1, 1]} : vector<2x64xf32> to vector<2x16xf32>
    %478 = math.tanh %477 : vector<2x16xf32>
    %479 = vector.extract_strided_slice %476 {offsets = [0, 16], sizes = [2, 16], strides = [1, 1]} : vector<2x48xf32> to vector<2x16xf32>
    %480 = arith.mulf %479, %462 : vector<2x16xf32>
    %481 = vector.extract_strided_slice %476 {offsets = [0, 0], sizes = [2, 16], strides = [1, 1]} : vector<2x48xf32> to vector<2x16xf32>
    %482 = arith.mulf %481, %478 : vector<2x16xf32>
    %483 = arith.addf %480, %482 : vector<2x16xf32>
    %484 = vector.extract_strided_slice %476 {offsets = [0, 32], sizes = [2, 16], strides = [1, 1]} : vector<2x48xf32> to vector<2x16xf32>
    %485 = math.tanh %483 : vector<2x16xf32>
    %486 = arith.mulf %484, %485 : vector<2x16xf32>
    %487 = vector.extract_strided_slice %381 {offsets = [10, 0], sizes = [2, 64], strides = [1, 1]} : vector<16x64xf32> to vector<2x64xf32>
    %cst_117 = arith.constant dense<0.000000e+00> : vector<2x64xf32>
    %488 = tpu.matmul %486, %377, %cst_117 {dimension_numbers = #tpu.dot_dimension_numbers<[1], [0], [0], [1], [0, 0, 1, 1], [], []>} : vector<2x16xf32>, vector<16x64xf32>, vector<2x64xf32> -> vector<2x64xf32>
    %489 = arith.addf %487, %488 : vector<2x64xf32>
    %490 = vector.extract_strided_slice %489 {offsets = [0, 0], sizes = [2, 48], strides = [1, 1]} : vector<2x64xf32> to vector<2x48xf32>
    %cst_118 = arith.constant 5.000000e-01 : f32
    %491 = vector.broadcast %cst_118 : f32 to vector<2x48xf32>
    %492 = arith.mulf %491, %490 : vector<2x48xf32>
    %493 = math.tanh %492 : vector<2x48xf32>
    %cst_119 = arith.constant 5.000000e-01 : f32
    %494 = vector.broadcast %cst_119 : f32 to vector<2x48xf32>
    %495 = arith.mulf %494, %493 : vector<2x48xf32>
    %cst_120 = arith.constant 5.000000e-01 : f32
    %496 = vector.broadcast %cst_120 : f32 to vector<2x48xf32>
    %497 = arith.addf %495, %496 : vector<2x48xf32>
    %498 = vector.extract_strided_slice %489 {offsets = [0, 48], sizes = [2, 16], strides = [1, 1]} : vector<2x64xf32> to vector<2x16xf32>
    %499 = math.tanh %498 : vector<2x16xf32>
    %500 = vector.extract_strided_slice %497 {offsets = [0, 16], sizes = [2, 16], strides = [1, 1]} : vector<2x48xf32> to vector<2x16xf32>
    %501 = arith.mulf %500, %483 : vector<2x16xf32>
    %502 = vector.extract_strided_slice %497 {offsets = [0, 0], sizes = [2, 16], strides = [1, 1]} : vector<2x48xf32> to vector<2x16xf32>
    %503 = arith.mulf %502, %499 : vector<2x16xf32>
    %504 = arith.addf %501, %503 : vector<2x16xf32>
    %505 = vector.extract_strided_slice %497 {offsets = [0, 32], sizes = [2, 16], strides = [1, 1]} : vector<2x48xf32> to vector<2x16xf32>
    %506 = math.tanh %504 : vector<2x16xf32>
    %507 = arith.mulf %505, %506 : vector<2x16xf32>
    %508 = vector.extract_strided_slice %381 {offsets = [12, 0], sizes = [2, 64], strides = [1, 1]} : vector<16x64xf32> to vector<2x64xf32>
    %cst_121 = arith.constant dense<0.000000e+00> : vector<2x64xf32>
    %509 = tpu.matmul %507, %377, %cst_121 {dimension_numbers = #tpu.dot_dimension_numbers<[1], [0], [0], [1], [0, 0, 1, 1], [], []>} : vector<2x16xf32>, vector<16x64xf32>, vector<2x64xf32> -> vector<2x64xf32>
    %510 = arith.addf %508, %509 : vector<2x64xf32>
    %511 = vector.extract_strided_slice %510 {offsets = [0, 0], sizes = [2, 48], strides = [1, 1]} : vector<2x64xf32> to vector<2x48xf32>
    %cst_122 = arith.constant 5.000000e-01 : f32
    %512 = vector.broadcast %cst_122 : f32 to vector<2x48xf32>
    %513 = arith.mulf %512, %511 : vector<2x48xf32>
    %514 = math.tanh %513 : vector<2x48xf32>
    %cst_123 = arith.constant 5.000000e-01 : f32
    %515 = vector.broadcast %cst_123 : f32 to vector<2x48xf32>
    %516 = arith.mulf %515, %514 : vector<2x48xf32>
    %cst_124 = arith.constant 5.000000e-01 : f32
    %517 = vector.broadcast %cst_124 : f32 to vector<2x48xf32>
    %518 = arith.addf %516, %517 : vector<2x48xf32>
    %519 = vector.extract_strided_slice %510 {offsets = [0, 48], sizes = [2, 16], strides = [1, 1]} : vector<2x64xf32> to vector<2x16xf32>
    %520 = math.tanh %519 : vector<2x16xf32>
    %521 = vector.extract_strided_slice %518 {offsets = [0, 16], sizes = [2, 16], strides = [1, 1]} : vector<2x48xf32> to vector<2x16xf32>
    %522 = arith.mulf %521, %504 : vector<2x16xf32>
    %523 = vector.extract_strided_slice %518 {offsets = [0, 0], sizes = [2, 16], strides = [1, 1]} : vector<2x48xf32> to vector<2x16xf32>
    %524 = arith.mulf %523, %520 : vector<2x16xf32>
    %525 = arith.addf %522, %524 : vector<2x16xf32>
    %526 = vector.extract_strided_slice %518 {offsets = [0, 32], sizes = [2, 16], strides = [1, 1]} : vector<2x48xf32> to vector<2x16xf32>
    %527 = math.tanh %525 : vector<2x16xf32>
    %528 = arith.mulf %526, %527 : vector<2x16xf32>
    %529 = vector.extract_strided_slice %381 {offsets = [14, 0], sizes = [2, 64], strides = [1, 1]} : vector<16x64xf32> to vector<2x64xf32>
    %cst_125 = arith.constant dense<0.000000e+00> : vector<2x64xf32>
    %530 = tpu.matmul %528, %377, %cst_125 {dimension_numbers = #tpu.dot_dimension_numbers<[1], [0], [0], [1], [0, 0, 1, 1], [], []>} : vector<2x16xf32>, vector<16x64xf32>, vector<2x64xf32> -> vector<2x64xf32>
    %531 = arith.addf %529, %530 : vector<2x64xf32>
    %532 = vector.extract_strided_slice %531 {offsets = [0, 0], sizes = [2, 48], strides = [1, 1]} : vector<2x64xf32> to vector<2x48xf32>
    %cst_126 = arith.constant 5.000000e-01 : f32
    %533 = vector.broadcast %cst_126 : f32 to vector<2x48xf32>
    %534 = arith.mulf %533, %532 : vector<2x48xf32>
    %535 = math.tanh %534 : vector<2x48xf32>
    %cst_127 = arith.constant 5.000000e-01 : f32
    %536 = vector.broadcast %cst_127 : f32 to vector<2x48xf32>
    %537 = arith.mulf %536, %535 : vector<2x48xf32>
    %cst_128 = arith.constant 5.000000e-01 : f32
    %538 = vector.broadcast %cst_128 : f32 to vector<2x48xf32>
    %539 = arith.addf %537, %538 : vector<2x48xf32>
    %540 = vector.extract_strided_slice %531 {offsets = [0, 48], sizes = [2, 16], strides = [1, 1]} : vector<2x64xf32> to vector<2x16xf32>
    %541 = math.tanh %540 : vector<2x16xf32>
    %542 = vector.extract_strided_slice %539 {offsets = [0, 16], sizes = [2, 16], strides = [1, 1]} : vector<2x48xf32> to vector<2x16xf32>
    %543 = arith.mulf %542, %525 : vector<2x16xf32>
    %544 = vector.extract_strided_slice %539 {offsets = [0, 0], sizes = [2, 16], strides = [1, 1]} : vector<2x48xf32> to vector<2x16xf32>
    %545 = arith.mulf %544, %541 : vector<2x16xf32>
    %546 = arith.addf %543, %545 : vector<2x16xf32>
    %547 = vector.extract_strided_slice %539 {offsets = [0, 32], sizes = [2, 16], strides = [1, 1]} : vector<2x48xf32> to vector<2x16xf32>
    %548 = math.tanh %546 : vector<2x16xf32>
    %549 = arith.mulf %547, %548 : vector<2x16xf32>
    %550 = tpu.concatenate %402, %423, %444, %465, %486, %507, %528, %549 in 0 : vector<2x16xf32>, vector<2x16xf32>, vector<2x16xf32>, vector<2x16xf32>, vector<2x16xf32>, vector<2x16xf32>, vector<2x16xf32>, vector<2x16xf32> -> vector<16x16xf32>
    %c160 = arith.constant 160 : index
    %c0_129 = arith.constant 0 : index
    %551 = vector.load %arg4[%c160, %c0_129] : memref<320x128xf32, #tpu.memory_space<vmem>>, vector<16x128xf32>
    %c176 = arith.constant 176 : index
    %c0_130 = arith.constant 0 : index
    %552 = vector.load %arg4[%c176, %c0_130] : memref<320x128xf32, #tpu.memory_space<vmem>>, vector<1x128xf32>
    %c184 = arith.constant 184 : index
    %c0_131 = arith.constant 0 : index
    %553 = vector.load %arg4[%c184, %c0_131] : memref<320x128xf32, #tpu.memory_space<vmem>>, vector<128x128xf32>
    %c312 = arith.constant 312 : index
    %c0_132 = arith.constant 0 : index
    %554 = vector.load %arg4[%c312, %c0_132] : memref<320x128xf32, #tpu.memory_space<vmem>>, vector<1x128xf32>
    %cst_133 = arith.constant dense<0.000000e+00> : vector<16x128xf32>
    %555 = tpu.matmul %550, %551, %cst_133 {dimension_numbers = #tpu.dot_dimension_numbers<[1], [0], [0], [1], [0, 0, 1, 1], [], []>} : vector<16x16xf32>, vector<16x128xf32>, vector<16x128xf32> -> vector<16x128xf32>
    %556 = vector.broadcast %552 : vector<1x128xf32> to vector<16x128xf32>
    %557 = arith.addf %555, %556 : vector<16x128xf32>
    %cst_134 = arith.constant 0.000000e+00 : f32
    %558 = vector.broadcast %cst_134 : f32 to vector<16x128xf32>
    %559 = arith.maximumf %557, %558 : vector<16x128xf32>
    %cst_135 = arith.constant dense<0.000000e+00> : vector<16x128xf32>
    %560 = tpu.matmul %559, %553, %cst_135 {dimension_numbers = #tpu.dot_dimension_numbers<[1], [0], [0], [1], [0, 0, 1, 1], [], []>} : vector<16x128xf32>, vector<128x128xf32>, vector<16x128xf32> -> vector<16x128xf32>
    %561 = vector.broadcast %554 : vector<1x128xf32> to vector<16x128xf32>
    %562 = arith.addf %560, %561 : vector<16x128xf32>
    %c0_136 = arith.constant 0 : index
    %c0_137 = arith.constant 0 : index
    %563 = vector.load %arg6[%c0_136, %c0_137] : memref<16x128xf32, #tpu.memory_space<vmem>>, vector<16x128xf32>
    tpu.vector_store %arg6[%c0_136, %c0_137], %562 {strides = array<i32>} : memref<16x128xf32, #tpu.memory_space<vmem>>, vector<16x128xf32>,
    return
  }
}

</mosaic_0001>

<llo_original>
// kernel: seq2seq_forward.1
$region0: #{seq2seq_forward.1}
  #allocation0 [shape = 'u32[]', space=smem, size = 0x4, offset = 0x4, fixed_abs, tag = 'smem constant byte address 0x4 - core index']
  #allocation1 [shape = 'u32[144,128]{1,0:T(1,128)}', space=vmem, size = 0x12000, scoped, tag = 'internal scratch']
  %s0 = inlined_call_operand.vmem [shape: s32[32,1], index: 0, kind: input, shape index: {}]
  %s1 = inlined_call_operand.vmem [shape: s32[16,1], index: 1, kind: input, shape index: {}]
  %s2 = inlined_call_operand.vmem [shape: f32[72,128], index: 2, kind: input, shape index: {}]
  %s3 = inlined_call_operand.vmem [shape: f32[304,64], index: 3, kind: input, shape index: {}]
  %s4 = inlined_call_operand.vmem [shape: f32[320,128], index: 4, kind: input, shape index: {}]
  %s5 = inlined_call_operand.vmem [shape: f32[32,128], index: 5, kind: output, shape index: {0}]
  %s6 = inlined_call_operand.vmem [shape: f32[16,128], index: 6, kind: output, shape index: {1}]
  %7 = xla_tuple %s5, %s6
  %s8 = sld [smem:[#allocation0]]
  $region38: #{seq2seq_forward.1} parent=0
    _
  %s10 = ssub.s32 1, %s8
  %s11 = scalar_select 0, %s10, %s8
  // Predicated region
  $region2: #{seq2seq_forward.1} parent=0 // pred_check
    _
  $region3: #{seq2seq_forward.1} parent=0 // pred_check_branch
    %13 = sbr.rel (0) target = $region5
  $region4: #{seq2seq_forward.1} parent=0 // pred_region
    _
  $region5: #{seq2seq_forward.1} parent=0 // pred_fallthru
    _
  // Predicated region
  $region6: #{seq2seq_forward.1} parent=0 // pred_check
    _
  $region7: #{seq2seq_forward.1} parent=0 // pred_check_branch
    %15 = sbr.rel (0) target = $region9
  $region8: #{seq2seq_forward.1} parent=0 // pred_region
    _
  $region9: #{seq2seq_forward.1} parent=0 // pred_fallthru
    _
  // Predicated region
  $region10: #{seq2seq_forward.1} parent=0 // pred_check
    _
  $region11: #{seq2seq_forward.1} parent=0 // pred_check_branch
    %17 = sbr.rel (0) target = $region13
  $region12: #{seq2seq_forward.1} parent=0 // pred_region
    _
  $region13: #{seq2seq_forward.1} parent=0 // pred_fallthru
    _
  // Predicated region
  $region14: #{seq2seq_forward.1} parent=0 // pred_check
    _
  $region15: #{seq2seq_forward.1} parent=0 // pred_check_branch
    %19 = sbr.rel (0) target = $region17
  $region16: #{seq2seq_forward.1} parent=0 // pred_region
    _
  $region17: #{seq2seq_forward.1} parent=0 // pred_fallthru
    _
  // Predicated region
  $region18: #{seq2seq_forward.1} parent=0 // pred_check
    _
  $region19: #{seq2seq_forward.1} parent=0 // pred_check_branch
    %21 = sbr.rel (0) target = $region21
  $region20: #{seq2seq_forward.1} parent=0 // pred_region
    _
  $region21: #{seq2seq_forward.1} parent=0 // pred_fallthru
    _
  %v22 = vld [vmem:[%s2] sm:$0xff]
  %v23 = vld [vmem:[%s2 + $0x8] sm:$0xff]
  %v24 = vld [vmem:[%s2 + $0x10] sm:$0xff]
  %v25 = vld [vmem:[%s2 + $0x18] sm:$0xff]
  %v26 = vld [vmem:[%s2 + $0x20] sm:$0xff]
  %v27 = vld [vmem:[%s2 + $0x28] sm:$0xff]
  %v28 = vld [vmem:[%s2 + $0x30] sm:$0xff]
  %v29 = vld [vmem:[%s2 + $0x38] sm:$0xff]
  %v30 = vld [vmem:[%s2 + $0x40] sm:$0xff]
  %v31 = vlaneseq
  %v32 = vand.u32 %v31, 127
  %v33 = vld [vmem:[%s0] sm:$0xff]
  %v34 = vld [vmem:[%s0 + $0x8] sm:$0xff]
  %v35 = vld [vmem:[%s0 + $0x10] sm:$0xff]
  %v36 = vld [vmem:[%s0 + $0x18] sm:$0xff]
  %37 = vset.pattern.permute.xlu0 0
  %38 = vperm.xlu0 %37, %v33
  %v39 = vpop.permute.xlu0 %38
  %40 = vset.pattern.permute.xlu0 0
  %41 = vperm.xlu0 %40, %v34
  %v42 = vpop.permute.xlu0 %41
  %43 = vset.pattern.permute.xlu0 0
  %44 = vperm.xlu0 %43, %v35
  %v45 = vpop.permute.xlu0 %44
  %46 = vset.pattern.permute.xlu0 0
  %47 = vperm.xlu0 %46, %v36
  %v48 = vpop.permute.xlu0 %47
  %vm49 = vcmp.eq.s32.totalorder %v39, %v32
  %vm50 = vcmp.eq.s32.totalorder %v42, %v32
  %vm51 = vcmp.eq.s32.totalorder %v45, %v32
  %vm52 = vcmp.eq.s32.totalorder %v48, %v32
  %v53 = vsel %vm49, 1.0, 0.0
  %v54 = vsel %vm50, 1.0, 0.0
  %v55 = vsel %vm51, 1.0, 0.0
  %v56 = vsel %vm52, 1.0, 0.0
  %vm57 = vcmask 261120
  %v59 = vsel %vm57, %v53, 0
  %v62 = vsel %vm57, %v54, 0
  %v65 = vsel %vm57, %v55, 0
  %v68 = vsel %vm57, %v56, 0
  %70 = vmatprep.subr.mxu0 0.0
  %71 = vmatpush1.msra.mxu0 0.0
  %72 = vmatprep.subr.mxu0 0.0
  %73 = vmatpush1.msra.mxu0 0.0
  %74 = vmatprep.subr.mxu0 0.0
  %75 = vmatpush1.msra.mxu0 0.0
  %76 = vmatprep.subr.mxu0 0.0
  %77 = vmatpush1.msra.mxu0 0.0
  %78 = vmatprep.subr.mxu0 0.0
  %79 = vmatpush1.msra.mxu0 0.0
  %80 = vmatprep.subr.mxu0 0.0
  %81 = vmatpush1.msra.mxu0 0.0
  %82 = vmatprep.subr.mxu0 0.0
  %83 = vmatpush1.msra.mxu0 0.0
  %84 = vmatprep.subr.mxu0 0.0
  %85 = vmatpush1.msra.mxu0 0.0
  %86 = vmatprep.subr.mxu0 0.0
  %87 = vmatpush1.msra.mxu0 0.0
  %88 = vmatprep.subr.mxu0 0.0
  %89 = vmatpush1.msra.mxu0 0.0
  %90 = vmatprep.subr.mxu0 0.0
  %91 = vmatpush1.msra.mxu0 0.0
  %92 = vmatprep.subr.mxu0 0.0
  %93 = vmatpush1.msra.mxu0 0.0
  %94 = vmatprep.subr.mxu0 0.0
  %95 = vmatpush1.msra.mxu0 %v25
  %96 = vmatprep.subr.mxu0 0.0
  %97 = vmatpush1.msra.mxu0 %v24
  %98 = vmatprep.subr.mxu0 0.0
  %99 = vmatpush1.msra.mxu0 %v23
  %100 = vmatprep.subr.mxu0 0.0
  %101 = vmatpush1.msra.mxu0 %v22
  %102 = vmatprep.subr.mxu0 0.0
  %103 = vmatpush2.msra.mxu0 0.0
  %104 = vmatprep.subr.mxu0 0.0
  %105 = vmatpush2.msra.mxu0 0.0
  %106 = vmatprep.subr.mxu0 0.0
  %107 = vmatpush2.msra.mxu0 0.0
  %108 = vmatprep.subr.mxu0 0.0
  %109 = vmatpush2.msra.mxu0 0.0
  %110 = vmatprep.subr.mxu0 0.0
  %111 = vmatpush2.msra.mxu0 0.0
  %112 = vmatprep.subr.mxu0 0.0
  %113 = vmatpush2.msra.mxu0 0.0
  %114 = vmatprep.subr.mxu0 0.0
  %115 = vmatpush2.msra.mxu0 0.0
  %116 = vmatprep.subr.mxu0 0.0
  %117 = vmatpush2.msra.mxu0 0.0
  %118 = vmatprep.subr.mxu0 0.0
  %119 = vmatpush2.msra.mxu0 0.0
  %120 = vmatprep.subr.mxu0 0.0
  %121 = vmatpush2.msra.mxu0 0.0
  %122 = vmatprep.subr.mxu0 0.0
  %123 = vmatpush2.msra.mxu0 0.0
  %124 = vmatprep.subr.mxu0 0.0
  %125 = vmatpush2.msra.mxu0 0.0
  %126 = vmatprep.subr.mxu0 0.0
  %127 = vmatpush2.msra.mxu0 0.0
  %128 = vmatprep.subr.mxu0 0.0
  %129 = vmatpush2.msra.mxu0 0.0
  %130 = vmatprep.subr.mxu0 0.0
  %131 = vmatpush2.msra.mxu0 0.0
  %132 = vmatprep.subr.mxu0 0.0
  %133 = vmatpush2.msra.mxu0 0.0
  %134 = vmatprep.mubr.f32.mxu0 0.0
  %135 = vmatmul.mubr.f32.gmra.mxu0 %v59
  %v136 = vpop.f32.mrf.mxu0
  %v137 = vadd.f32 0.0, %v136
  %v138 = vpop.f32.mrf.mxu0
  %139 = vmatprep.mubr.f32.mxu0 0.0
  %140 = vmatmul.mubr.f32.gmra.mxu0 %v62
  %v141 = vpop.f32.mrf.mxu0
  %v142 = vadd.f32 0.0, %v141
  %v143 = vpop.f32.mrf.mxu0
  %144 = vmatprep.mubr.f32.mxu0 0.0
  %145 = vmatmul.mubr.f32.gmra.mxu0 %v65
  %v146 = vpop.f32.mrf.mxu0
  %v147 = vadd.f32 0.0, %v146
  %v148 = vpop.f32.mrf.mxu0
  %149 = vmatprep.mubr.f32.mxu0 0.0
  %150 = vmatmul.mubr.f32.gmra.mxu0 %v68
  %v151 = vpop.f32.mrf.mxu0
  %v152 = vadd.f32 0.0, %v151
  %v153 = vpop.f32.mrf.mxu0
  %154 = vdwg.mxu0
  %v155 = vld [vmem:[%s3] sm:$0xff]
  %v156 = vld [vmem:[%s3 + $0x8] sm:$0xff]
  %v157 = vld [vmem:[%s3 + $0x10] sm:$0xff]
  %v158 = vld [vmem:[%s3 + $0x18] sm:$0xff]
  %v159 = vld [vmem:[%s3 + $0x20] sm:$0xff]
  %v160 = vld [vmem:[%s3 + $0x28] sm:$0xff]
  %v161 = vld [vmem:[%s3 + $0x30] sm:$0xff]
  %v162 = vld [vmem:[%s3 + $0x38] sm:$0xff]
  %v163 = vld [vmem:[%s3 + $0x40] sm:$0xff]
  %v164 = vld [vmem:[%s3 + $0x48] sm:$0xff]
  %v165 = vld [vmem:[%s3 + $0x50] sm:$0xff]
  %v166 = vld [vmem:[%s3 + $0x58] sm:$0xff]
  %v167 = vld [vmem:[%s3 + $0x60] sm:$0xff]
  %v168 = vld [vmem:[%s3 + $0x68] sm:$0xff]
  %v169 = vld [vmem:[%s3 + $0x70] sm:$0xff]
  %v170 = vld [vmem:[%s3 + $0x78] sm:$0xff]
  %v171 = vld [vmem:[%s3 + $0x80] sm:$0xff]
  %v172 = vld [vmem:[%s3 + $0x88] sm:$0xff]
  %v173 = vld [vmem:[%s3 + $0x90] sm:$0x1]
  %v174 = vlaneseq
  %v175 = vshrl.u32 %v174, 7
  %v176 = vsub.s32 0, %v175
  %v177 = vrot.slane %v173, %v176
  %178 = vmatprep.subr.mxu0 0.0
  %179 = vmatpush1.msra.mxu0 %v170
  %180 = vmatprep.subr.mxu0 0.0
  %181 = vmatpush1.msra.mxu0 %v169
  %182 = vmatprep.subr.mxu0 0.0
  %183 = vmatpush1.msra.mxu0 %v168
  %184 = vmatprep.subr.mxu0 0.0
  %185 = vmatpush1.msra.mxu0 %v167
  %186 = vmatprep.subr.mxu0 0.0
  %187 = vmatpush1.msra.mxu0 %v166
  %188 = vmatprep.subr.mxu0 0.0
  %189 = vmatpush1.msra.mxu0 %v165
  %190 = vmatprep.subr.mxu0 0.0
  %191 = vmatpush1.msra.mxu0 %v164
  %192 = vmatprep.subr.mxu0 0.0
  %193 = vmatpush1.msra.mxu0 %v163
  %194 = vmatprep.subr.mxu0 0.0
  %195 = vmatpush1.msra.mxu0 %v162
  %196 = vmatprep.subr.mxu0 0.0
  %197 = vmatpush1.msra.mxu0 %v161
  %198 = vmatprep.subr.mxu0 0.0
  %199 = vmatpush1.msra.mxu0 %v160
  %200 = vmatprep.subr.mxu0 0.0
  %201 = vmatpush1.msra.mxu0 %v159
  %202 = vmatprep.subr.mxu0 0.0
  %203 = vmatpush1.msra.mxu0 %v158
  %204 = vmatprep.subr.mxu0 0.0
  %205 = vmatpush1.msra.mxu0 %v157
  %206 = vmatprep.subr.mxu0 0.0
  %207 = vmatpush1.msra.mxu0 %v156
  %208 = vmatprep.subr.mxu0 0.0
  %209 = vmatpush1.msra.mxu0 %v155
  %210 = vmatprep.subr.mxu0 0.0
  %211 = vmatpush2.msra.mxu0 0.0
  %212 = vmatprep.subr.mxu0 0.0
  %213 = vmatpush2.msra.mxu0 0.0
  %214 = vmatprep.subr.mxu0 0.0
  %215 = vmatpush2.msra.mxu0 0.0
  %216 = vmatprep.subr.mxu0 0.0
  %217 = vmatpush2.msra.mxu0 0.0
  %218 = vmatprep.subr.mxu0 0.0
  %219 = vmatpush2.msra.mxu0 0.0
  %220 = vmatprep.subr.mxu0 0.0
  %221 = vmatpush2.msra.mxu0 0.0
  %222 = vmatprep.subr.mxu0 0.0
  %223 = vmatpush2.msra.mxu0 0.0
  %224 = vmatprep.subr.mxu0 0.0
  %225 = vmatpush2.msra.mxu0 0.0
  %226 = vmatprep.subr.mxu0 0.0
  %227 = vmatpush2.msra.mxu0 0.0
  %228 = vmatprep.subr.mxu0 0.0
  %229 = vmatpush2.msra.mxu0 0.0
  %230 = vmatprep.subr.mxu0 0.0
  %231 = vmatpush2.msra.mxu0 0.0
  %232 = vmatprep.subr.mxu0 0.0
  %233 = vmatpush2.msra.mxu0 0.0
  %234 = vmatprep.subr.mxu0 0.0
  %235 = vmatpush2.msra.mxu0 0.0
  %236 = vmatprep.subr.mxu0 0.0
  %237 = vmatpush2.msra.mxu0 0.0
  %238 = vmatprep.subr.mxu0 0.0
  %239 = vmatpush2.msra.mxu0 0.0
  %240 = vmatprep.subr.mxu0 0.0
  %241 = vmatpush2.msra.mxu0 0.0
  %242 = vmatprep.mubr.f32.mxu0 0.0
  %243 = vmatmul.mubr.f32.gmra.mxu0 %v137
  %v244 = vpop.f32.mrf.mxu0
  %v245 = vadd.f32 %v177, %v244
  %v246 = vpop.f32.mrf.mxu0
  %247 = vmatprep.mubr.f32.mxu0 0.0
  %248 = vmatmul.mubr.f32.gmra.mxu0 %v142
  %v249 = vpop.f32.mrf.mxu0
  %v250 = vadd.f32 %v177, %v249
  %v251 = vpop.f32.mrf.mxu0
  %252 = vmatprep.mubr.f32.mxu0 0.0
  %253 = vmatmul.mubr.f32.gmra.mxu0 %v147
  %v254 = vpop.f32.mrf.mxu0
  %v255 = vadd.f32 %v177, %v254
  %v256 = vpop.f32.mrf.mxu0
  %257 = vmatprep.mubr.f32.mxu0 0.0
  %258 = vmatmul.mubr.f32.gmra.mxu0 %v152
  %v259 = vpop.f32.mrf.mxu0
  %v260 = vadd.f32 %v177, %v259
  %v261 = vpop.f32.mrf.mxu0
  %262 = vdwg.mxu0
  %vm263 = vcmask 130048
  %v265 = vsel %vm263, 0.0, 0
  %267 = vmatprep.subr.mxu0 0.0
  %268 = vmatpush1.msra.mxu0 0.0
  %269 = vmatprep.subr.mxu0 0.0
  %270 = vmatpush1.msra.mxu0 0.0
  %271 = vmatprep.subr.mxu0 0.0
  %272 = vmatpush1.msra.mxu0 0.0
  %273 = vmatprep.subr.mxu0 0.0
  %274 = vmatpush1.msra.mxu0 0.0
  %275 = vmatprep.subr.mxu0 0.0
  %276 = vmatpush1.msra.mxu0 0.0
  %277 = vmatprep.subr.mxu0 0.0
  %278 = vmatpush1.msra.mxu0 0.0
  %279 = vmatprep.subr.mxu0 0.0
  %280 = vmatpush1.msra.mxu0 0.0
  %281 = vmatprep.subr.mxu0 0.0
  %282 = vmatpush1.msra.mxu0 0.0
  %283 = vmatprep.subr.mxu0 0.0
  %284 = vmatpush1.msra.mxu0 0.0
  %285 = vmatprep.subr.mxu0 0.0
  %286 = vmatpush1.msra.mxu0 0.0
  %287 = vmatprep.subr.mxu0 0.0
  %288 = vmatpush1.msra.mxu0 0.0
  %289 = vmatprep.subr.mxu0 0.0
  %290 = vmatpush1.msra.mxu0 0.0
  %291 = vmatprep.subr.mxu0 0.0
  %292 = vmatpush1.msra.mxu0 0.0
  %293 = vmatprep.subr.mxu0 0.0
  %294 = vmatpush1.msra.mxu0 0.0
  %295 = vmatprep.subr.mxu0 0.0
  %296 = vmatpush1.msra.mxu0 %v172
  %297 = vmatprep.subr.mxu0 0.0
  %298 = vmatpush1.msra.mxu0 %v171
  %299 = vmatprep.subr.mxu0 0.0
  %300 = vmatpush2.msra.mxu0 0.0
  %301 = vmatprep.subr.mxu0 0.0
  %302 = vmatpush2.msra.mxu0 0.0
  %303 = vmatprep.subr.mxu0 0.0
  %304 = vmatpush2.msra.mxu0 0.0
  %305 = vmatprep.subr.mxu0 0.0
  %306 = vmatpush2.msra.mxu0 0.0
  %307 = vmatprep.subr.mxu0 0.0
  %308 = vmatpush2.msra.mxu0 0.0
  %309 = vmatprep.subr.mxu0 0.0
  %310 = vmatpush2.msra.mxu0 0.0
  %311 = vmatprep.subr.mxu0 0.0
  %312 = vmatpush2.msra.mxu0 0.0
  %313 = vmatprep.subr.mxu0 0.0
  %314 = vmatpush2.msra.mxu0 0.0
  %315 = vmatprep.subr.mxu0 0.0
  %316 = vmatpush2.msra.mxu0 0.0
  %317 = vmatprep.subr.mxu0 0.0
  %318 = vmatpush2.msra.mxu0 0.0
  %319 = vmatprep.subr.mxu0 0.0
  %320 = vmatpush2.msra.mxu0 0.0
  %321 = vmatprep.subr.mxu0 0.0
  %322 = vmatpush2.msra.mxu0 0.0
  %323 = vmatprep.subr.mxu0 0.0
  %324 = vmatpush2.msra.mxu0 0.0
  %325 = vmatprep.subr.mxu0 0.0
  %326 = vmatpush2.msra.mxu0 0.0
  %327 = vmatprep.subr.mxu0 0.0
  %328 = vmatpush2.msra.mxu0 0.0
  %329 = vmatprep.subr.mxu0 0.0
  %330 = vmatpush2.msra.mxu0 0.0
  %331 = vmatprep.mubr.f32.mxu0 0.0
  %332 = vmatmul.mubr.f32.gmra.mxu0 %v265
  %v333 = vpop.f32.mrf.mxu0
  %v334 = vadd.f32 0.0, %v333
  %v335 = vpop.f32.mrf.mxu0
  %336 = vdwg.mxu0
  %v337 = vadd.f32 %v245, %v334
  %v338 = vmul.f32 %v337, 0.5
  %v339 = vtanh.pop %v338
  %v340 = vmul.f32 %v339, 0.5
  %v341 = vadd.f32 %v340, 0.5
  %v342 = vtanh.pop %v337
  %v343 = vmul.f32 %v341, 0.0
  %345 = vrot.lane.b32.xlu0 %v342, 80
  %v346 = vpop.permute.xlu0 %345
  %v348 = vmul.f32 %v341, %v346
  %350 = vrot.lane.b32.xlu0 %v348, 16
  %v351 = vpop.permute.xlu0 %350
  %v353 = vadd.f32 %v343, %v351
  %v354 = vtanh.pop %v353
  %356 = vrot.lane.b32.xlu0 %v354, 16
  %v357 = vpop.permute.xlu0 %356
  %v359 = vmul.f32 %v341, %v357
  %361 = vrot.lane.b32.xlu0 %v359, 96
  %v362 = vpop.permute.xlu0 %361
  %v363 = vsel %vm263, %v362, 0
  %365 = vmatprep.subr.mxu0 0.0
  %366 = vmatpush1.msra.mxu0 0.0
  %367 = vmatprep.subr.mxu0 0.0
  %368 = vmatpush1.msra.mxu0 0.0
  %369 = vmatprep.subr.mxu0 0.0
  %370 = vmatpush1.msra.mxu0 0.0
  %371 = vmatprep.subr.mxu0 0.0
  %372 = vmatpush1.msra.mxu0 0.0
  %373 = vmatprep.subr.mxu0 0.0
  %374 = vmatpush1.msra.mxu0 0.0
  %375 = vmatprep.subr.mxu0 0.0
  %376 = vmatpush1.msra.mxu0 0.0
  %377 = vmatprep.subr.mxu0 0.0
  %378 = vmatpush1.msra.mxu0 0.0
  %379 = vmatprep.subr.mxu0 0.0
  %380 = vmatpush1.msra.mxu0 0.0
  %381 = vmatprep.subr.mxu0 0.0
  %382 = vmatpush1.msra.mxu0 0.0
  %383 = vmatprep.subr.mxu0 0.0
  %384 = vmatpush1.msra.mxu0 0.0
  %385 = vmatprep.subr.mxu0 0.0
  %386 = vmatpush1.msra.mxu0 0.0
  %387 = vmatprep.subr.mxu0 0.0
  %388 = vmatpush1.msra.mxu0 0.0
  %389 = vmatprep.subr.mxu0 0.0
  %390 = vmatpush1.msra.mxu0 0.0
  %391 = vmatprep.subr.mxu0 0.0
  %392 = vmatpush1.msra.mxu0 0.0
  %393 = vmatprep.subr.mxu0 0.0
  %394 = vmatpush1.msra.mxu0 %v172
  %395 = vmatprep.subr.mxu0 0.0
  %396 = vmatpush1.msra.mxu0 %v171
  %397 = vmatprep.subr.mxu0 0.0
  %398 = vmatpush2.msra.mxu0 0.0
  %399 = vmatprep.subr.mxu0 0.0
  %400 = vmatpush2.msra.mxu0 0.0
  %401 = vmatprep.subr.mxu0 0.0
  %402 = vmatpush2.msra.mxu0 0.0
  %403 = vmatprep.subr.mxu0 0.0
  %404 = vmatpush2.msra.mxu0 0.0
  %405 = vmatprep.subr.mxu0 0.0
  %406 = vmatpush2.msra.mxu0 0.0
  %407 = vmatprep.subr.mxu0 0.0
  %408 = vmatpush2.msra.mxu0 0.0
  %409 = vmatprep.subr.mxu0 0.0
  %410 = vmatpush2.msra.mxu0 0.0
  %411 = vmatprep.subr.mxu0 0.0
  %412 = vmatpush2.msra.mxu0 0.0
  %413 = vmatprep.subr.mxu0 0.0
  %414 = vmatpush2.msra.mxu0 0.0
  %415 = vmatprep.subr.mxu0 0.0
  %416 = vmatpush2.msra.mxu0 0.0
  %417 = vmatprep.subr.mxu0 0.0
  %418 = vmatpush2.msra.mxu0 0.0
  %419 = vmatprep.subr.mxu0 0.0
  %420 = vmatpush2.msra.mxu0 0.0
  %421 = vmatprep.subr.mxu0 0.0
  %422 = vmatpush2.msra.mxu0 0.0
  %423 = vmatprep.subr.mxu0 0.0
  %424 = vmatpush2.msra.mxu0 0.0
  %425 = vmatprep.subr.mxu0 0.0
  %426 = vmatpush2.msra.mxu0 0.0
  %427 = vmatprep.subr.mxu0 0.0
  %428 = vmatpush2.msra.mxu0 0.0
  %429 = vmatprep.mubr.f32.mxu0 0.0
  %430 = vmatmul.mubr.f32.gmra.mxu0 %v363
  %v431 = vpop.f32.mrf.mxu0
  %v432 = vadd.f32 0.0, %v431
  %v433 = vpop.f32.mrf.mxu0
  %434 = vdwg.mxu0
  %v436 = vrot.slane %v432, 6
  %v438 = vadd.f32 %v245, %v436
  %v439 = vmul.f32 %v438, 0.5
  %v440 = vtanh.pop %v439
  %v441 = vmul.f32 %v440, 0.5
  %v442 = vadd.f32 %v441, 0.5
  %v443 = vtanh.pop %v438
  %v445 = vrot.slane %v353, 6
  %v447 = vmul.f32 %v442, %v445
  %449 = vrot.lane.b32.xlu0 %v443, 80
  %v450 = vpop.permute.xlu0 %449
  %v452 = vmul.f32 %v442, %v450
  %454 = vrot.lane.b32.xlu0 %v452, 16
  %v455 = vpop.permute.xlu0 %454
  %v457 = vadd.f32 %v447, %v455
  %v458 = vtanh.pop %v457
  %460 = vrot.lane.b32.xlu0 %v458, 16
  %v461 = vpop.permute.xlu0 %460
  %v463 = vmul.f32 %v442, %v461
  %v465 = vrot.slane %v463, 2
  %466 = vrot.lane.b32.xlu0 %v465, 96
  %v467 = vpop.permute.xlu0 %466
  %v468 = vsel %vm263, %v467, 0
  %470 = vmatprep.subr.mxu0 0.0
  %471 = vmatpush1.msra.mxu0 0.0
  %472 = vmatprep.subr.mxu0 0.0
  %473 = vmatpush1.msra.mxu0 0.0
  %474 = vmatprep.subr.mxu0 0.0
  %475 = vmatpush1.msra.mxu0 0.0
  %476 = vmatprep.subr.mxu0 0.0
  %477 = vmatpush1.msra.mxu0 0.0
  %478 = vmatprep.subr.mxu0 0.0
  %479 = vmatpush1.msra.mxu0 0.0
  %480 = vmatprep.subr.mxu0 0.0
  %481 = vmatpush1.msra.mxu0 0.0
  %482 = vmatprep.subr.mxu0 0.0
  %483 = vmatpush1.msra.mxu0 0.0
  %484 = vmatprep.subr.mxu0 0.0
  %485 = vmatpush1.msra.mxu0 0.0
  %486 = vmatprep.subr.mxu0 0.0
  %487 = vmatpush1.msra.mxu0 0.0
  %488 = vmatprep.subr.mxu0 0.0
  %489 = vmatpush1.msra.mxu0 0.0
  %490 = vmatprep.subr.mxu0 0.0
  %491 = vmatpush1.msra.mxu0 0.0
  %492 = vmatprep.subr.mxu0 0.0
  %493 = vmatpush1.msra.mxu0 0.0
  %494 = vmatprep.subr.mxu0 0.0
  %495 = vmatpush1.msra.mxu0 0.0
  %496 = vmatprep.subr.mxu0 0.0
  %497 = vmatpush1.msra.mxu0 0.0
  %498 = vmatprep.subr.mxu0 0.0
  %499 = vmatpush1.msra.mxu0 %v172
  %500 = vmatprep.subr.mxu0 0.0
  %501 = vmatpush1.msra.mxu0 %v171
  %502 = vmatprep.subr.mxu0 0.0
  %503 = vmatpush2.msra.mxu0 0.0
  %504 = vmatprep.subr.mxu0 0.0
  %505 = vmatpush2.msra.mxu0 0.0
  %506 = vmatprep.subr.mxu0 0.0
  %507 = vmatpush2.msra.mxu0 0.0
  %508 = vmatprep.subr.mxu0 0.0
  %509 = vmatpush2.msra.mxu0 0.0
  %510 = vmatprep.subr.mxu0 0.0
  %511 = vmatpush2.msra.mxu0 0.0
  %512 = vmatprep.subr.mxu0 0.0
  %513 = vmatpush2.msra.mxu0 0.0
  %514 = vmatprep.subr.mxu0 0.0
  %515 = vmatpush2.msra.mxu0 0.0
  %516 = vmatprep.subr.mxu0 0.0
  %517 = vmatpush2.msra.mxu0 0.0
  %518 = vmatprep.subr.mxu0 0.0
  %519 = vmatpush2.msra.mxu0 0.0
  %520 = vmatprep.subr.mxu0 0.0
  %521 = vmatpush2.msra.mxu0 0.0
  %522 = vmatprep.subr.mxu0 0.0
  %523 = vmatpush2.msra.mxu0 0.0
  %524 = vmatprep.subr.mxu0 0.0
  %525 = vmatpush2.msra.mxu0 0.0
  %526 = vmatprep.subr.mxu0 0.0
  %527 = vmatpush2.msra.mxu0 0.0
  %528 = vmatprep.subr.mxu0 0.0
  %529 = vmatpush2.msra.mxu0 0.0
  %530 = vmatprep.subr.mxu0 0.0
  %531 = vmatpush2.msra.mxu0 0.0
  %532 = vmatprep.subr.mxu0 0.0
  %533 = vmatpush2.msra.mxu0 0.0
  %534 = vmatprep.mubr.f32.mxu0 0.0
  %535 = vmatmul.mubr.f32.gmra.mxu0 %v468
  %v536 = vpop.f32.mrf.mxu0
  %v537 = vadd.f32 0.0, %v536
  %v538 = vpop.f32.mrf.mxu0
  %539 = vdwg.mxu0
  %v541 = vrot.slane %v537, 4
  %v543 = vadd.f32 %v245, %v541
  %v544 = vmul.f32 %v543, 0.5
  %v545 = vtanh.pop %v544
  %v546 = vmul.f32 %v545, 0.5
  %v547 = vadd.f32 %v546, 0.5
  %v548 = vtanh.pop %v543
  %v550 = vrot.slane %v457, 6
  %v552 = vmul.f32 %v547, %v550
  %554 = vrot.lane.b32.xlu0 %v548, 80
  %v555 = vpop.permute.xlu0 %554
  %v557 = vmul.f32 %v547, %v555
  %559 = vrot.lane.b32.xlu0 %v557, 16
  %v560 = vpop.permute.xlu0 %559
  %v562 = vadd.f32 %v552, %v560
  %v563 = vtanh.pop %v562
  %565 = vrot.lane.b32.xlu0 %v563, 16
  %v566 = vpop.permute.xlu0 %565
  %v568 = vmul.f32 %v547, %v566
  %v570 = vrot.slane %v568, 4
  %571 = vrot.lane.b32.xlu0 %v570, 96
  %v572 = vpop.permute.xlu0 %571
  %v573 = vsel %vm263, %v572, 0
  %575 = vmatprep.subr.mxu0 0.0
  %576 = vmatpush1.msra.mxu0 0.0
  %577 = vmatprep.subr.mxu0 0.0
  %578 = vmatpush1.msra.mxu0 0.0
  %579 = vmatprep.subr.mxu0 0.0
  %580 = vmatpush1.msra.mxu0 0.0
  %581 = vmatprep.subr.mxu0 0.0
  %582 = vmatpush1.msra.mxu0 0.0
  %583 = vmatprep.subr.mxu0 0.0
  %584 = vmatpush1.msra.mxu0 0.0
  %585 = vmatprep.subr.mxu0 0.0
  %586 = vmatpush1.msra.mxu0 0.0
  %587 = vmatprep.subr.mxu0 0.0
  %588 = vmatpush1.msra.mxu0 0.0
  %589 = vmatprep.subr.mxu0 0.0
  %590 = vmatpush1.msra.mxu0 0.0
  %591 = vmatprep.subr.mxu0 0.0
  %592 = vmatpush1.msra.mxu0 0.0
  %593 = vmatprep.subr.mxu0 0.0
  %594 = vmatpush1.msra.mxu0 0.0
  %595 = vmatprep.subr.mxu0 0.0
  %596 = vmatpush1.msra.mxu0 0.0
  %597 = vmatprep.subr.mxu0 0.0
  %598 = vmatpush1.msra.mxu0 0.0
  %599 = vmatprep.subr.mxu0 0.0
  %600 = vmatpush1.msra.mxu0 0.0
  %601 = vmatprep.subr.mxu0 0.0
  %602 = vmatpush1.msra.mxu0 0.0
  %603 = vmatprep.subr.mxu0 0.0
  %604 = vmatpush1.msra.mxu0 %v172
  %605 = vmatprep.subr.mxu0 0.0
  %606 = vmatpush1.msra.mxu0 %v171
  %607 = vmatprep.subr.mxu0 0.0
  %608 = vmatpush2.msra.mxu0 0.0
  %609 = vmatprep.subr.mxu0 0.0
  %610 = vmatpush2.msra.mxu0 0.0
  %611 = vmatprep.subr.mxu0 0.0
  %612 = vmatpush2.msra.mxu0 0.0
  %613 = vmatprep.subr.mxu0 0.0
  %614 = vmatpush2.msra.mxu0 0.0
  %615 = vmatprep.subr.mxu0 0.0
  %616 = vmatpush2.msra.mxu0 0.0
  %617 = vmatprep.subr.mxu0 0.0
  %618 = vmatpush2.msra.mxu0 0.0
  %619 = vmatprep.subr.mxu0 0.0
  %620 = vmatpush2.msra.mxu0 0.0
  %621 = vmatprep.subr.mxu0 0.0
  %622 = vmatpush2.msra.mxu0 0.0
  %623 = vmatprep.subr.mxu0 0.0
  %624 = vmatpush2.msra.mxu0 0.0
  %625 = vmatprep.subr.mxu0 0.0
  %626 = vmatpush2.msra.mxu0 0.0
  %627 = vmatprep.subr.mxu0 0.0
  %628 = vmatpush2.msra.mxu0 0.0
  %629 = vmatprep.subr.mxu0 0.0
  %630 = vmatpush2.msra.mxu0 0.0
  %631 = vmatprep.subr.mxu0 0.0
  %632 = vmatpush2.msra.mxu0 0.0
  %633 = vmatprep.subr.mxu0 0.0
  %634 = vmatpush2.msra.mxu0 0.0
  %635 = vmatprep.subr.mxu0 0.0
  %636 = vmatpush2.msra.mxu0 0.0
  %637 = vmatprep.subr.mxu0 0.0
  %638 = vmatpush2.msra.mxu0 0.0
  %639 = vmatprep.mubr.f32.mxu0 0.0
  %640 = vmatmul.mubr.f32.gmra.mxu0 %v573
  %v641 = vpop.f32.mrf.mxu0
  %v642 = vadd.f32 0.0, %v641
  %v643 = vpop.f32.mrf.mxu0
  %644 = vdwg.mxu0
  %v646 = vrot.slane %v642, 2
  %v648 = vadd.f32 %v245, %v646
  %v649 = vmul.f32 %v648, 0.5
  %v650 = vtanh.pop %v649
  %v651 = vmul.f32 %v650, 0.5
  %v652 = vadd.f32 %v651, 0.5
  %v653 = vtanh.pop %v648
  %v655 = vrot.slane %v562, 6
  %v657 = vmul.f32 %v652, %v655
  %659 = vrot.lane.b32.xlu0 %v653, 80
  %v660 = vpop.permute.xlu0 %659
  %v662 = vmul.f32 %v652, %v660
  %664 = vrot.lane.b32.xlu0 %v662, 16
  %v665 = vpop.permute.xlu0 %664
  %v667 = vadd.f32 %v657, %v665
  %v668 = vtanh.pop %v667
  %670 = vrot.lane.b32.xlu0 %v668, 16
  %v671 = vpop.permute.xlu0 %670
  %v673 = vmul.f32 %v652, %v671
  %v675 = vrot.slane %v673, 6
  %676 = vrot.lane.b32.xlu0 %v675, 96
  %v677 = vpop.permute.xlu0 %676
  %v678 = vsel %vm263, %v677, 0
  %680 = vmatprep.subr.mxu0 0.0
  %681 = vmatpush1.msra.mxu0 0.0
  %682 = vmatprep.subr.mxu0 0.0
  %683 = vmatpush1.msra.mxu0 0.0
  %684 = vmatprep.subr.mxu0 0.0
  %685 = vmatpush1.msra.mxu0 0.0
  %686 = vmatprep.subr.mxu0 0.0
  %687 = vmatpush1.msra.mxu0 0.0
  %688 = vmatprep.subr.mxu0 0.0
  %689 = vmatpush1.msra.mxu0 0.0
  %690 = vmatprep.subr.mxu0 0.0
  %691 = vmatpush1.msra.mxu0 0.0
  %692 = vmatprep.subr.mxu0 0.0
  %693 = vmatpush1.msra.mxu0 0.0
  %694 = vmatprep.subr.mxu0 0.0
  %695 = vmatpush1.msra.mxu0 0.0
  %696 = vmatprep.subr.mxu0 0.0
  %697 = vmatpush1.msra.mxu0 0.0
  %698 = vmatprep.subr.mxu0 0.0
  %699 = vmatpush1.msra.mxu0 0.0
  %700 = vmatprep.subr.mxu0 0.0
  %701 = vmatpush1.msra.mxu0 0.0
  %702 = vmatprep.subr.mxu0 0.0
  %703 = vmatpush1.msra.mxu0 0.0
  %704 = vmatprep.subr.mxu0 0.0
  %705 = vmatpush1.msra.mxu0 0.0
  %706 = vmatprep.subr.mxu0 0.0
  %707 = vmatpush1.msra.mxu0 0.0
  %708 = vmatprep.subr.mxu0 0.0
  %709 = vmatpush1.msra.mxu0 %v172
  %710 = vmatprep.subr.mxu0 0.0
  %711 = vmatpush1.msra.mxu0 %v171
  %712 = vmatprep.subr.mxu0 0.0
  %713 = vmatpush2.msra.mxu0 0.0
  %714 = vmatprep.subr.mxu0 0.0
  %715 = vmatpush2.msra.mxu0 0.0
  %716 = vmatprep.subr.mxu0 0.0
  %717 = vmatpush2.msra.mxu0 0.0
  %718 = vmatprep.subr.mxu0 0.0
  %719 = vmatpush2.msra.mxu0 0.0
  %720 = vmatprep.subr.mxu0 0.0
  %721 = vmatpush2.msra.mxu0 0.0
  %722 = vmatprep.subr.mxu0 0.0
  %723 = vmatpush2.msra.mxu0 0.0
  %724 = vmatprep.subr.mxu0 0.0
  %725 = vmatpush2.msra.mxu0 0.0
  %726 = vmatprep.subr.mxu0 0.0
  %727 = vmatpush2.msra.mxu0 0.0
  %728 = vmatprep.subr.mxu0 0.0
  %729 = vmatpush2.msra.mxu0 0.0
  %730 = vmatprep.subr.mxu0 0.0
  %731 = vmatpush2.msra.mxu0 0.0
  %732 = vmatprep.subr.mxu0 0.0
  %733 = vmatpush2.msra.mxu0 0.0
  %734 = vmatprep.subr.mxu0 0.0
  %735 = vmatpush2.msra.mxu0 0.0
  %736 = vmatprep.subr.mxu0 0.0
  %737 = vmatpush2.msra.mxu0 0.0
  %738 = vmatprep.subr.mxu0 0.0
  %739 = vmatpush2.msra.mxu0 0.0
  %740 = vmatprep.subr.mxu0 0.0
  %741 = vmatpush2.msra.mxu0 0.0
  %742 = vmatprep.subr.mxu0 0.0
  %743 = vmatpush2.msra.mxu0 0.0
  %744 = vmatprep.mubr.f32.mxu0 0.0
  %745 = vmatmul.mubr.f32.gmra.mxu0 %v678
  %v746 = vpop.f32.mrf.mxu0
  %v747 = vadd.f32 0.0, %v746
  %v748 = vpop.f32.mrf.mxu0
  %749 = vdwg.mxu0
  %v750 = vadd.f32 %v250, %v747
  %v751 = vmul.f32 %v750, 0.5
  %v752 = vtanh.pop %v751
  %v753 = vmul.f32 %v752, 0.5
  %v754 = vadd.f32 %v753, 0.5
  %v755 = vtanh.pop %v750
  %v757 = vrot.slane %v667, 6
  %v759 = vmul.f32 %v754, %v757
  %761 = vrot.lane.b32.xlu0 %v755, 80
  %v762 = vpop.permute.xlu0 %761
  %v764 = vmul.f32 %v754, %v762
  %766 = vrot.lane.b32.xlu0 %v764, 16
  %v767 = vpop.permute.xlu0 %766
  %v769 = vadd.f32 %v759, %v767
  %v770 = vtanh.pop %v769
  %772 = vrot.lane.b32.xlu0 %v770, 16
  %v773 = vpop.permute.xlu0 %772
  %v775 = vmul.f32 %v754, %v773
  %777 = vrot.lane.b32.xlu0 %v775, 96
  %v778 = vpop.permute.xlu0 %777
  %v779 = vsel %vm263, %v778, 0
  %781 = vmatprep.subr.mxu0 0.0
  %782 = vmatpush1.msra.mxu0 0.0
  %783 = vmatprep.subr.mxu0 0.0
  %784 = vmatpush1.msra.mxu0 0.0
  %785 = vmatprep.subr.mxu0 0.0
  %786 = vmatpush1.msra.mxu0 0.0
  %787 = vmatprep.subr.mxu0 0.0
  %788 = vmatpush1.msra.mxu0 0.0
  %789 = vmatprep.subr.mxu0 0.0
  %790 = vmatpush1.msra.mxu0 0.0
  %791 = vmatprep.subr.mxu0 0.0
  %792 = vmatpush1.msra.mxu0 0.0
  %793 = vmatprep.subr.mxu0 0.0
  %794 = vmatpush1.msra.mxu0 0.0
  %795 = vmatprep.subr.mxu0 0.0
  %796 = vmatpush1.msra.mxu0 0.0
  %797 = vmatprep.subr.mxu0 0.0
  %798 = vmatpush1.msra.mxu0 0.0
  %799 = vmatprep.subr.mxu0 0.0
  %800 = vmatpush1.msra.mxu0 0.0
  %801 = vmatprep.subr.mxu0 0.0
  %802 = vmatpush1.msra.mxu0 0.0
  %803 = vmatprep.subr.mxu0 0.0
  %804 = vmatpush1.msra.mxu0 0.0
  %805 = vmatprep.subr.mxu0 0.0
  %806 = vmatpush1.msra.mxu0 0.0
  %807 = vmatprep.subr.mxu0 0.0
  %808 = vmatpush1.msra.mxu0 0.0
  %809 = vmatprep.subr.mxu0 0.0
  %810 = vmatpush1.msra.mxu0 %v172
  %811 = vmatprep.subr.mxu0 0.0
  %812 = vmatpush1.msra.mxu0 %v171
  %813 = vmatprep.subr.mxu0 0.0
  %814 = vmatpush2.msra.mxu0 0.0
  %815 = vmatprep.subr.mxu0 0.0
  %816 = vmatpush2.msra.mxu0 0.0
  %817 = vmatprep.subr.mxu0 0.0
  %818 = vmatpush2.msra.mxu0 0.0
  %819 = vmatprep.subr.mxu0 0.0
  %820 = vmatpush2.msra.mxu0 0.0
  %821 = vmatprep.subr.mxu0 0.0
  %822 = vmatpush2.msra.mxu0 0.0
  %823 = vmatprep.subr.mxu0 0.0
  %824 = vmatpush2.msra.mxu0 0.0
  %825 = vmatprep.subr.mxu0 0.0
  %826 = vmatpush2.msra.mxu0 0.0
  %827 = vmatprep.subr.mxu0 0.0
  %828 = vmatpush2.msra.mxu0 0.0
  %829 = vmatprep.subr.mxu0 0.0
  %830 = vmatpush2.msra.mxu0 0.0
  %831 = vmatprep.subr.mxu0 0.0
  %832 = vmatpush2.msra.mxu0 0.0
  %833 = vmatprep.subr.mxu0 0.0
  %834 = vmatpush2.msra.mxu0 0.0
  %835 = vmatprep.subr.mxu0 0.0
  %836 = vmatpush2.msra.mxu0 0.0
  %837 = vmatprep.subr.mxu0 0.0
  %838 = vmatpush2.msra.mxu0 0.0
  %839 = vmatprep.subr.mxu0 0.0
  %840 = vmatpush2.msra.mxu0 0.0
  %841 = vmatprep.subr.mxu0 0.0
  %842 = vmatpush2.msra.mxu0 0.0
  %843 = vmatprep.subr.mxu0 0.0
  %844 = vmatpush2.msra.mxu0 0.0
  %845 = vmatprep.mubr.f32.mxu0 0.0
  %846 = vmatmul.mubr.f32.gmra.mxu0 %v779
  %v847 = vpop.f32.mrf.mxu0
  %v848 = vadd.f32 0.0, %v847
  %v849 = vpop.f32.mrf.mxu0
  %850 = vdwg.mxu0
  %v852 = vrot.slane %v848, 6
  %v854 = vadd.f32 %v250, %v852
  %v855 = vmul.f32 %v854, 0.5
  %v856 = vtanh.pop %v855
  %v857 = vmul.f32 %v856, 0.5
  %v858 = vadd.f32 %v857, 0.5
  %v859 = vtanh.pop %v854
  %v861 = vrot.slane %v769, 6
  %v863 = vmul.f32 %v858, %v861
  %865 = vrot.lane.b32.xlu0 %v859, 80
  %v866 = vpop.permute.xlu0 %865
  %v868 = vmul.f32 %v858, %v866
  %870 = vrot.lane.b32.xlu0 %v868, 16
  %v871 = vpop.permute.xlu0 %870
  %v873 = vadd.f32 %v863, %v871
  %v874 = vtanh.pop %v873
  %876 = vrot.lane.b32.xlu0 %v874, 16
  %v877 = vpop.permute.xlu0 %876
  %v879 = vmul.f32 %v858, %v877
  %v881 = vrot.slane %v879, 2
  %882 = vrot.lane.b32.xlu0 %v881, 96
  %v883 = vpop.permute.xlu0 %882
  %v884 = vsel %vm263, %v883, 0
  %886 = vmatprep.subr.mxu0 0.0
  %887 = vmatpush1.msra.mxu0 0.0
  %888 = vmatprep.subr.mxu0 0.0
  %889 = vmatpush1.msra.mxu0 0.0
  %890 = vmatprep.subr.mxu0 0.0
  %891 = vmatpush1.msra.mxu0 0.0
  %892 = vmatprep.subr.mxu0 0.0
  %893 = vmatpush1.msra.mxu0 0.0
  %894 = vmatprep.subr.mxu0 0.0
  %895 = vmatpush1.msra.mxu0 0.0
  %896 = vmatprep.subr.mxu0 0.0
  %897 = vmatpush1.msra.mxu0 0.0
  %898 = vmatprep.subr.mxu0 0.0
  %899 = vmatpush1.msra.mxu0 0.0
  %900 = vmatprep.subr.mxu0 0.0
  %901 = vmatpush1.msra.mxu0 0.0
  %902 = vmatprep.subr.mxu0 0.0
  %903 = vmatpush1.msra.mxu0 0.0
  %904 = vmatprep.subr.mxu0 0.0
  %905 = vmatpush1.msra.mxu0 0.0
  %906 = vmatprep.subr.mxu0 0.0
  %907 = vmatpush1.msra.mxu0 0.0
  %908 = vmatprep.subr.mxu0 0.0
  %909 = vmatpush1.msra.mxu0 0.0
  %910 = vmatprep.subr.mxu0 0.0
  %911 = vmatpush1.msra.mxu0 0.0
  %912 = vmatprep.subr.mxu0 0.0
  %913 = vmatpush1.msra.mxu0 0.0
  %914 = vmatprep.subr.mxu0 0.0
  %915 = vmatpush1.msra.mxu0 %v172
  %916 = vmatprep.subr.mxu0 0.0
  %917 = vmatpush1.msra.mxu0 %v171
  %918 = vmatprep.subr.mxu0 0.0
  %919 = vmatpush2.msra.mxu0 0.0
  %920 = vmatprep.subr.mxu0 0.0
  %921 = vmatpush2.msra.mxu0 0.0
  %922 = vmatprep.subr.mxu0 0.0
  %923 = vmatpush2.msra.mxu0 0.0
  %924 = vmatprep.subr.mxu0 0.0
  %925 = vmatpush2.msra.mxu0 0.0
  %926 = vmatprep.subr.mxu0 0.0
  %927 = vmatpush2.msra.mxu0 0.0
  %928 = vmatprep.subr.mxu0 0.0
  %929 = vmatpush2.msra.mxu0 0.0
  %930 = vmatprep.subr.mxu0 0.0
  %931 = vmatpush2.msra.mxu0 0.0
  %932 = vmatprep.subr.mxu0 0.0
  %933 = vmatpush2.msra.mxu0 0.0
  %934 = vmatprep.subr.mxu0 0.0
  %935 = vmatpush2.msra.mxu0 0.0
  %936 = vmatprep.subr.mxu0 0.0
  %937 = vmatpush2.msra.mxu0 0.0
  %938 = vmatprep.subr.mxu0 0.0
  %939 = vmatpush2.msra.mxu0 0.0
  %940 = vmatprep.subr.mxu0 0.0
  %941 = vmatpush2.msra.mxu0 0.0
  %942 = vmatprep.subr.mxu0 0.0
  %943 = vmatpush2.msra.mxu0 0.0
  %944 = vmatprep.subr.mxu0 0.0
  %945 = vmatpush2.msra.mxu0 0.0
  %946 = vmatprep.subr.mxu0 0.0
  %947 = vmatpush2.msra.mxu0 0.0
  %948 = vmatprep.subr.mxu0 0.0
  %949 = vmatpush2.msra.mxu0 0.0
  %950 = vmatprep.mubr.f32.mxu0 0.0
  %951 = vmatmul.mubr.f32.gmra.mxu0 %v884
  %v952 = vpop.f32.mrf.mxu0
  %v953 = vadd.f32 0.0, %v952
  %v954 = vpop.f32.mrf.mxu0
  %955 = vdwg.mxu0
  %v957 = vrot.slane %v953, 4
  %v959 = vadd.f32 %v250, %v957
  %v960 = vmul.f32 %v959, 0.5
  %v961 = vtanh.pop %v960
  %v962 = vmul.f32 %v961, 0.5
  %v963 = vadd.f32 %v962, 0.5
  %v964 = vtanh.pop %v959
  %v966 = vrot.slane %v873, 6
  %v968 = vmul.f32 %v963, %v966
  %970 = vrot.lane.b32.xlu0 %v964, 80
  %v971 = vpop.permute.xlu0 %970
  %v973 = vmul.f32 %v963, %v971
  %975 = vrot.lane.b32.xlu0 %v973, 16
  %v976 = vpop.permute.xlu0 %975
  %v978 = vadd.f32 %v968, %v976
  %v979 = vtanh.pop %v978
  %981 = vrot.lane.b32.xlu0 %v979, 16
  %v982 = vpop.permute.xlu0 %981
  %v984 = vmul.f32 %v963, %v982
  %v986 = vrot.slane %v984, 4
  %987 = vrot.lane.b32.xlu0 %v986, 96
  %v988 = vpop.permute.xlu0 %987
  %v989 = vsel %vm263, %v988, 0
  %991 = vmatprep.subr.mxu0 0.0
  %992 = vmatpush1.msra.mxu0 0.0
  %993 = vmatprep.subr.mxu0 0.0
  %994 = vmatpush1.msra.mxu0 0.0
  %995 = vmatprep.subr.mxu0 0.0
  %996 = vmatpush1.msra.mxu0 0.0
  %997 = vmatprep.subr.mxu0 0.0
  %998 = vmatpush1.msra.mxu0 0.0
  %999 = vmatprep.subr.mxu0 0.0
  %1000 = vmatpush1.msra.mxu0 0.0
  %1001 = vmatprep.subr.mxu0 0.0
  %1002 = vmatpush1.msra.mxu0 0.0
  %1003 = vmatprep.subr.mxu0 0.0
  %1004 = vmatpush1.msra.mxu0 0.0
  %1005 = vmatprep.subr.mxu0 0.0
  %1006 = vmatpush1.msra.mxu0 0.0
  %1007 = vmatprep.subr.mxu0 0.0
  %1008 = vmatpush1.msra.mxu0 0.0
  %1009 = vmatprep.subr.mxu0 0.0
  %1010 = vmatpush1.msra.mxu0 0.0
  %1011 = vmatprep.subr.mxu0 0.0
  %1012 = vmatpush1.msra.mxu0 0.0
  %1013 = vmatprep.subr.mxu0 0.0
  %1014 = vmatpush1.msra.mxu0 0.0
  %1015 = vmatprep.subr.mxu0 0.0
  %1016 = vmatpush1.msra.mxu0 0.0
  %1017 = vmatprep.subr.mxu0 0.0
  %1018 = vmatpush1.msra.mxu0 0.0
  %1019 = vmatprep.subr.mxu0 0.0
  %1020 = vmatpush1.msra.mxu0 %v172
  %1021 = vmatprep.subr.mxu0 0.0
  %1022 = vmatpush1.msra.mxu0 %v171
  %1023 = vmatprep.subr.mxu0 0.0
  %1024 = vmatpush2.msra.mxu0 0.0
  %1025 = vmatprep.subr.mxu0 0.0
  %1026 = vmatpush2.msra.mxu0 0.0
  %1027 = vmatprep.subr.mxu0 0.0
  %1028 = vmatpush2.msra.mxu0 0.0
  %1029 = vmatprep.subr.mxu0 0.0
  %1030 = vmatpush2.msra.mxu0 0.0
  %1031 = vmatprep.subr.mxu0 0.0
  %1032 = vmatpush2.msra.mxu0 0.0
  %1033 = vmatprep.subr.mxu0 0.0
  %1034 = vmatpush2.msra.mxu0 0.0
  %1035 = vmatprep.subr.mxu0 0.0
  %1036 = vmatpush2.msra.mxu0 0.0
  %1037 = vmatprep.subr.mxu0 0.0
  %1038 = vmatpush2.msra.mxu0 0.0
  %1039 = vmatprep.subr.mxu0 0.0
  %1040 = vmatpush2.msra.mxu0 0.0
  %1041 = vmatprep.subr.mxu0 0.0
  %1042 = vmatpush2.msra.mxu0 0.0
  %1043 = vmatprep.subr.mxu0 0.0
  %1044 = vmatpush2.msra.mxu0 0.0
  %1045 = vmatprep.subr.mxu0 0.0
  %1046 = vmatpush2.msra.mxu0 0.0
  %1047 = vmatprep.subr.mxu0 0.0
  %1048 = vmatpush2.msra.mxu0 0.0
  %1049 = vmatprep.subr.mxu0 0.0
  %1050 = vmatpush2.msra.mxu0 0.0
  %1051 = vmatprep.subr.mxu0 0.0
  %1052 = vmatpush2.msra.mxu0 0.0
  %1053 = vmatprep.subr.mxu0 0.0
  %1054 = vmatpush2.msra.mxu0 0.0
  %1055 = vmatprep.mubr.f32.mxu0 0.0
  %1056 = vmatmul.mubr.f32.gmra.mxu0 %v989
  %v1057 = vpop.f32.mrf.mxu0
  %v1058 = vadd.f32 0.0, %v1057
  %v1059 = vpop.f32.mrf.mxu0
  %1060 = vdwg.mxu0
  %v1062 = vrot.slane %v1058, 2
  %v1064 = vadd.f32 %v250, %v1062
  %v1065 = vmul.f32 %v1064, 0.5
  %v1066 = vtanh.pop %v1065
  %v1067 = vmul.f32 %v1066, 0.5
  %v1068 = vadd.f32 %v1067, 0.5
  %v1069 = vtanh.pop %v1064
  %v1071 = vrot.slane %v978, 6
  %v1073 = vmul.f32 %v1068, %v1071
  %1075 = vrot.lane.b32.xlu0 %v1069, 80
  %v1076 = vpop.permute.xlu0 %1075
  %v1078 = vmul.f32 %v1068, %v1076
  %1080 = vrot.lane.b32.xlu0 %v1078, 16
  %v1081 = vpop.permute.xlu0 %1080
  %v1083 = vadd.f32 %v1073, %v1081
  %v1084 = vtanh.pop %v1083
  %1086 = vrot.lane.b32.xlu0 %v1084, 16
  %v1087 = vpop.permute.xlu0 %1086
  %v1089 = vmul.f32 %v1068, %v1087
  %v1091 = vrot.slane %v1089, 6
  %1092 = vrot.lane.b32.xlu0 %v1091, 96
  %v1093 = vpop.permute.xlu0 %1092
  %v1094 = vsel %vm263, %v1093, 0
  %1096 = vmatprep.subr.mxu0 0.0
  %1097 = vmatpush1.msra.mxu0 0.0
  %1098 = vmatprep.subr.mxu0 0.0
  %1099 = vmatpush1.msra.mxu0 0.0
  %1100 = vmatprep.subr.mxu0 0.0
  %1101 = vmatpush1.msra.mxu0 0.0
  %1102 = vmatprep.subr.mxu0 0.0
  %1103 = vmatpush1.msra.mxu0 0.0
  %1104 = vmatprep.subr.mxu0 0.0
  %1105 = vmatpush1.msra.mxu0 0.0
  %1106 = vmatprep.subr.mxu0 0.0
  %1107 = vmatpush1.msra.mxu0 0.0
  %1108 = vmatprep.subr.mxu0 0.0
  %1109 = vmatpush1.msra.mxu0 0.0
  %1110 = vmatprep.subr.mxu0 0.0
  %1111 = vmatpush1.msra.mxu0 0.0
  %1112 = vmatprep.subr.mxu0 0.0
  %1113 = vmatpush1.msra.mxu0 0.0
  %1114 = vmatprep.subr.mxu0 0.0
  %1115 = vmatpush1.msra.mxu0 0.0
  %1116 = vmatprep.subr.mxu0 0.0
  %1117 = vmatpush1.msra.mxu0 0.0
  %1118 = vmatprep.subr.mxu0 0.0
  %1119 = vmatpush1.msra.mxu0 0.0
  %1120 = vmatprep.subr.mxu0 0.0
  %1121 = vmatpush1.msra.mxu0 0.0
  %1122 = vmatprep.subr.mxu0 0.0
  %1123 = vmatpush1.msra.mxu0 0.0
  %1124 = vmatprep.subr.mxu0 0.0
  %1125 = vmatpush1.msra.mxu0 %v172
  %1126 = vmatprep.subr.mxu0 0.0
  %1127 = vmatpush1.msra.mxu0 %v171
  %1128 = vmatprep.subr.mxu0 0.0
  %1129 = vmatpush2.msra.mxu0 0.0
  %1130 = vmatprep.subr.mxu0 0.0
  %1131 = vmatpush2.msra.mxu0 0.0
  %1132 = vmatprep.subr.mxu0 0.0
  %1133 = vmatpush2.msra.mxu0 0.0
  %1134 = vmatprep.subr.mxu0 0.0
  %1135 = vmatpush2.msra.mxu0 0.0
  %1136 = vmatprep.subr.mxu0 0.0
  %1137 = vmatpush2.msra.mxu0 0.0
  %1138 = vmatprep.subr.mxu0 0.0
  %1139 = vmatpush2.msra.mxu0 0.0
  %1140 = vmatprep.subr.mxu0 0.0
  %1141 = vmatpush2.msra.mxu0 0.0
  %1142 = vmatprep.subr.mxu0 0.0
  %1143 = vmatpush2.msra.mxu0 0.0
  %1144 = vmatprep.subr.mxu0 0.0
  %1145 = vmatpush2.msra.mxu0 0.0
  %1146 = vmatprep.subr.mxu0 0.0
  %1147 = vmatpush2.msra.mxu0 0.0
  %1148 = vmatprep.subr.mxu0 0.0
  %1149 = vmatpush2.msra.mxu0 0.0
  %1150 = vmatprep.subr.mxu0 0.0
  %1151 = vmatpush2.msra.mxu0 0.0
  %1152 = vmatprep.subr.mxu0 0.0
  %1153 = vmatpush2.msra.mxu0 0.0
  %1154 = vmatprep.subr.mxu0 0.0
  %1155 = vmatpush2.msra.mxu0 0.0
  %1156 = vmatprep.subr.mxu0 0.0
  %1157 = vmatpush2.msra.mxu0 0.0
  %1158 = vmatprep.subr.mxu0 0.0
  %1159 = vmatpush2.msra.mxu0 0.0
  %1160 = vmatprep.mubr.f32.mxu0 0.0
  %1161 = vmatmul.mubr.f32.gmra.mxu0 %v1094
  %v1162 = vpop.f32.mrf.mxu0
  %v1163 = vadd.f32 0.0, %v1162
  %v1164 = vpop.f32.mrf.mxu0
  %1165 = vdwg.mxu0
  %v1166 = vadd.f32 %v255, %v1163
  %v1167 = vmul.f32 %v1166, 0.5
  %v1168 = vtanh.pop %v1167
  %v1169 = vmul.f32 %v1168, 0.5
  %v1170 = vadd.f32 %v1169, 0.5
  %v1171 = vtanh.pop %v1166
  %v1173 = vrot.slane %v1083, 6
  %v1175 = vmul.f32 %v1170, %v1173
  %1177 = vrot.lane.b32.xlu0 %v1171, 80
  %v1178 = vpop.permute.xlu0 %1177
  %v1180 = vmul.f32 %v1170, %v1178
  %1182 = vrot.lane.b32.xlu0 %v1180, 16
  %v1183 = vpop.permute.xlu0 %1182
  %v1185 = vadd.f32 %v1175, %v1183
  %v1186 = vtanh.pop %v1185
  %1188 = vrot.lane.b32.xlu0 %v1186, 16
  %v1189 = vpop.permute.xlu0 %1188
  %v1191 = vmul.f32 %v1170, %v1189
  %1193 = vrot.lane.b32.xlu0 %v1191, 96
  %v1194 = vpop.permute.xlu0 %1193
  %v1195 = vsel %vm263, %v1194, 0
  %1197 = vmatprep.subr.mxu0 0.0
  %1198 = vmatpush1.msra.mxu0 0.0
  %1199 = vmatprep.subr.mxu0 0.0
  %1200 = vmatpush1.msra.mxu0 0.0
  %1201 = vmatprep.subr.mxu0 0.0
  %1202 = vmatpush1.msra.mxu0 0.0
  %1203 = vmatprep.subr.mxu0 0.0
  %1204 = vmatpush1.msra.mxu0 0.0
  %1205 = vmatprep.subr.mxu0 0.0
  %1206 = vmatpush1.msra.mxu0 0.0
  %1207 = vmatprep.subr.mxu0 0.0
  %1208 = vmatpush1.msra.mxu0 0.0
  %1209 = vmatprep.subr.mxu0 0.0
  %1210 = vmatpush1.msra.mxu0 0.0
  %1211 = vmatprep.subr.mxu0 0.0
  %1212 = vmatpush1.msra.mxu0 0.0
  %1213 = vmatprep.subr.mxu0 0.0
  %1214 = vmatpush1.msra.mxu0 0.0
  %1215 = vmatprep.subr.mxu0 0.0
  %1216 = vmatpush1.msra.mxu0 0.0
  %1217 = vmatprep.subr.mxu0 0.0
  %1218 = vmatpush1.msra.mxu0 0.0
  %1219 = vmatprep.subr.mxu0 0.0
  %1220 = vmatpush1.msra.mxu0 0.0
  %1221 = vmatprep.subr.mxu0 0.0
  %1222 = vmatpush1.msra.mxu0 0.0
  %1223 = vmatprep.subr.mxu0 0.0
  %1224 = vmatpush1.msra.mxu0 0.0
  %1225 = vmatprep.subr.mxu0 0.0
  %1226 = vmatpush1.msra.mxu0 %v172
  %1227 = vmatprep.subr.mxu0 0.0
  %1228 = vmatpush1.msra.mxu0 %v171
  %1229 = vmatprep.subr.mxu0 0.0
  %1230 = vmatpush2.msra.mxu0 0.0
  %1231 = vmatprep.subr.mxu0 0.0
  %1232 = vmatpush2.msra.mxu0 0.0
  %1233 = vmatprep.subr.mxu0 0.0
  %1234 = vmatpush2.msra.mxu0 0.0
  %1235 = vmatprep.subr.mxu0 0.0
  %1236 = vmatpush2.msra.mxu0 0.0
  %1237 = vmatprep.subr.mxu0 0.0
  %1238 = vmatpush2.msra.mxu0 0.0
  %1239 = vmatprep.subr.mxu0 0.0
  %1240 = vmatpush2.msra.mxu0 0.0
  %1241 = vmatprep.subr.mxu0 0.0
  %1242 = vmatpush2.msra.mxu0 0.0
  %1243 = vmatprep.subr.mxu0 0.0
  %1244 = vmatpush2.msra.mxu0 0.0
  %1245 = vmatprep.subr.mxu0 0.0
  %1246 = vmatpush2.msra.mxu0 0.0
  %1247 = vmatprep.subr.mxu0 0.0
  %1248 = vmatpush2.msra.mxu0 0.0
  %1249 = vmatprep.subr.mxu0 0.0
  %1250 = vmatpush2.msra.mxu0 0.0
  %1251 = vmatprep.subr.mxu0 0.0
  %1252 = vmatpush2.msra.mxu0 0.0
  %1253 = vmatprep.subr.mxu0 0.0
  %1254 = vmatpush2.msra.mxu0 0.0
  %1255 = vmatprep.subr.mxu0 0.0
  %1256 = vmatpush2.msra.mxu0 0.0
  %1257 = vmatprep.subr.mxu0 0.0
  %1258 = vmatpush2.msra.mxu0 0.0
  %1259 = vmatprep.subr.mxu0 0.0
  %1260 = vmatpush2.msra.mxu0 0.0
  %1261 = vmatprep.mubr.f32.mxu0 0.0
  %1262 = vmatmul.mubr.f32.gmra.mxu0 %v1195
  %v1263 = vpop.f32.mrf.mxu0
  %v1264 = vadd.f32 0.0, %v1263
  %v1265 = vpop.f32.mrf.mxu0
  %1266 = vdwg.mxu0
  %v1268 = vrot.slane %v1264, 6
  %v1270 = vadd.f32 %v255, %v1268
  %v1271 = vmul.f32 %v1270, 0.5
  %v1272 = vtanh.pop %v1271
  %v1273 = vmul.f32 %v1272, 0.5
  %v1274 = vadd.f32 %v1273, 0.5
  %v1275 = vtanh.pop %v1270
  %v1277 = vrot.slane %v1185, 6
  %v1279 = vmul.f32 %v1274, %v1277
  %1281 = vrot.lane.b32.xlu0 %v1275, 80
  %v1282 = vpop.permute.xlu0 %1281
  %v1284 = vmul.f32 %v1274, %v1282
  %1286 = vrot.lane.b32.xlu0 %v1284, 16
  %v1287 = vpop.permute.xlu0 %1286
  %v1289 = vadd.f32 %v1279, %v1287
  %v1290 = vtanh.pop %v1289
  %1292 = vrot.lane.b32.xlu0 %v1290, 16
  %v1293 = vpop.permute.xlu0 %1292
  %v1295 = vmul.f32 %v1274, %v1293
  %v1297 = vrot.slane %v1295, 2
  %1298 = vrot.lane.b32.xlu0 %v1297, 96
  %v1299 = vpop.permute.xlu0 %1298
  %v1300 = vsel %vm263, %v1299, 0
  %1302 = vmatprep.subr.mxu0 0.0
  %1303 = vmatpush1.msra.mxu0 0.0
  %1304 = vmatprep.subr.mxu0 0.0
  %1305 = vmatpush1.msra.mxu0 0.0
  %1306 = vmatprep.subr.mxu0 0.0
  %1307 = vmatpush1.msra.mxu0 0.0
  %1308 = vmatprep.subr.mxu0 0.0
  %1309 = vmatpush1.msra.mxu0 0.0
  %1310 = vmatprep.subr.mxu0 0.0
  %1311 = vmatpush1.msra.mxu0 0.0
  %1312 = vmatprep.subr.mxu0 0.0
  %1313 = vmatpush1.msra.mxu0 0.0
  %1314 = vmatprep.subr.mxu0 0.0
  %1315 = vmatpush1.msra.mxu0 0.0
  %1316 = vmatprep.subr.mxu0 0.0
  %1317 = vmatpush1.msra.mxu0 0.0
  %1318 = vmatprep.subr.mxu0 0.0
  %1319 = vmatpush1.msra.mxu0 0.0
  %1320 = vmatprep.subr.mxu0 0.0
  %1321 = vmatpush1.msra.mxu0 0.0
  %1322 = vmatprep.subr.mxu0 0.0
  %1323 = vmatpush1.msra.mxu0 0.0
  %1324 = vmatprep.subr.mxu0 0.0
  %1325 = vmatpush1.msra.mxu0 0.0
  %1326 = vmatprep.subr.mxu0 0.0
  %1327 = vmatpush1.msra.mxu0 0.0
  %1328 = vmatprep.subr.mxu0 0.0
  %1329 = vmatpush1.msra.mxu0 0.0
  %1330 = vmatprep.subr.mxu0 0.0
  %1331 = vmatpush1.msra.mxu0 %v172
  %1332 = vmatprep.subr.mxu0 0.0
  %1333 = vmatpush1.msra.mxu0 %v171
  %1334 = vmatprep.subr.mxu0 0.0
  %1335 = vmatpush2.msra.mxu0 0.0
  %1336 = vmatprep.subr.mxu0 0.0
  %1337 = vmatpush2.msra.mxu0 0.0
  %1338 = vmatprep.subr.mxu0 0.0
  %1339 = vmatpush2.msra.mxu0 0.0
  %1340 = vmatprep.subr.mxu0 0.0
  %1341 = vmatpush2.msra.mxu0 0.0
  %1342 = vmatprep.subr.mxu0 0.0
  %1343 = vmatpush2.msra.mxu0 0.0
  %1344 = vmatprep.subr.mxu0 0.0
  %1345 = vmatpush2.msra.mxu0 0.0
  %1346 = vmatprep.subr.mxu0 0.0
  %1347 = vmatpush2.msra.mxu0 0.0
  %1348 = vmatprep.subr.mxu0 0.0
  %1349 = vmatpush2.msra.mxu0 0.0
  %1350 = vmatprep.subr.mxu0 0.0
  %1351 = vmatpush2.msra.mxu0 0.0
  %1352 = vmatprep.subr.mxu0 0.0
  %1353 = vmatpush2.msra.mxu0 0.0
  %1354 = vmatprep.subr.mxu0 0.0
  %1355 = vmatpush2.msra.mxu0 0.0
  %1356 = vmatprep.subr.mxu0 0.0
  %1357 = vmatpush2.msra.mxu0 0.0
  %1358 = vmatprep.subr.mxu0 0.0
  %1359 = vmatpush2.msra.mxu0 0.0
  %1360 = vmatprep.subr.mxu0 0.0
  %1361 = vmatpush2.msra.mxu0 0.0
  %1362 = vmatprep.subr.mxu0 0.0
  %1363 = vmatpush2.msra.mxu0 0.0
  %1364 = vmatprep.subr.mxu0 0.0
  %1365 = vmatpush2.msra.mxu0 0.0
  %1366 = vmatprep.mubr.f32.mxu0 0.0
  %1367 = vmatmul.mubr.f32.gmra.mxu0 %v1300
  %v1368 = vpop.f32.mrf.mxu0
  %v1369 = vadd.f32 0.0, %v1368
  %v1370 = vpop.f32.mrf.mxu0
  %1371 = vdwg.mxu0
  %v1373 = vrot.slane %v1369, 4
  %v1375 = vadd.f32 %v255, %v1373
  %v1376 = vmul.f32 %v1375, 0.5
  %v1377 = vtanh.pop %v1376
  %v1378 = vmul.f32 %v1377, 0.5
  %v1379 = vadd.f32 %v1378, 0.5
  %v1380 = vtanh.pop %v1375
  %v1382 = vrot.slane %v1289, 6
  %v1384 = vmul.f32 %v1379, %v1382
  %1386 = vrot.lane.b32.xlu0 %v1380, 80
  %v1387 = vpop.permute.xlu0 %1386
  %v1389 = vmul.f32 %v1379, %v1387
  %1391 = vrot.lane.b32.xlu0 %v1389, 16
  %v1392 = vpop.permute.xlu0 %1391
  %v1394 = vadd.f32 %v1384, %v1392
  %v1395 = vtanh.pop %v1394
  %1397 = vrot.lane.b32.xlu0 %v1395, 16
  %v1398 = vpop.permute.xlu0 %1397
  %v1400 = vmul.f32 %v1379, %v1398
  %v1402 = vrot.slane %v1400, 4
  %1403 = vrot.lane.b32.xlu0 %v1402, 96
  %v1404 = vpop.permute.xlu0 %1403
  %v1405 = vsel %vm263, %v1404, 0
  %1407 = vmatprep.subr.mxu0 0.0
  %1408 = vmatpush1.msra.mxu0 0.0
  %1409 = vmatprep.subr.mxu0 0.0
  %1410 = vmatpush1.msra.mxu0 0.0
  %1411 = vmatprep.subr.mxu0 0.0
  %1412 = vmatpush1.msra.mxu0 0.0
  %1413 = vmatprep.subr.mxu0 0.0
  %1414 = vmatpush1.msra.mxu0 0.0
  %1415 = vmatprep.subr.mxu0 0.0
  %1416 = vmatpush1.msra.mxu0 0.0
  %1417 = vmatprep.subr.mxu0 0.0
  %1418 = vmatpush1.msra.mxu0 0.0
  %1419 = vmatprep.subr.mxu0 0.0
  %1420 = vmatpush1.msra.mxu0 0.0
  %1421 = vmatprep.subr.mxu0 0.0
  %1422 = vmatpush1.msra.mxu0 0.0
  %1423 = vmatprep.subr.mxu0 0.0
  %1424 = vmatpush1.msra.mxu0 0.0
  %1425 = vmatprep.subr.mxu0 0.0
  %1426 = vmatpush1.msra.mxu0 0.0
  %1427 = vmatprep.subr.mxu0 0.0
  %1428 = vmatpush1.msra.mxu0 0.0
  %1429 = vmatprep.subr.mxu0 0.0
  %1430 = vmatpush1.msra.mxu0 0.0
  %1431 = vmatprep.subr.mxu0 0.0
  %1432 = vmatpush1.msra.mxu0 0.0
  %1433 = vmatprep.subr.mxu0 0.0
  %1434 = vmatpush1.msra.mxu0 0.0
  %1435 = vmatprep.subr.mxu0 0.0
  %1436 = vmatpush1.msra.mxu0 %v172
  %1437 = vmatprep.subr.mxu0 0.0
  %1438 = vmatpush1.msra.mxu0 %v171
  %1439 = vmatprep.subr.mxu0 0.0
  %1440 = vmatpush2.msra.mxu0 0.0
  %1441 = vmatprep.subr.mxu0 0.0
  %1442 = vmatpush2.msra.mxu0 0.0
  %1443 = vmatprep.subr.mxu0 0.0
  %1444 = vmatpush2.msra.mxu0 0.0
  %1445 = vmatprep.subr.mxu0 0.0
  %1446 = vmatpush2.msra.mxu0 0.0
  %1447 = vmatprep.subr.mxu0 0.0
  %1448 = vmatpush2.msra.mxu0 0.0
  %1449 = vmatprep.subr.mxu0 0.0
  %1450 = vmatpush2.msra.mxu0 0.0
  %1451 = vmatprep.subr.mxu0 0.0
  %1452 = vmatpush2.msra.mxu0 0.0
  %1453 = vmatprep.subr.mxu0 0.0
  %1454 = vmatpush2.msra.mxu0 0.0
  %1455 = vmatprep.subr.mxu0 0.0
  %1456 = vmatpush2.msra.mxu0 0.0
  %1457 = vmatprep.subr.mxu0 0.0
  %1458 = vmatpush2.msra.mxu0 0.0
  %1459 = vmatprep.subr.mxu0 0.0
  %1460 = vmatpush2.msra.mxu0 0.0
  %1461 = vmatprep.subr.mxu0 0.0
  %1462 = vmatpush2.msra.mxu0 0.0
  %1463 = vmatprep.subr.mxu0 0.0
  %1464 = vmatpush2.msra.mxu0 0.0
  %1465 = vmatprep.subr.mxu0 0.0
  %1466 = vmatpush2.msra.mxu0 0.0
  %1467 = vmatprep.subr.mxu0 0.0
  %1468 = vmatpush2.msra.mxu0 0.0
  %1469 = vmatprep.subr.mxu0 0.0
  %1470 = vmatpush2.msra.mxu0 0.0
  %1471 = vmatprep.mubr.f32.mxu0 0.0
  %1472 = vmatmul.mubr.f32.gmra.mxu0 %v1405
  %v1473 = vpop.f32.mrf.mxu0
  %v1474 = vadd.f32 0.0, %v1473
  %v1475 = vpop.f32.mrf.mxu0
  %1476 = vdwg.mxu0
  %v1478 = vrot.slane %v1474, 2
  %v1480 = vadd.f32 %v255, %v1478
  %v1481 = vmul.f32 %v1480, 0.5
  %v1482 = vtanh.pop %v1481
  %v1483 = vmul.f32 %v1482, 0.5
  %v1484 = vadd.f32 %v1483, 0.5
  %v1485 = vtanh.pop %v1480
  %v1487 = vrot.slane %v1394, 6
  %v1489 = vmul.f32 %v1484, %v1487
  %1491 = vrot.lane.b32.xlu0 %v1485, 80
  %v1492 = vpop.permute.xlu0 %1491
  %v1494 = vmul.f32 %v1484, %v1492
  %1496 = vrot.lane.b32.xlu0 %v1494, 16
  %v1497 = vpop.permute.xlu0 %1496
  %v1499 = vadd.f32 %v1489, %v1497
  %v1500 = vtanh.pop %v1499
  %1502 = vrot.lane.b32.xlu0 %v1500, 16
  %v1503 = vpop.permute.xlu0 %1502
  %v1505 = vmul.f32 %v1484, %v1503
  %v1507 = vrot.slane %v1505, 6
  %1508 = vrot.lane.b32.xlu0 %v1507, 96
  %v1509 = vpop.permute.xlu0 %1508
  %v1510 = vsel %vm263, %v1509, 0
  %1512 = vmatprep.subr.mxu0 0.0
  %1513 = vmatpush1.msra.mxu0 0.0
  %1514 = vmatprep.subr.mxu0 0.0
  %1515 = vmatpush1.msra.mxu0 0.0
  %1516 = vmatprep.subr.mxu0 0.0
  %1517 = vmatpush1.msra.mxu0 0.0
  %1518 = vmatprep.subr.mxu0 0.0
  %1519 = vmatpush1.msra.mxu0 0.0
  %1520 = vmatprep.subr.mxu0 0.0
  %1521 = vmatpush1.msra.mxu0 0.0
  %1522 = vmatprep.subr.mxu0 0.0
  %1523 = vmatpush1.msra.mxu0 0.0
  %1524 = vmatprep.subr.mxu0 0.0
  %1525 = vmatpush1.msra.mxu0 0.0
  %1526 = vmatprep.subr.mxu0 0.0
  %1527 = vmatpush1.msra.mxu0 0.0
  %1528 = vmatprep.subr.mxu0 0.0
  %1529 = vmatpush1.msra.mxu0 0.0
  %1530 = vmatprep.subr.mxu0 0.0
  %1531 = vmatpush1.msra.mxu0 0.0
  %1532 = vmatprep.subr.mxu0 0.0
  %1533 = vmatpush1.msra.mxu0 0.0
  %1534 = vmatprep.subr.mxu0 0.0
  %1535 = vmatpush1.msra.mxu0 0.0
  %1536 = vmatprep.subr.mxu0 0.0
  %1537 = vmatpush1.msra.mxu0 0.0
  %1538 = vmatprep.subr.mxu0 0.0
  %1539 = vmatpush1.msra.mxu0 0.0
  %1540 = vmatprep.subr.mxu0 0.0
  %1541 = vmatpush1.msra.mxu0 %v172
  %1542 = vmatprep.subr.mxu0 0.0
  %1543 = vmatpush1.msra.mxu0 %v171
  %1544 = vmatprep.subr.mxu0 0.0
  %1545 = vmatpush2.msra.mxu0 0.0
  %1546 = vmatprep.subr.mxu0 0.0
  %1547 = vmatpush2.msra.mxu0 0.0
  %1548 = vmatprep.subr.mxu0 0.0
  %1549 = vmatpush2.msra.mxu0 0.0
  %1550 = vmatprep.subr.mxu0 0.0
  %1551 = vmatpush2.msra.mxu0 0.0
  %1552 = vmatprep.subr.mxu0 0.0
  %1553 = vmatpush2.msra.mxu0 0.0
  %1554 = vmatprep.subr.mxu0 0.0
  %1555 = vmatpush2.msra.mxu0 0.0
  %1556 = vmatprep.subr.mxu0 0.0
  %1557 = vmatpush2.msra.mxu0 0.0
  %1558 = vmatprep.subr.mxu0 0.0
  %1559 = vmatpush2.msra.mxu0 0.0
  %1560 = vmatprep.subr.mxu0 0.0
  %1561 = vmatpush2.msra.mxu0 0.0
  %1562 = vmatprep.subr.mxu0 0.0
  %1563 = vmatpush2.msra.mxu0 0.0
  %1564 = vmatprep.subr.mxu0 0.0
  %1565 = vmatpush2.msra.mxu0 0.0
  %1566 = vmatprep.subr.mxu0 0.0
  %1567 = vmatpush2.msra.mxu0 0.0
  %1568 = vmatprep.subr.mxu0 0.0
  %1569 = vmatpush2.msra.mxu0 0.0
  %1570 = vmatprep.subr.mxu0 0.0
  %1571 = vmatpush2.msra.mxu0 0.0
  %1572 = vmatprep.subr.mxu0 0.0
  %1573 = vmatpush2.msra.mxu0 0.0
  %1574 = vmatprep.subr.mxu0 0.0
  %1575 = vmatpush2.msra.mxu0 0.0
  %1576 = vmatprep.mubr.f32.mxu0 0.0
  %1577 = vmatmul.mubr.f32.gmra.mxu0 %v1510
  %v1578 = vpop.f32.mrf.mxu0
  %v1579 = vadd.f32 0.0, %v1578
  %v1580 = vpop.f32.mrf.mxu0
  %1581 = vdwg.mxu0
  %v1582 = vadd.f32 %v260, %v1579
  %v1583 = vmul.f32 %v1582, 0.5
  %v1584 = vtanh.pop %v1583
  %v1585 = vmul.f32 %v1584, 0.5
  %v1586 = vadd.f32 %v1585, 0.5
  %v1587 = vtanh.pop %v1582
  %v1589 = vrot.slane %v1499, 6
  %v1591 = vmul.f32 %v1586, %v1589
  %1593 = vrot.lane.b32.xlu0 %v1587, 80
  %v1594 = vpop.permute.xlu0 %1593
  %v1596 = vmul.f32 %v1586, %v1594
  %1598 = vrot.lane.b32.xlu0 %v1596, 16
  %v1599 = vpop.permute.xlu0 %1598
  %v1601 = vadd.f32 %v1591, %v1599
  %v1602 = vtanh.pop %v1601
  %1604 = vrot.lane.b32.xlu0 %v1602, 16
  %v1605 = vpop.permute.xlu0 %1604
  %v1607 = vmul.f32 %v1586, %v1605
  %1609 = vrot.lane.b32.xlu0 %v1607, 96
  %v1610 = vpop.permute.xlu0 %1609
  %v1611 = vsel %vm263, %v1610, 0
  %1613 = vmatprep.subr.mxu0 0.0
  %1614 = vmatpush1.msra.mxu0 0.0
  %1615 = vmatprep.subr.mxu0 0.0
  %1616 = vmatpush1.msra.mxu0 0.0
  %1617 = vmatprep.subr.mxu0 0.0
  %1618 = vmatpush1.msra.mxu0 0.0
  %1619 = vmatprep.subr.mxu0 0.0
  %1620 = vmatpush1.msra.mxu0 0.0
  %1621 = vmatprep.subr.mxu0 0.0
  %1622 = vmatpush1.msra.mxu0 0.0
  %1623 = vmatprep.subr.mxu0 0.0
  %1624 = vmatpush1.msra.mxu0 0.0
  %1625 = vmatprep.subr.mxu0 0.0
  %1626 = vmatpush1.msra.mxu0 0.0
  %1627 = vmatprep.subr.mxu0 0.0
  %1628 = vmatpush1.msra.mxu0 0.0
  %1629 = vmatprep.subr.mxu0 0.0
  %1630 = vmatpush1.msra.mxu0 0.0
  %1631 = vmatprep.subr.mxu0 0.0
  %1632 = vmatpush1.msra.mxu0 0.0
  %1633 = vmatprep.subr.mxu0 0.0
  %1634 = vmatpush1.msra.mxu0 0.0
  %1635 = vmatprep.subr.mxu0 0.0
  %1636 = vmatpush1.msra.mxu0 0.0
  %1637 = vmatprep.subr.mxu0 0.0
  %1638 = vmatpush1.msra.mxu0 0.0
  %1639 = vmatprep.subr.mxu0 0.0
  %1640 = vmatpush1.msra.mxu0 0.0
  %1641 = vmatprep.subr.mxu0 0.0
  %1642 = vmatpush1.msra.mxu0 %v172
  %1643 = vmatprep.subr.mxu0 0.0
  %1644 = vmatpush1.msra.mxu0 %v171
  %1645 = vmatprep.subr.mxu0 0.0
  %1646 = vmatpush2.msra.mxu0 0.0
  %1647 = vmatprep.subr.mxu0 0.0
  %1648 = vmatpush2.msra.mxu0 0.0
  %1649 = vmatprep.subr.mxu0 0.0
  %1650 = vmatpush2.msra.mxu0 0.0
  %1651 = vmatprep.subr.mxu0 0.0
  %1652 = vmatpush2.msra.mxu0 0.0
  %1653 = vmatprep.subr.mxu0 0.0
  %1654 = vmatpush2.msra.mxu0 0.0
  %1655 = vmatprep.subr.mxu0 0.0
  %1656 = vmatpush2.msra.mxu0 0.0
  %1657 = vmatprep.subr.mxu0 0.0
  %1658 = vmatpush2.msra.mxu0 0.0
  %1659 = vmatprep.subr.mxu0 0.0
  %1660 = vmatpush2.msra.mxu0 0.0
  %1661 = vmatprep.subr.mxu0 0.0
  %1662 = vmatpush2.msra.mxu0 0.0
  %1663 = vmatprep.subr.mxu0 0.0
  %1664 = vmatpush2.msra.mxu0 0.0
  %1665 = vmatprep.subr.mxu0 0.0
  %1666 = vmatpush2.msra.mxu0 0.0
  %1667 = vmatprep.subr.mxu0 0.0
  %1668 = vmatpush2.msra.mxu0 0.0
  %1669 = vmatprep.subr.mxu0 0.0
  %1670 = vmatpush2.msra.mxu0 0.0
  %1671 = vmatprep.subr.mxu0 0.0
  %1672 = vmatpush2.msra.mxu0 0.0
  %1673 = vmatprep.subr.mxu0 0.0
  %1674 = vmatpush2.msra.mxu0 0.0
  %1675 = vmatprep.subr.mxu0 0.0
  %1676 = vmatpush2.msra.mxu0 0.0
  %1677 = vmatprep.mubr.f32.mxu0 0.0
  %1678 = vmatmul.mubr.f32.gmra.mxu0 %v1611
  %v1679 = vpop.f32.mrf.mxu0
  %v1680 = vadd.f32 0.0, %v1679
  %v1681 = vpop.f32.mrf.mxu0
  %1682 = vdwg.mxu0
  %v1684 = vrot.slane %v1680, 6
  %v1686 = vadd.f32 %v260, %v1684
  %v1687 = vmul.f32 %v1686, 0.5
  %v1688 = vtanh.pop %v1687
  %v1689 = vmul.f32 %v1688, 0.5
  %v1690 = vadd.f32 %v1689, 0.5
  %v1691 = vtanh.pop %v1686
  %v1693 = vrot.slane %v1601, 6
  %v1695 = vmul.f32 %v1690, %v1693
  %1697 = vrot.lane.b32.xlu0 %v1691, 80
  %v1698 = vpop.permute.xlu0 %1697
  %v1700 = vmul.f32 %v1690, %v1698
  %1702 = vrot.lane.b32.xlu0 %v1700, 16
  %v1703 = vpop.permute.xlu0 %1702
  %v1705 = vadd.f32 %v1695, %v1703
  %v1706 = vtanh.pop %v1705
  %1708 = vrot.lane.b32.xlu0 %v1706, 16
  %v1709 = vpop.permute.xlu0 %1708
  %v1711 = vmul.f32 %v1690, %v1709
  %v1713 = vrot.slane %v1711, 2
  %1714 = vrot.lane.b32.xlu0 %v1713, 96
  %v1715 = vpop.permute.xlu0 %1714
  %v1716 = vsel %vm263, %v1715, 0
  %1718 = vmatprep.subr.mxu0 0.0
  %1719 = vmatpush1.msra.mxu0 0.0
  %1720 = vmatprep.subr.mxu0 0.0
  %1721 = vmatpush1.msra.mxu0 0.0
  %1722 = vmatprep.subr.mxu0 0.0
  %1723 = vmatpush1.msra.mxu0 0.0
  %1724 = vmatprep.subr.mxu0 0.0
  %1725 = vmatpush1.msra.mxu0 0.0
  %1726 = vmatprep.subr.mxu0 0.0
  %1727 = vmatpush1.msra.mxu0 0.0
  %1728 = vmatprep.subr.mxu0 0.0
  %1729 = vmatpush1.msra.mxu0 0.0
  %1730 = vmatprep.subr.mxu0 0.0
  %1731 = vmatpush1.msra.mxu0 0.0
  %1732 = vmatprep.subr.mxu0 0.0
  %1733 = vmatpush1.msra.mxu0 0.0
  %1734 = vmatprep.subr.mxu0 0.0
  %1735 = vmatpush1.msra.mxu0 0.0
  %1736 = vmatprep.subr.mxu0 0.0
  %1737 = vmatpush1.msra.mxu0 0.0
  %1738 = vmatprep.subr.mxu0 0.0
  %1739 = vmatpush1.msra.mxu0 0.0
  %1740 = vmatprep.subr.mxu0 0.0
  %1741 = vmatpush1.msra.mxu0 0.0
  %1742 = vmatprep.subr.mxu0 0.0
  %1743 = vmatpush1.msra.mxu0 0.0
  %1744 = vmatprep.subr.mxu0 0.0
  %1745 = vmatpush1.msra.mxu0 0.0
  %1746 = vmatprep.subr.mxu0 0.0
  %1747 = vmatpush1.msra.mxu0 %v172
  %1748 = vmatprep.subr.mxu0 0.0
  %1749 = vmatpush1.msra.mxu0 %v171
  %1750 = vmatprep.subr.mxu0 0.0
  %1751 = vmatpush2.msra.mxu0 0.0
  %1752 = vmatprep.subr.mxu0 0.0
  %1753 = vmatpush2.msra.mxu0 0.0
  %1754 = vmatprep.subr.mxu0 0.0
  %1755 = vmatpush2.msra.mxu0 0.0
  %1756 = vmatprep.subr.mxu0 0.0
  %1757 = vmatpush2.msra.mxu0 0.0
  %1758 = vmatprep.subr.mxu0 0.0
  %1759 = vmatpush2.msra.mxu0 0.0
  %1760 = vmatprep.subr.mxu0 0.0
  %1761 = vmatpush2.msra.mxu0 0.0
  %1762 = vmatprep.subr.mxu0 0.0
  %1763 = vmatpush2.msra.mxu0 0.0
  %1764 = vmatprep.subr.mxu0 0.0
  %1765 = vmatpush2.msra.mxu0 0.0
  %1766 = vmatprep.subr.mxu0 0.0
  %1767 = vmatpush2.msra.mxu0 0.0
  %1768 = vmatprep.subr.mxu0 0.0
  %1769 = vmatpush2.msra.mxu0 0.0
  %1770 = vmatprep.subr.mxu0 0.0
  %1771 = vmatpush2.msra.mxu0 0.0
  %1772 = vmatprep.subr.mxu0 0.0
  %1773 = vmatpush2.msra.mxu0 0.0
  %1774 = vmatprep.subr.mxu0 0.0
  %1775 = vmatpush2.msra.mxu0 0.0
  %1776 = vmatprep.subr.mxu0 0.0
  %1777 = vmatpush2.msra.mxu0 0.0
  %1778 = vmatprep.subr.mxu0 0.0
  %1779 = vmatpush2.msra.mxu0 0.0
  %1780 = vmatprep.subr.mxu0 0.0
  %1781 = vmatpush2.msra.mxu0 0.0
  %1782 = vmatprep.mubr.f32.mxu0 0.0
  %1783 = vmatmul.mubr.f32.gmra.mxu0 %v1716
  %v1784 = vpop.f32.mrf.mxu0
  %v1785 = vadd.f32 0.0, %v1784
  %v1786 = vpop.f32.mrf.mxu0
  %1787 = vdwg.mxu0
  %v1789 = vrot.slane %v1785, 4
  %v1791 = vadd.f32 %v260, %v1789
  %v1792 = vmul.f32 %v1791, 0.5
  %v1793 = vtanh.pop %v1792
  %v1794 = vmul.f32 %v1793, 0.5
  %v1795 = vadd.f32 %v1794, 0.5
  %v1796 = vtanh.pop %v1791
  %v1798 = vrot.slane %v1705, 6
  %v1800 = vmul.f32 %v1795, %v1798
  %1802 = vrot.lane.b32.xlu0 %v1796, 80
  %v1803 = vpop.permute.xlu0 %1802
  %v1805 = vmul.f32 %v1795, %v1803
  %1807 = vrot.lane.b32.xlu0 %v1805, 16
  %v1808 = vpop.permute.xlu0 %1807
  %v1810 = vadd.f32 %v1800, %v1808
  %v1811 = vtanh.pop %v1810
  %1813 = vrot.lane.b32.xlu0 %v1811, 16
  %v1814 = vpop.permute.xlu0 %1813
  %v1816 = vmul.f32 %v1795, %v1814
  %v1818 = vrot.slane %v1816, 4
  %1819 = vrot.lane.b32.xlu0 %v1818, 96
  %v1820 = vpop.permute.xlu0 %1819
  %v1821 = vsel %vm263, %v1820, 0
  %1823 = vmatprep.subr.mxu0 0.0
  %1824 = vmatpush1.msra.mxu0 0.0
  %1825 = vmatprep.subr.mxu0 0.0
  %1826 = vmatpush1.msra.mxu0 0.0
  %1827 = vmatprep.subr.mxu0 0.0
  %1828 = vmatpush1.msra.mxu0 0.0
  %1829 = vmatprep.subr.mxu0 0.0
  %1830 = vmatpush1.msra.mxu0 0.0
  %1831 = vmatprep.subr.mxu0 0.0
  %1832 = vmatpush1.msra.mxu0 0.0
  %1833 = vmatprep.subr.mxu0 0.0
  %1834 = vmatpush1.msra.mxu0 0.0
  %1835 = vmatprep.subr.mxu0 0.0
  %1836 = vmatpush1.msra.mxu0 0.0
  %1837 = vmatprep.subr.mxu0 0.0
  %1838 = vmatpush1.msra.mxu0 0.0
  %1839 = vmatprep.subr.mxu0 0.0
  %1840 = vmatpush1.msra.mxu0 0.0
  %1841 = vmatprep.subr.mxu0 0.0
  %1842 = vmatpush1.msra.mxu0 0.0
  %1843 = vmatprep.subr.mxu0 0.0
  %1844 = vmatpush1.msra.mxu0 0.0
  %1845 = vmatprep.subr.mxu0 0.0
  %1846 = vmatpush1.msra.mxu0 0.0
  %1847 = vmatprep.subr.mxu0 0.0
  %1848 = vmatpush1.msra.mxu0 0.0
  %1849 = vmatprep.subr.mxu0 0.0
  %1850 = vmatpush1.msra.mxu0 0.0
  %1851 = vmatprep.subr.mxu0 0.0
  %1852 = vmatpush1.msra.mxu0 %v172
  %1853 = vmatprep.subr.mxu0 0.0
  %1854 = vmatpush1.msra.mxu0 %v171
  %1855 = vmatprep.subr.mxu0 0.0
  %1856 = vmatpush2.msra.mxu0 0.0
  %1857 = vmatprep.subr.mxu0 0.0
  %1858 = vmatpush2.msra.mxu0 0.0
  %1859 = vmatprep.subr.mxu0 0.0
  %1860 = vmatpush2.msra.mxu0 0.0
  %1861 = vmatprep.subr.mxu0 0.0
  %1862 = vmatpush2.msra.mxu0 0.0
  %1863 = vmatprep.subr.mxu0 0.0
  %1864 = vmatpush2.msra.mxu0 0.0
  %1865 = vmatprep.subr.mxu0 0.0
  %1866 = vmatpush2.msra.mxu0 0.0
  %1867 = vmatprep.subr.mxu0 0.0
  %1868 = vmatpush2.msra.mxu0 0.0
  %1869 = vmatprep.subr.mxu0 0.0
  %1870 = vmatpush2.msra.mxu0 0.0
  %1871 = vmatprep.subr.mxu0 0.0
  %1872 = vmatpush2.msra.mxu0 0.0
  %1873 = vmatprep.subr.mxu0 0.0
  %1874 = vmatpush2.msra.mxu0 0.0
  %1875 = vmatprep.subr.mxu0 0.0
  %1876 = vmatpush2.msra.mxu0 0.0
  %1877 = vmatprep.subr.mxu0 0.0
  %1878 = vmatpush2.msra.mxu0 0.0
  %1879 = vmatprep.subr.mxu0 0.0
  %1880 = vmatpush2.msra.mxu0 0.0
  %1881 = vmatprep.subr.mxu0 0.0
  %1882 = vmatpush2.msra.mxu0 0.0
  %1883 = vmatprep.subr.mxu0 0.0
  %1884 = vmatpush2.msra.mxu0 0.0
  %1885 = vmatprep.subr.mxu0 0.0
  %1886 = vmatpush2.msra.mxu0 0.0
  %1887 = vmatprep.mubr.f32.mxu0 0.0
  %1888 = vmatmul.mubr.f32.gmra.mxu0 %v1821
  %v1889 = vpop.f32.mrf.mxu0
  %v1890 = vadd.f32 0.0, %v1889
  %v1891 = vpop.f32.mrf.mxu0
  %1892 = vdwg.mxu0
  %v1894 = vrot.slane %v1890, 2
  %v1896 = vadd.f32 %v260, %v1894
  %v1897 = vmul.f32 %v1896, 0.5
  %v1898 = vtanh.pop %v1897
  %v1899 = vmul.f32 %v1898, 0.5
  %v1900 = vadd.f32 %v1899, 0.5
  %v1901 = vtanh.pop %v1896
  %v1903 = vrot.slane %v1810, 6
  %v1905 = vmul.f32 %v1900, %v1903
  %1907 = vrot.lane.b32.xlu0 %v1901, 80
  %v1908 = vpop.permute.xlu0 %1907
  %v1910 = vmul.f32 %v1900, %v1908
  %1912 = vrot.lane.b32.xlu0 %v1910, 16
  %v1913 = vpop.permute.xlu0 %1912
  %v1915 = vadd.f32 %v1905, %v1913
  %v1916 = vtanh.pop %v1915
  %1918 = vrot.lane.b32.xlu0 %v1916, 16
  %v1919 = vpop.permute.xlu0 %1918
  %v1921 = vmul.f32 %v1900, %v1919
  %vm1922 = vcmask 1041408
  %v1923 = vsel %vm1922, %v359, %v463
  %vm1924 = vcmask 1043456
  %v1925 = vsel %vm1924, %v1923, %v568
  %vm1926 = vcmask 1045504
  %v1927 = vsel %vm1926, %v1925, %v673
  %v1928 = vsel %vm1922, %v775, %v879
  %v1929 = vsel %vm1924, %v1928, %v984
  %v1930 = vsel %vm1926, %v1929, %v1089
  %v1931 = vsel %vm1922, %v1191, %v1295
  %v1932 = vsel %vm1924, %v1931, %v1400
  %v1933 = vsel %vm1926, %v1932, %v1505
  %v1934 = vsel %vm1922, %v1607, %v1711
  %v1935 = vsel %vm1924, %v1934, %v1816
  %v1936 = vsel %vm1926, %v1935, %v1921
  %v1937 = vld [vmem:[%s4] sm:$0xff]
  %v1938 = vld [vmem:[%s4 + $0x8] sm:$0xff]
  %v1939 = vld [vmem:[%s4 + $0x10] sm:$0x1]
  %v1940 = vld [vmem:[%s4 + $0x18] sm:$0xff]
  %v1941 = vld [vmem:[%s4 + $0x20] sm:$0xff]
  %v1942 = vld [vmem:[%s4 + $0x28] sm:$0xff]
  %v1943 = vld [vmem:[%s4 + $0x30] sm:$0xff]
  %v1944 = vld [vmem:[%s4 + $0x38] sm:$0xff]
  %v1945 = vld [vmem:[%s4 + $0x40] sm:$0xff]
  %v1946 = vld [vmem:[%s4 + $0x48] sm:$0xff]
  %v1947 = vld [vmem:[%s4 + $0x50] sm:$0xff]
  %v1948 = vld [vmem:[%s4 + $0x58] sm:$0xff]
  %v1949 = vld [vmem:[%s4 + $0x60] sm:$0xff]
  %v1950 = vld [vmem:[%s4 + $0x68] sm:$0xff]
  %v1951 = vld [vmem:[%s4 + $0x70] sm:$0xff]
  %v1952 = vld [vmem:[%s4 + $0x78] sm:$0xff]
  %v1953 = vld [vmem:[%s4 + $0x80] sm:$0xff]
  %v1954 = vld [vmem:[%s4 + $0x88] sm:$0xff]
  %v1955 = vld [vmem:[%s4 + $0x90] sm:$0xff]
  %v1956 = vld [vmem:[%s4 + $0x98] sm:$0x1]
  %v1957 = vlaneseq
  %v1958 = vshrl.u32 %v1957, 7
  %v1959 = vsub.s32 0, %v1958
  %v1960 = vrot.slane %v1939, %v1959
  %1965 = vrot.lane.b32.xlu0 %v1927, 96
  %v1966 = vpop.permute.xlu0 %1965
  %1967 = vrot.lane.b32.xlu0 %v1930, 96
  %v1968 = vpop.permute.xlu0 %1967
  %1969 = vrot.lane.b32.xlu0 %v1933, 96
  %v1970 = vpop.permute.xlu0 %1969
  %1971 = vrot.lane.b32.xlu0 %v1936, 96
  %v1972 = vpop.permute.xlu0 %1971
  %v1973 = vsel %vm263, %v1966, 0
  %v1975 = vsel %vm263, %v1968, 0
  %v1977 = vsel %vm263, %v1970, 0
  %v1979 = vsel %vm263, %v1972, 0
  %1981 = vmatprep.subr.mxu0 0.0
  %1982 = vmatpush1.msra.mxu0 0.0
  %1983 = vmatprep.subr.mxu0 0.0
  %1984 = vmatpush1.msra.mxu0 0.0
  %1985 = vmatprep.subr.mxu0 0.0
  %1986 = vmatpush1.msra.mxu0 0.0
  %1987 = vmatprep.subr.mxu0 0.0
  %1988 = vmatpush1.msra.mxu0 0.0
  %1989 = vmatprep.subr.mxu0 0.0
  %1990 = vmatpush1.msra.mxu0 0.0
  %1991 = vmatprep.subr.mxu0 0.0
  %1992 = vmatpush1.msra.mxu0 0.0
  %1993 = vmatprep.subr.mxu0 0.0
  %1994 = vmatpush1.msra.mxu0 0.0
  %1995 = vmatprep.subr.mxu0 0.0
  %1996 = vmatpush1.msra.mxu0 0.0
  %1997 = vmatprep.subr.mxu0 0.0
  %1998 = vmatpush1.msra.mxu0 0.0
  %1999 = vmatprep.subr.mxu0 0.0
  %2000 = vmatpush1.msra.mxu0 0.0
  %2001 = vmatprep.subr.mxu0 0.0
  %2002 = vmatpush1.msra.mxu0 0.0
  %2003 = vmatprep.subr.mxu0 0.0
  %2004 = vmatpush1.msra.mxu0 0.0
  %2005 = vmatprep.subr.mxu0 0.0
  %2006 = vmatpush1.msra.mxu0 0.0
  %2007 = vmatprep.subr.mxu0 0.0
  %2008 = vmatpush1.msra.mxu0 0.0
  %2009 = vmatprep.subr.mxu0 0.0
  %2010 = vmatpush1.msra.mxu0 %v1938
  %2011 = vmatprep.subr.mxu0 0.0
  %2012 = vmatpush1.msra.mxu0 %v1937
  %2013 = vmatprep.subr.mxu0 0.0
  %2014 = vmatpush2.msra.mxu0 0.0
  %2015 = vmatprep.subr.mxu0 0.0
  %2016 = vmatpush2.msra.mxu0 0.0
  %2017 = vmatprep.subr.mxu0 0.0
  %2018 = vmatpush2.msra.mxu0 0.0
  %2019 = vmatprep.subr.mxu0 0.0
  %2020 = vmatpush2.msra.mxu0 0.0
  %2021 = vmatprep.subr.mxu0 0.0
  %2022 = vmatpush2.msra.mxu0 0.0
  %2023 = vmatprep.subr.mxu0 0.0
  %2024 = vmatpush2.msra.mxu0 0.0
  %2025 = vmatprep.subr.mxu0 0.0
  %2026 = vmatpush2.msra.mxu0 0.0
  %2027 = vmatprep.subr.mxu0 0.0
  %2028 = vmatpush2.msra.mxu0 0.0
  %2029 = vmatprep.subr.mxu0 0.0
  %2030 = vmatpush2.msra.mxu0 0.0
  %2031 = vmatprep.subr.mxu0 0.0
  %2032 = vmatpush2.msra.mxu0 0.0
  %2033 = vmatprep.subr.mxu0 0.0
  %2034 = vmatpush2.msra.mxu0 0.0
  %2035 = vmatprep.subr.mxu0 0.0
  %2036 = vmatpush2.msra.mxu0 0.0
  %2037 = vmatprep.subr.mxu0 0.0
  %2038 = vmatpush2.msra.mxu0 0.0
  %2039 = vmatprep.subr.mxu0 0.0
  %2040 = vmatpush2.msra.mxu0 0.0
  %2041 = vmatprep.subr.mxu0 0.0
  %2042 = vmatpush2.msra.mxu0 0.0
  %2043 = vmatprep.subr.mxu0 0.0
  %2044 = vmatpush2.msra.mxu0 0.0
  %2045 = vmatprep.mubr.f32.mxu0 0.0
  %2046 = vmatmul.mubr.f32.gmra.mxu0 %v1973
  %v2047 = vpop.f32.mrf.mxu0
  %v2048 = vadd.f32 %v1960, %v2047
  %v2049 = vpop.f32.mrf.mxu0
  %2050 = vmatprep.mubr.f32.mxu0 0.0
  %2051 = vmatmul.mubr.f32.gmra.mxu0 %v1975
  %v2052 = vpop.f32.mrf.mxu0
  %v2053 = vadd.f32 %v1960, %v2052
  %v2054 = vpop.f32.mrf.mxu0
  %2055 = vmatprep.mubr.f32.mxu0 0.0
  %2056 = vmatmul.mubr.f32.gmra.mxu0 %v1977
  %v2057 = vpop.f32.mrf.mxu0
  %v2058 = vadd.f32 %v1960, %v2057
  %v2059 = vpop.f32.mrf.mxu0
  %2060 = vmatprep.mubr.f32.mxu0 0.0
  %2061 = vmatmul.mubr.f32.gmra.mxu0 %v1979
  %v2062 = vpop.f32.mrf.mxu0
  %v2063 = vadd.f32 %v1960, %v2062
  %v2064 = vpop.f32.mrf.mxu0
  %2065 = vdwg.mxu0
  %v2066 = vmax.f32 %v2048, 0.0
  %v2067 = vmax.f32 %v2053, 0.0
  %v2068 = vmax.f32 %v2058, 0.0
  %v2069 = vmax.f32 %v2063, 0.0
  %v2070 = vlaneseq
  %v2071 = vshrl.u32 %v2070, 7
  %v2072 = vsub.s32 0, %v2071
  %v2073 = vrot.slane %v1956, %v2072
  %2074 = vmatprep.subr.mxu0 0.0
  %2075 = vmatpush1.msra.mxu0 %v1955
  %2076 = vmatprep.subr.mxu0 0.0
  %2077 = vmatpush1.msra.mxu0 %v1954
  %2078 = vmatprep.subr.mxu0 0.0
  %2079 = vmatpush1.msra.mxu0 %v1953
  %2080 = vmatprep.subr.mxu0 0.0
  %2081 = vmatpush1.msra.mxu0 %v1952
  %2082 = vmatprep.subr.mxu0 0.0
  %2083 = vmatpush1.msra.mxu0 %v1951
  %2084 = vmatprep.subr.mxu0 0.0
  %2085 = vmatpush1.msra.mxu0 %v1950
  %2086 = vmatprep.subr.mxu0 0.0
  %2087 = vmatpush1.msra.mxu0 %v1949
  %2088 = vmatprep.subr.mxu0 0.0
  %2089 = vmatpush1.msra.mxu0 %v1948
  %2090 = vmatprep.subr.mxu0 0.0
  %2091 = vmatpush1.msra.mxu0 %v1947
  %2092 = vmatprep.subr.mxu0 0.0
  %2093 = vmatpush1.msra.mxu0 %v1946
  %2094 = vmatprep.subr.mxu0 0.0
  %2095 = vmatpush1.msra.mxu0 %v1945
  %2096 = vmatprep.subr.mxu0 0.0
  %2097 = vmatpush1.msra.mxu0 %v1944
  %2098 = vmatprep.subr.mxu0 0.0
  %2099 = vmatpush1.msra.mxu0 %v1943
  %2100 = vmatprep.subr.mxu0 0.0
  %2101 = vmatpush1.msra.mxu0 %v1942
  %2102 = vmatprep.subr.mxu0 0.0
  %2103 = vmatpush1.msra.mxu0 %v1941
  %2104 = vmatprep.subr.mxu0 0.0
  %2105 = vmatpush1.msra.mxu0 %v1940
  %2106 = vmatprep.subr.mxu0 0.0
  %2107 = vmatpush2.msra.mxu0 0.0
  %2108 = vmatprep.subr.mxu0 0.0
  %2109 = vmatpush2.msra.mxu0 0.0
  %2110 = vmatprep.subr.mxu0 0.0
  %2111 = vmatpush2.msra.mxu0 0.0
  %2112 = vmatprep.subr.mxu0 0.0
  %2113 = vmatpush2.msra.mxu0 0.0
  %2114 = vmatprep.subr.mxu0 0.0
  %2115 = vmatpush2.msra.mxu0 0.0
  %2116 = vmatprep.subr.mxu0 0.0
  %2117 = vmatpush2.msra.mxu0 0.0
  %2118 = vmatprep.subr.mxu0 0.0
  %2119 = vmatpush2.msra.mxu0 0.0
  %2120 = vmatprep.subr.mxu0 0.0
  %2121 = vmatpush2.msra.mxu0 0.0
  %2122 = vmatprep.subr.mxu0 0.0
  %2123 = vmatpush2.msra.mxu0 0.0
  %2124 = vmatprep.subr.mxu0 0.0
  %2125 = vmatpush2.msra.mxu0 0.0
  %2126 = vmatprep.subr.mxu0 0.0
  %2127 = vmatpush2.msra.mxu0 0.0
  %2128 = vmatprep.subr.mxu0 0.0
  %2129 = vmatpush2.msra.mxu0 0.0
  %2130 = vmatprep.subr.mxu0 0.0
  %2131 = vmatpush2.msra.mxu0 0.0
  %2132 = vmatprep.subr.mxu0 0.0
  %2133 = vmatpush2.msra.mxu0 0.0
  %2134 = vmatprep.subr.mxu0 0.0
  %2135 = vmatpush2.msra.mxu0 0.0
  %2136 = vmatprep.subr.mxu0 0.0
  %2137 = vmatpush2.msra.mxu0 0.0
  %2138 = vmatprep.mubr.f32.mxu0 0.0
  %2139 = vmatmul.mubr.f32.gmra.mxu0 %v2066
  %v2140 = vpop.f32.mrf.mxu0
  %v2141 = vadd.f32 %v2073, %v2140
  %v2142 = vpop.f32.mrf.mxu0
  %2143 = vmatprep.mubr.f32.mxu0 0.0
  %2144 = vmatmul.mubr.f32.gmra.mxu0 %v2067
  %v2145 = vpop.f32.mrf.mxu0
  %v2146 = vadd.f32 %v2073, %v2145
  %v2147 = vpop.f32.mrf.mxu0
  %2148 = vmatprep.mubr.f32.mxu0 0.0
  %2149 = vmatmul.mubr.f32.gmra.mxu0 %v2068
  %v2150 = vpop.f32.mrf.mxu0
  %v2151 = vadd.f32 %v2073, %v2150
  %v2152 = vpop.f32.mrf.mxu0
  %2153 = vmatprep.mubr.f32.mxu0 0.0
  %2154 = vmatmul.mubr.f32.gmra.mxu0 %v2069
  %v2155 = vpop.f32.mrf.mxu0
  %v2156 = vadd.f32 %v2073, %v2155
  %v2157 = vpop.f32.mrf.mxu0
  %2158 = vdwg.mxu0
  %2159 = vst [vmem:[%s5] sm:$0xff] %v2141
  %2160 = vst [vmem:[%s5 + $0x8] sm:$0xff] %v2146
  %2161 = vst [vmem:[%s5 + $0x10] sm:$0xff] %v2151
  %2162 = vst [vmem:[%s5 + $0x18] sm:$0xff] %v2156
  %v2163 = vld [vmem:[%s1] sm:$0xff]
  %v2164 = vld [vmem:[%s1 + $0x8] sm:$0xff]
  %2165 = vset.pattern.permute.xlu0 0
  %2166 = vperm.xlu0 %2165, %v2163
  %v2167 = vpop.permute.xlu0 %2166
  %2168 = vset.pattern.permute.xlu0 0
  %2169 = vperm.xlu0 %2168, %v2164
  %v2170 = vpop.permute.xlu0 %2169
  %vm2171 = vcmp.eq.s32.totalorder %v2167, %v32
  %vm2172 = vcmp.eq.s32.totalorder %v2170, %v32
  %v2173 = vsel %vm2171, 1.0, 0.0
  %v2174 = vsel %vm2172, 1.0, 0.0
  %vm2175 = vcmask 326656
  %v2177 = vsel %vm2175, %v2173, 0
  %v2180 = vsel %vm2175, %v2174, 0
  %2182 = vmatprep.subr.mxu0 0.0
  %2183 = vmatpush1.msra.mxu0 0.0
  %2184 = vmatprep.subr.mxu0 0.0
  %2185 = vmatpush1.msra.mxu0 0.0
  %2186 = vmatprep.subr.mxu0 0.0
  %2187 = vmatpush1.msra.mxu0 0.0
  %2188 = vmatprep.subr.mxu0 0.0
  %2189 = vmatpush1.msra.mxu0 0.0
  %2190 = vmatprep.subr.mxu0 0.0
  %2191 = vmatpush1.msra.mxu0 0.0
  %2192 = vmatprep.subr.mxu0 0.0
  %2193 = vmatpush1.msra.mxu0 0.0
  %2194 = vmatprep.subr.mxu0 0.0
  %2195 = vmatpush1.msra.mxu0 0.0
  %2196 = vmatprep.subr.mxu0 0.0
  %2197 = vmatpush1.msra.mxu0 0.0
  %2198 = vmatprep.subr.mxu0 0.0
  %2199 = vmatpush1.msra.mxu0 0.0
  %2200 = vmatprep.subr.mxu0 0.0
  %2201 = vmatpush1.msra.mxu0 0.0
  %2202 = vmatprep.subr.mxu0 0.0
  %2203 = vmatpush1.msra.mxu0 0.0
  %2204 = vmatprep.subr.mxu0 0.0
  %2205 = vmatpush1.msra.mxu0 %v30
  %2206 = vmatprep.subr.mxu0 0.0
  %2207 = vmatpush1.msra.mxu0 %v29
  %2208 = vmatprep.subr.mxu0 0.0
  %2209 = vmatpush1.msra.mxu0 %v28
  %2210 = vmatprep.subr.mxu0 0.0
  %2211 = vmatpush1.msra.mxu0 %v27
  %2212 = vmatprep.subr.mxu0 0.0
  %2213 = vmatpush1.msra.mxu0 %v26
  %2214 = vmatprep.subr.mxu0 0.0
  %2215 = vmatpush2.msra.mxu0 0.0
  %2216 = vmatprep.subr.mxu0 0.0
  %2217 = vmatpush2.msra.mxu0 0.0
  %2218 = vmatprep.subr.mxu0 0.0
  %2219 = vmatpush2.msra.mxu0 0.0
  %2220 = vmatprep.subr.mxu0 0.0
  %2221 = vmatpush2.msra.mxu0 0.0
  %2222 = vmatprep.subr.mxu0 0.0
  %2223 = vmatpush2.msra.mxu0 0.0
  %2224 = vmatprep.subr.mxu0 0.0
  %2225 = vmatpush2.msra.mxu0 0.0
  %2226 = vmatprep.subr.mxu0 0.0
  %2227 = vmatpush2.msra.mxu0 0.0
  %2228 = vmatprep.subr.mxu0 0.0
  %2229 = vmatpush2.msra.mxu0 0.0
  %2230 = vmatprep.subr.mxu0 0.0
  %2231 = vmatpush2.msra.mxu0 0.0
  %2232 = vmatprep.subr.mxu0 0.0
  %2233 = vmatpush2.msra.mxu0 0.0
  %2234 = vmatprep.subr.mxu0 0.0
  %2235 = vmatpush2.msra.mxu0 0.0
  %2236 = vmatprep.subr.mxu0 0.0
  %2237 = vmatpush2.msra.mxu0 0.0
  %2238 = vmatprep.subr.mxu0 0.0
  %2239 = vmatpush2.msra.mxu0 0.0
  %2240 = vmatprep.subr.mxu0 0.0
  %2241 = vmatpush2.msra.mxu0 0.0
  %2242 = vmatprep.subr.mxu0 0.0
  %2243 = vmatpush2.msra.mxu0 0.0
  %2244 = vmatprep.subr.mxu0 0.0
  %2245 = vmatpush2.msra.mxu0 0.0
  %2246 = vmatprep.mubr.f32.mxu0 0.0
  %2247 = vmatmul.mubr.f32.gmra.mxu0 %v2177
  %v2248 = vpop.f32.mrf.mxu0
  %v2249 = vadd.f32 0.0, %v2248
  %v2250 = vpop.f32.mrf.mxu0
  %2251 = vmatprep.mubr.f32.mxu0 0.0
  %2252 = vmatmul.mubr.f32.gmra.mxu0 %v2180
  %v2253 = vpop.f32.mrf.mxu0
  %v2254 = vadd.f32 0.0, %v2253
  %v2255 = vpop.f32.mrf.mxu0
  %2256 = vdwg.mxu0
  %v2257 = vld [vmem:[%s3 + $0x98] sm:$0xff]
  %v2258 = vld [vmem:[%s3 + $0xa0] sm:$0xff]
  %v2259 = vld [vmem:[%s3 + $0xa8] sm:$0xff]
  %v2260 = vld [vmem:[%s3 + $0xb0] sm:$0xff]
  %v2261 = vld [vmem:[%s3 + $0xb8] sm:$0xff]
  %v2262 = vld [vmem:[%s3 + $0xc0] sm:$0xff]
  %v2263 = vld [vmem:[%s3 + $0xc8] sm:$0xff]
  %v2264 = vld [vmem:[%s3 + $0xd0] sm:$0xff]
  %v2265 = vld [vmem:[%s3 + $0xd8] sm:$0xff]
  %v2266 = vld [vmem:[%s3 + $0xe0] sm:$0xff]
  %v2267 = vld [vmem:[%s3 + $0xe8] sm:$0xff]
  %v2268 = vld [vmem:[%s3 + $0xf0] sm:$0xff]
  %v2269 = vld [vmem:[%s3 + $0xf8] sm:$0xff]
  %v2270 = vld [vmem:[%s3 + $0x100] sm:$0xff]
  %v2271 = vld [vmem:[%s3 + $0x108] sm:$0xff]
  %v2272 = vld [vmem:[%s3 + $0x110] sm:$0xff]
  %v2273 = vld [vmem:[%s3 + $0x118] sm:$0xff]
  %v2274 = vld [vmem:[%s3 + $0x120] sm:$0xff]
  %v2275 = vld [vmem:[%s3 + $0x128] sm:$0x1]
  %v2276 = vlaneseq
  %v2277 = vshrl.u32 %v2276, 7
  %v2278 = vsub.s32 0, %v2277
  %v2279 = vrot.slane %v2275, %v2278
  %2280 = vmatprep.subr.mxu0 0.0
  %2281 = vmatpush1.msra.mxu0 %v2272
  %2282 = vmatprep.subr.mxu0 0.0
  %2283 = vmatpush1.msra.mxu0 %v2271
  %2284 = vmatprep.subr.mxu0 0.0
  %2285 = vmatpush1.msra.mxu0 %v2270
  %2286 = vmatprep.subr.mxu0 0.0
  %2287 = vmatpush1.msra.mxu0 %v2269
  %2288 = vmatprep.subr.mxu0 0.0
  %2289 = vmatpush1.msra.mxu0 %v2268
  %2290 = vmatprep.subr.mxu0 0.0
  %2291 = vmatpush1.msra.mxu0 %v2267
  %2292 = vmatprep.subr.mxu0 0.0
  %2293 = vmatpush1.msra.mxu0 %v2266
  %2294 = vmatprep.subr.mxu0 0.0
  %2295 = vmatpush1.msra.mxu0 %v2265
  %2296 = vmatprep.subr.mxu0 0.0
  %2297 = vmatpush1.msra.mxu0 %v2264
  %2298 = vmatprep.subr.mxu0 0.0
  %2299 = vmatpush1.msra.mxu0 %v2263
  %2300 = vmatprep.subr.mxu0 0.0
  %2301 = vmatpush1.msra.mxu0 %v2262
  %2302 = vmatprep.subr.mxu0 0.0
  %2303 = vmatpush1.msra.mxu0 %v2261
  %2304 = vmatprep.subr.mxu0 0.0
  %2305 = vmatpush1.msra.mxu0 %v2260
  %2306 = vmatprep.subr.mxu0 0.0
  %2307 = vmatpush1.msra.mxu0 %v2259
  %2308 = vmatprep.subr.mxu0 0.0
  %2309 = vmatpush1.msra.mxu0 %v2258
  %2310 = vmatprep.subr.mxu0 0.0
  %2311 = vmatpush1.msra.mxu0 %v2257
  %2312 = vmatprep.subr.mxu0 0.0
  %2313 = vmatpush2.msra.mxu0 0.0
  %2314 = vmatprep.subr.mxu0 0.0
  %2315 = vmatpush2.msra.mxu0 0.0
  %2316 = vmatprep.subr.mxu0 0.0
  %2317 = vmatpush2.msra.mxu0 0.0
  %2318 = vmatprep.subr.mxu0 0.0
  %2319 = vmatpush2.msra.mxu0 0.0
  %2320 = vmatprep.subr.mxu0 0.0
  %2321 = vmatpush2.msra.mxu0 0.0
  %2322 = vmatprep.subr.mxu0 0.0
  %2323 = vmatpush2.msra.mxu0 0.0
  %2324 = vmatprep.subr.mxu0 0.0
  %2325 = vmatpush2.msra.mxu0 0.0
  %2326 = vmatprep.subr.mxu0 0.0
  %2327 = vmatpush2.msra.mxu0 0.0
  %2328 = vmatprep.subr.mxu0 0.0
  %2329 = vmatpush2.msra.mxu0 0.0
  %2330 = vmatprep.subr.mxu0 0.0
  %2331 = vmatpush2.msra.mxu0 0.0
  %2332 = vmatprep.subr.mxu0 0.0
  %2333 = vmatpush2.msra.mxu0 0.0
  %2334 = vmatprep.subr.mxu0 0.0
  %2335 = vmatpush2.msra.mxu0 0.0
  %2336 = vmatprep.subr.mxu0 0.0
  %2337 = vmatpush2.msra.mxu0 0.0
  %2338 = vmatprep.subr.mxu0 0.0
  %2339 = vmatpush2.msra.mxu0 0.0
  %2340 = vmatprep.subr.mxu0 0.0
  %2341 = vmatpush2.msra.mxu0 0.0
  %2342 = vmatprep.subr.mxu0 0.0
  %2343 = vmatpush2.msra.mxu0 0.0
  %2344 = vmatprep.mubr.f32.mxu0 0.0
  %2345 = vmatmul.mubr.f32.gmra.mxu0 %v2249
  %v2346 = vpop.f32.mrf.mxu0
  %v2347 = vadd.f32 %v2279, %v2346
  %v2348 = vpop.f32.mrf.mxu0
  %2349 = vmatprep.mubr.f32.mxu0 0.0
  %2350 = vmatmul.mubr.f32.gmra.mxu0 %v2254
  %v2351 = vpop.f32.mrf.mxu0
  %v2352 = vadd.f32 %v2279, %v2351
  %v2353 = vpop.f32.mrf.mxu0
  %2354 = vdwg.mxu0
  %v2356 = vrot.slane %v1921, 6
  %2357 = vrot.lane.b32.xlu0 %v2356, 96
  %v2358 = vpop.permute.xlu0 %2357
  %v2359 = vsel %vm263, %v2358, 0
  %2361 = vmatprep.subr.mxu0 0.0
  %2362 = vmatpush1.msra.mxu0 0.0
  %2363 = vmatprep.subr.mxu0 0.0
  %2364 = vmatpush1.msra.mxu0 0.0
  %2365 = vmatprep.subr.mxu0 0.0
  %2366 = vmatpush1.msra.mxu0 0.0
  %2367 = vmatprep.subr.mxu0 0.0
  %2368 = vmatpush1.msra.mxu0 0.0
  %2369 = vmatprep.subr.mxu0 0.0
  %2370 = vmatpush1.msra.mxu0 0.0
  %2371 = vmatprep.subr.mxu0 0.0
  %2372 = vmatpush1.msra.mxu0 0.0
  %2373 = vmatprep.subr.mxu0 0.0
  %2374 = vmatpush1.msra.mxu0 0.0
  %2375 = vmatprep.subr.mxu0 0.0
  %2376 = vmatpush1.msra.mxu0 0.0
  %2377 = vmatprep.subr.mxu0 0.0
  %2378 = vmatpush1.msra.mxu0 0.0
  %2379 = vmatprep.subr.mxu0 0.0
  %2380 = vmatpush1.msra.mxu0 0.0
  %2381 = vmatprep.subr.mxu0 0.0
  %2382 = vmatpush1.msra.mxu0 0.0
  %2383 = vmatprep.subr.mxu0 0.0
  %2384 = vmatpush1.msra.mxu0 0.0
  %2385 = vmatprep.subr.mxu0 0.0
  %2386 = vmatpush1.msra.mxu0 0.0
  %2387 = vmatprep.subr.mxu0 0.0
  %2388 = vmatpush1.msra.mxu0 0.0
  %2389 = vmatprep.subr.mxu0 0.0
  %2390 = vmatpush1.msra.mxu0 %v2274
  %2391 = vmatprep.subr.mxu0 0.0
  %2392 = vmatpush1.msra.mxu0 %v2273
  %2393 = vmatprep.subr.mxu0 0.0
  %2394 = vmatpush2.msra.mxu0 0.0
  %2395 = vmatprep.subr.mxu0 0.0
  %2396 = vmatpush2.msra.mxu0 0.0
  %2397 = vmatprep.subr.mxu0 0.0
  %2398 = vmatpush2.msra.mxu0 0.0
  %2399 = vmatprep.subr.mxu0 0.0
  %2400 = vmatpush2.msra.mxu0 0.0
  %2401 = vmatprep.subr.mxu0 0.0
  %2402 = vmatpush2.msra.mxu0 0.0
  %2403 = vmatprep.subr.mxu0 0.0
  %2404 = vmatpush2.msra.mxu0 0.0
  %2405 = vmatprep.subr.mxu0 0.0
  %2406 = vmatpush2.msra.mxu0 0.0
  %2407 = vmatprep.subr.mxu0 0.0
  %2408 = vmatpush2.msra.mxu0 0.0
  %2409 = vmatprep.subr.mxu0 0.0
  %2410 = vmatpush2.msra.mxu0 0.0
  %2411 = vmatprep.subr.mxu0 0.0
  %2412 = vmatpush2.msra.mxu0 0.0
  %2413 = vmatprep.subr.mxu0 0.0
  %2414 = vmatpush2.msra.mxu0 0.0
  %2415 = vmatprep.subr.mxu0 0.0
  %2416 = vmatpush2.msra.mxu0 0.0
  %2417 = vmatprep.subr.mxu0 0.0
  %2418 = vmatpush2.msra.mxu0 0.0
  %2419 = vmatprep.subr.mxu0 0.0
  %2420 = vmatpush2.msra.mxu0 0.0
  %2421 = vmatprep.subr.mxu0 0.0
  %2422 = vmatpush2.msra.mxu0 0.0
  %2423 = vmatprep.subr.mxu0 0.0
  %2424 = vmatpush2.msra.mxu0 0.0
  %2425 = vmatprep.mubr.f32.mxu0 0.0
  %2426 = vmatmul.mubr.f32.gmra.mxu0 %v2359
  %v2427 = vpop.f32.mrf.mxu0
  %v2428 = vadd.f32 0.0, %v2427
  %v2429 = vpop.f32.mrf.mxu0
  %2430 = vdwg.mxu0
  %v2431 = vadd.f32 %v2347, %v2428
  %v2432 = vmul.f32 %v2431, 0.5
  %v2433 = vtanh.pop %v2432
  %v2434 = vmul.f32 %v2433, 0.5
  %v2435 = vadd.f32 %v2434, 0.5
  %v2436 = vtanh.pop %v2431
  %v2438 = vrot.slane %v1915, 6
  %v2440 = vmul.f32 %v2435, %v2438
  %2442 = vrot.lane.b32.xlu0 %v2436, 80
  %v2443 = vpop.permute.xlu0 %2442
  %v2445 = vmul.f32 %v2435, %v2443
  %2447 = vrot.lane.b32.xlu0 %v2445, 16
  %v2448 = vpop.permute.xlu0 %2447
  %v2450 = vadd.f32 %v2440, %v2448
  %v2451 = vtanh.pop %v2450
  %2453 = vrot.lane.b32.xlu0 %v2451, 16
  %v2454 = vpop.permute.xlu0 %2453
  %v2456 = vmul.f32 %v2435, %v2454
  %2458 = vrot.lane.b32.xlu0 %v2456, 96
  %v2459 = vpop.permute.xlu0 %2458
  %v2460 = vsel %vm263, %v2459, 0
  %2462 = vmatprep.subr.mxu0 0.0
  %2463 = vmatpush1.msra.mxu0 0.0
  %2464 = vmatprep.subr.mxu0 0.0
  %2465 = vmatpush1.msra.mxu0 0.0
  %2466 = vmatprep.subr.mxu0 0.0
  %2467 = vmatpush1.msra.mxu0 0.0
  %2468 = vmatprep.subr.mxu0 0.0
  %2469 = vmatpush1.msra.mxu0 0.0
  %2470 = vmatprep.subr.mxu0 0.0
  %2471 = vmatpush1.msra.mxu0 0.0
  %2472 = vmatprep.subr.mxu0 0.0
  %2473 = vmatpush1.msra.mxu0 0.0
  %2474 = vmatprep.subr.mxu0 0.0
  %2475 = vmatpush1.msra.mxu0 0.0
  %2476 = vmatprep.subr.mxu0 0.0
  %2477 = vmatpush1.msra.mxu0 0.0
  %2478 = vmatprep.subr.mxu0 0.0
  %2479 = vmatpush1.msra.mxu0 0.0
  %2480 = vmatprep.subr.mxu0 0.0
  %2481 = vmatpush1.msra.mxu0 0.0
  %2482 = vmatprep.subr.mxu0 0.0
  %2483 = vmatpush1.msra.mxu0 0.0
  %2484 = vmatprep.subr.mxu0 0.0
  %2485 = vmatpush1.msra.mxu0 0.0
  %2486 = vmatprep.subr.mxu0 0.0
  %2487 = vmatpush1.msra.mxu0 0.0
  %2488 = vmatprep.subr.mxu0 0.0
  %2489 = vmatpush1.msra.mxu0 0.0
  %2490 = vmatprep.subr.mxu0 0.0
  %2491 = vmatpush1.msra.mxu0 %v2274
  %2492 = vmatprep.subr.mxu0 0.0
  %2493 = vmatpush1.msra.mxu0 %v2273
  %2494 = vmatprep.subr.mxu0 0.0
  %2495 = vmatpush2.msra.mxu0 0.0
  %2496 = vmatprep.subr.mxu0 0.0
  %2497 = vmatpush2.msra.mxu0 0.0
  %2498 = vmatprep.subr.mxu0 0.0
  %2499 = vmatpush2.msra.mxu0 0.0
  %2500 = vmatprep.subr.mxu0 0.0
  %2501 = vmatpush2.msra.mxu0 0.0
  %2502 = vmatprep.subr.mxu0 0.0
  %2503 = vmatpush2.msra.mxu0 0.0
  %2504 = vmatprep.subr.mxu0 0.0
  %2505 = vmatpush2.msra.mxu0 0.0
  %2506 = vmatprep.subr.mxu0 0.0
  %2507 = vmatpush2.msra.mxu0 0.0
  %2508 = vmatprep.subr.mxu0 0.0
  %2509 = vmatpush2.msra.mxu0 0.0
  %2510 = vmatprep.subr.mxu0 0.0
  %2511 = vmatpush2.msra.mxu0 0.0
  %2512 = vmatprep.subr.mxu0 0.0
  %2513 = vmatpush2.msra.mxu0 0.0
  %2514 = vmatprep.subr.mxu0 0.0
  %2515 = vmatpush2.msra.mxu0 0.0
  %2516 = vmatprep.subr.mxu0 0.0
  %2517 = vmatpush2.msra.mxu0 0.0
  %2518 = vmatprep.subr.mxu0 0.0
  %2519 = vmatpush2.msra.mxu0 0.0
  %2520 = vmatprep.subr.mxu0 0.0
  %2521 = vmatpush2.msra.mxu0 0.0
  %2522 = vmatprep.subr.mxu0 0.0
  %2523 = vmatpush2.msra.mxu0 0.0
  %2524 = vmatprep.subr.mxu0 0.0
  %2525 = vmatpush2.msra.mxu0 0.0
  %2526 = vmatprep.mubr.f32.mxu0 0.0
  %2527 = vmatmul.mubr.f32.gmra.mxu0 %v2460
  %v2528 = vpop.f32.mrf.mxu0
  %v2529 = vadd.f32 0.0, %v2528
  %v2530 = vpop.f32.mrf.mxu0
  %2531 = vdwg.mxu0
  %v2533 = vrot.slane %v2529, 6
  %v2535 = vadd.f32 %v2347, %v2533
  %v2536 = vmul.f32 %v2535, 0.5
  %v2537 = vtanh.pop %v2536
  %v2538 = vmul.f32 %v2537, 0.5
  %v2539 = vadd.f32 %v2538, 0.5
  %v2540 = vtanh.pop %v2535
  %v2542 = vrot.slane %v2450, 6
  %v2544 = vmul.f32 %v2539, %v2542
  %2546 = vrot.lane.b32.xlu0 %v2540, 80
  %v2547 = vpop.permute.xlu0 %2546
  %v2549 = vmul.f32 %v2539, %v2547
  %2551 = vrot.lane.b32.xlu0 %v2549, 16
  %v2552 = vpop.permute.xlu0 %2551
  %v2554 = vadd.f32 %v2544, %v2552
  %v2555 = vtanh.pop %v2554
  %2557 = vrot.lane.b32.xlu0 %v2555, 16
  %v2558 = vpop.permute.xlu0 %2557
  %v2560 = vmul.f32 %v2539, %v2558
  %v2562 = vrot.slane %v2560, 2
  %2563 = vrot.lane.b32.xlu0 %v2562, 96
  %v2564 = vpop.permute.xlu0 %2563
  %v2565 = vsel %vm263, %v2564, 0
  %2567 = vmatprep.subr.mxu0 0.0
  %2568 = vmatpush1.msra.mxu0 0.0
  %2569 = vmatprep.subr.mxu0 0.0
  %2570 = vmatpush1.msra.mxu0 0.0
  %2571 = vmatprep.subr.mxu0 0.0
  %2572 = vmatpush1.msra.mxu0 0.0
  %2573 = vmatprep.subr.mxu0 0.0
  %2574 = vmatpush1.msra.mxu0 0.0
  %2575 = vmatprep.subr.mxu0 0.0
  %2576 = vmatpush1.msra.mxu0 0.0
  %2577 = vmatprep.subr.mxu0 0.0
  %2578 = vmatpush1.msra.mxu0 0.0
  %2579 = vmatprep.subr.mxu0 0.0
  %2580 = vmatpush1.msra.mxu0 0.0
  %2581 = vmatprep.subr.mxu0 0.0
  %2582 = vmatpush1.msra.mxu0 0.0
  %2583 = vmatprep.subr.mxu0 0.0
  %2584 = vmatpush1.msra.mxu0 0.0
  %2585 = vmatprep.subr.mxu0 0.0
  %2586 = vmatpush1.msra.mxu0 0.0
  %2587 = vmatprep.subr.mxu0 0.0
  %2588 = vmatpush1.msra.mxu0 0.0
  %2589 = vmatprep.subr.mxu0 0.0
  %2590 = vmatpush1.msra.mxu0 0.0
  %2591 = vmatprep.subr.mxu0 0.0
  %2592 = vmatpush1.msra.mxu0 0.0
  %2593 = vmatprep.subr.mxu0 0.0
  %2594 = vmatpush1.msra.mxu0 0.0
  %2595 = vmatprep.subr.mxu0 0.0
  %2596 = vmatpush1.msra.mxu0 %v2274
  %2597 = vmatprep.subr.mxu0 0.0
  %2598 = vmatpush1.msra.mxu0 %v2273
  %2599 = vmatprep.subr.mxu0 0.0
  %2600 = vmatpush2.msra.mxu0 0.0
  %2601 = vmatprep.subr.mxu0 0.0
  %2602 = vmatpush2.msra.mxu0 0.0
  %2603 = vmatprep.subr.mxu0 0.0
  %2604 = vmatpush2.msra.mxu0 0.0
  %2605 = vmatprep.subr.mxu0 0.0
  %2606 = vmatpush2.msra.mxu0 0.0
  %2607 = vmatprep.subr.mxu0 0.0
  %2608 = vmatpush2.msra.mxu0 0.0
  %2609 = vmatprep.subr.mxu0 0.0
  %2610 = vmatpush2.msra.mxu0 0.0
  %2611 = vmatprep.subr.mxu0 0.0
  %2612 = vmatpush2.msra.mxu0 0.0
  %2613 = vmatprep.subr.mxu0 0.0
  %2614 = vmatpush2.msra.mxu0 0.0
  %2615 = vmatprep.subr.mxu0 0.0
  %2616 = vmatpush2.msra.mxu0 0.0
  %2617 = vmatprep.subr.mxu0 0.0
  %2618 = vmatpush2.msra.mxu0 0.0
  %2619 = vmatprep.subr.mxu0 0.0
  %2620 = vmatpush2.msra.mxu0 0.0
  %2621 = vmatprep.subr.mxu0 0.0
  %2622 = vmatpush2.msra.mxu0 0.0
  %2623 = vmatprep.subr.mxu0 0.0
  %2624 = vmatpush2.msra.mxu0 0.0
  %2625 = vmatprep.subr.mxu0 0.0
  %2626 = vmatpush2.msra.mxu0 0.0
  %2627 = vmatprep.subr.mxu0 0.0
  %2628 = vmatpush2.msra.mxu0 0.0
  %2629 = vmatprep.subr.mxu0 0.0
  %2630 = vmatpush2.msra.mxu0 0.0
  %2631 = vmatprep.mubr.f32.mxu0 0.0
  %2632 = vmatmul.mubr.f32.gmra.mxu0 %v2565
  %v2633 = vpop.f32.mrf.mxu0
  %v2634 = vadd.f32 0.0, %v2633
  %v2635 = vpop.f32.mrf.mxu0
  %2636 = vdwg.mxu0
  %v2638 = vrot.slane %v2634, 4
  %v2640 = vadd.f32 %v2347, %v2638
  %v2641 = vmul.f32 %v2640, 0.5
  %v2642 = vtanh.pop %v2641
  %v2643 = vmul.f32 %v2642, 0.5
  %v2644 = vadd.f32 %v2643, 0.5
  %v2645 = vtanh.pop %v2640
  %v2647 = vrot.slane %v2554, 6
  %v2649 = vmul.f32 %v2644, %v2647
  %2651 = vrot.lane.b32.xlu0 %v2645, 80
  %v2652 = vpop.permute.xlu0 %2651
  %v2654 = vmul.f32 %v2644, %v2652
  %2656 = vrot.lane.b32.xlu0 %v2654, 16
  %v2657 = vpop.permute.xlu0 %2656
  %v2659 = vadd.f32 %v2649, %v2657
  %v2660 = vtanh.pop %v2659
  %2662 = vrot.lane.b32.xlu0 %v2660, 16
  %v2663 = vpop.permute.xlu0 %2662
  %v2665 = vmul.f32 %v2644, %v2663
  %v2667 = vrot.slane %v2665, 4
  %2668 = vrot.lane.b32.xlu0 %v2667, 96
  %v2669 = vpop.permute.xlu0 %2668
  %v2670 = vsel %vm263, %v2669, 0
  %2672 = vmatprep.subr.mxu0 0.0
  %2673 = vmatpush1.msra.mxu0 0.0
  %2674 = vmatprep.subr.mxu0 0.0
  %2675 = vmatpush1.msra.mxu0 0.0
  %2676 = vmatprep.subr.mxu0 0.0
  %2677 = vmatpush1.msra.mxu0 0.0
  %2678 = vmatprep.subr.mxu0 0.0
  %2679 = vmatpush1.msra.mxu0 0.0
  %2680 = vmatprep.subr.mxu0 0.0
  %2681 = vmatpush1.msra.mxu0 0.0
  %2682 = vmatprep.subr.mxu0 0.0
  %2683 = vmatpush1.msra.mxu0 0.0
  %2684 = vmatprep.subr.mxu0 0.0
  %2685 = vmatpush1.msra.mxu0 0.0
  %2686 = vmatprep.subr.mxu0 0.0
  %2687 = vmatpush1.msra.mxu0 0.0
  %2688 = vmatprep.subr.mxu0 0.0
  %2689 = vmatpush1.msra.mxu0 0.0
  %2690 = vmatprep.subr.mxu0 0.0
  %2691 = vmatpush1.msra.mxu0 0.0
  %2692 = vmatprep.subr.mxu0 0.0
  %2693 = vmatpush1.msra.mxu0 0.0
  %2694 = vmatprep.subr.mxu0 0.0
  %2695 = vmatpush1.msra.mxu0 0.0
  %2696 = vmatprep.subr.mxu0 0.0
  %2697 = vmatpush1.msra.mxu0 0.0
  %2698 = vmatprep.subr.mxu0 0.0
  %2699 = vmatpush1.msra.mxu0 0.0
  %2700 = vmatprep.subr.mxu0 0.0
  %2701 = vmatpush1.msra.mxu0 %v2274
  %2702 = vmatprep.subr.mxu0 0.0
  %2703 = vmatpush1.msra.mxu0 %v2273
  %2704 = vmatprep.subr.mxu0 0.0
  %2705 = vmatpush2.msra.mxu0 0.0
  %2706 = vmatprep.subr.mxu0 0.0
  %2707 = vmatpush2.msra.mxu0 0.0
  %2708 = vmatprep.subr.mxu0 0.0
  %2709 = vmatpush2.msra.mxu0 0.0
  %2710 = vmatprep.subr.mxu0 0.0
  %2711 = vmatpush2.msra.mxu0 0.0
  %2712 = vmatprep.subr.mxu0 0.0
  %2713 = vmatpush2.msra.mxu0 0.0
  %2714 = vmatprep.subr.mxu0 0.0
  %2715 = vmatpush2.msra.mxu0 0.0
  %2716 = vmatprep.subr.mxu0 0.0
  %2717 = vmatpush2.msra.mxu0 0.0
  %2718 = vmatprep.subr.mxu0 0.0
  %2719 = vmatpush2.msra.mxu0 0.0
  %2720 = vmatprep.subr.mxu0 0.0
  %2721 = vmatpush2.msra.mxu0 0.0
  %2722 = vmatprep.subr.mxu0 0.0
  %2723 = vmatpush2.msra.mxu0 0.0
  %2724 = vmatprep.subr.mxu0 0.0
  %2725 = vmatpush2.msra.mxu0 0.0
  %2726 = vmatprep.subr.mxu0 0.0
  %2727 = vmatpush2.msra.mxu0 0.0
  %2728 = vmatprep.subr.mxu0 0.0
  %2729 = vmatpush2.msra.mxu0 0.0
  %2730 = vmatprep.subr.mxu0 0.0
  %2731 = vmatpush2.msra.mxu0 0.0
  %2732 = vmatprep.subr.mxu0 0.0
  %2733 = vmatpush2.msra.mxu0 0.0
  %2734 = vmatprep.subr.mxu0 0.0
  %2735 = vmatpush2.msra.mxu0 0.0
  %2736 = vmatprep.mubr.f32.mxu0 0.0
  %2737 = vmatmul.mubr.f32.gmra.mxu0 %v2670
  %v2738 = vpop.f32.mrf.mxu0
  %v2739 = vadd.f32 0.0, %v2738
  %v2740 = vpop.f32.mrf.mxu0
  %2741 = vdwg.mxu0
  %v2743 = vrot.slane %v2739, 2
  %v2745 = vadd.f32 %v2347, %v2743
  %v2746 = vmul.f32 %v2745, 0.5
  %v2747 = vtanh.pop %v2746
  %v2748 = vmul.f32 %v2747, 0.5
  %v2749 = vadd.f32 %v2748, 0.5
  %v2750 = vtanh.pop %v2745
  %v2752 = vrot.slane %v2659, 6
  %v2754 = vmul.f32 %v2749, %v2752
  %2756 = vrot.lane.b32.xlu0 %v2750, 80
  %v2757 = vpop.permute.xlu0 %2756
  %v2759 = vmul.f32 %v2749, %v2757
  %2761 = vrot.lane.b32.xlu0 %v2759, 16
  %v2762 = vpop.permute.xlu0 %2761
  %v2764 = vadd.f32 %v2754, %v2762
  %v2765 = vtanh.pop %v2764
  %2767 = vrot.lane.b32.xlu0 %v2765, 16
  %v2768 = vpop.permute.xlu0 %2767
  %v2770 = vmul.f32 %v2749, %v2768
  %v2772 = vrot.slane %v2770, 6
  %2773 = vrot.lane.b32.xlu0 %v2772, 96
  %v2774 = vpop.permute.xlu0 %2773
  %v2775 = vsel %vm263, %v2774, 0
  %2777 = vmatprep.subr.mxu0 0.0
  %2778 = vmatpush1.msra.mxu0 0.0
  %2779 = vmatprep.subr.mxu0 0.0
  %2780 = vmatpush1.msra.mxu0 0.0
  %2781 = vmatprep.subr.mxu0 0.0
  %2782 = vmatpush1.msra.mxu0 0.0
  %2783 = vmatprep.subr.mxu0 0.0
  %2784 = vmatpush1.msra.mxu0 0.0
  %2785 = vmatprep.subr.mxu0 0.0
  %2786 = vmatpush1.msra.mxu0 0.0
  %2787 = vmatprep.subr.mxu0 0.0
  %2788 = vmatpush1.msra.mxu0 0.0
  %2789 = vmatprep.subr.mxu0 0.0
  %2790 = vmatpush1.msra.mxu0 0.0
  %2791 = vmatprep.subr.mxu0 0.0
  %2792 = vmatpush1.msra.mxu0 0.0
  %2793 = vmatprep.subr.mxu0 0.0
  %2794 = vmatpush1.msra.mxu0 0.0
  %2795 = vmatprep.subr.mxu0 0.0
  %2796 = vmatpush1.msra.mxu0 0.0
  %2797 = vmatprep.subr.mxu0 0.0
  %2798 = vmatpush1.msra.mxu0 0.0
  %2799 = vmatprep.subr.mxu0 0.0
  %2800 = vmatpush1.msra.mxu0 0.0
  %2801 = vmatprep.subr.mxu0 0.0
  %2802 = vmatpush1.msra.mxu0 0.0
  %2803 = vmatprep.subr.mxu0 0.0
  %2804 = vmatpush1.msra.mxu0 0.0
  %2805 = vmatprep.subr.mxu0 0.0
  %2806 = vmatpush1.msra.mxu0 %v2274
  %2807 = vmatprep.subr.mxu0 0.0
  %2808 = vmatpush1.msra.mxu0 %v2273
  %2809 = vmatprep.subr.mxu0 0.0
  %2810 = vmatpush2.msra.mxu0 0.0
  %2811 = vmatprep.subr.mxu0 0.0
  %2812 = vmatpush2.msra.mxu0 0.0
  %2813 = vmatprep.subr.mxu0 0.0
  %2814 = vmatpush2.msra.mxu0 0.0
  %2815 = vmatprep.subr.mxu0 0.0
  %2816 = vmatpush2.msra.mxu0 0.0
  %2817 = vmatprep.subr.mxu0 0.0
  %2818 = vmatpush2.msra.mxu0 0.0
  %2819 = vmatprep.subr.mxu0 0.0
  %2820 = vmatpush2.msra.mxu0 0.0
  %2821 = vmatprep.subr.mxu0 0.0
  %2822 = vmatpush2.msra.mxu0 0.0
  %2823 = vmatprep.subr.mxu0 0.0
  %2824 = vmatpush2.msra.mxu0 0.0
  %2825 = vmatprep.subr.mxu0 0.0
  %2826 = vmatpush2.msra.mxu0 0.0
  %2827 = vmatprep.subr.mxu0 0.0
  %2828 = vmatpush2.msra.mxu0 0.0
  %2829 = vmatprep.subr.mxu0 0.0
  %2830 = vmatpush2.msra.mxu0 0.0
  %2831 = vmatprep.subr.mxu0 0.0
  %2832 = vmatpush2.msra.mxu0 0.0
  %2833 = vmatprep.subr.mxu0 0.0
  %2834 = vmatpush2.msra.mxu0 0.0
  %2835 = vmatprep.subr.mxu0 0.0
  %2836 = vmatpush2.msra.mxu0 0.0
  %2837 = vmatprep.subr.mxu0 0.0
  %2838 = vmatpush2.msra.mxu0 0.0
  %2839 = vmatprep.subr.mxu0 0.0
  %2840 = vmatpush2.msra.mxu0 0.0
  %2841 = vmatprep.mubr.f32.mxu0 0.0
  %2842 = vmatmul.mubr.f32.gmra.mxu0 %v2775
  %v2843 = vpop.f32.mrf.mxu0
  %v2844 = vadd.f32 0.0, %v2843
  %v2845 = vpop.f32.mrf.mxu0
  %2846 = vdwg.mxu0
  %v2847 = vadd.f32 %v2352, %v2844
  %v2848 = vmul.f32 %v2847, 0.5
  %v2849 = vtanh.pop %v2848
  %v2850 = vmul.f32 %v2849, 0.5
  %v2851 = vadd.f32 %v2850, 0.5
  %v2852 = vtanh.pop %v2847
  %v2854 = vrot.slane %v2764, 6
  %v2856 = vmul.f32 %v2851, %v2854
  %2858 = vrot.lane.b32.xlu0 %v2852, 80
  %v2859 = vpop.permute.xlu0 %2858
  %v2861 = vmul.f32 %v2851, %v2859
  %2863 = vrot.lane.b32.xlu0 %v2861, 16
  %v2864 = vpop.permute.xlu0 %2863
  %v2866 = vadd.f32 %v2856, %v2864
  %v2867 = vtanh.pop %v2866
  %2869 = vrot.lane.b32.xlu0 %v2867, 16
  %v2870 = vpop.permute.xlu0 %2869
  %v2872 = vmul.f32 %v2851, %v2870
  %2874 = vrot.lane.b32.xlu0 %v2872, 96
  %v2875 = vpop.permute.xlu0 %2874
  %v2876 = vsel %vm263, %v2875, 0
  %2878 = vmatprep.subr.mxu0 0.0
  %2879 = vmatpush1.msra.mxu0 0.0
  %2880 = vmatprep.subr.mxu0 0.0
  %2881 = vmatpush1.msra.mxu0 0.0
  %2882 = vmatprep.subr.mxu0 0.0
  %2883 = vmatpush1.msra.mxu0 0.0
  %2884 = vmatprep.subr.mxu0 0.0
  %2885 = vmatpush1.msra.mxu0 0.0
  %2886 = vmatprep.subr.mxu0 0.0
  %2887 = vmatpush1.msra.mxu0 0.0
  %2888 = vmatprep.subr.mxu0 0.0
  %2889 = vmatpush1.msra.mxu0 0.0
  %2890 = vmatprep.subr.mxu0 0.0
  %2891 = vmatpush1.msra.mxu0 0.0
  %2892 = vmatprep.subr.mxu0 0.0
  %2893 = vmatpush1.msra.mxu0 0.0
  %2894 = vmatprep.subr.mxu0 0.0
  %2895 = vmatpush1.msra.mxu0 0.0
  %2896 = vmatprep.subr.mxu0 0.0
  %2897 = vmatpush1.msra.mxu0 0.0
  %2898 = vmatprep.subr.mxu0 0.0
  %2899 = vmatpush1.msra.mxu0 0.0
  %2900 = vmatprep.subr.mxu0 0.0
  %2901 = vmatpush1.msra.mxu0 0.0
  %2902 = vmatprep.subr.mxu0 0.0
  %2903 = vmatpush1.msra.mxu0 0.0
  %2904 = vmatprep.subr.mxu0 0.0
  %2905 = vmatpush1.msra.mxu0 0.0
  %2906 = vmatprep.subr.mxu0 0.0
  %2907 = vmatpush1.msra.mxu0 %v2274
  %2908 = vmatprep.subr.mxu0 0.0
  %2909 = vmatpush1.msra.mxu0 %v2273
  %2910 = vmatprep.subr.mxu0 0.0
  %2911 = vmatpush2.msra.mxu0 0.0
  %2912 = vmatprep.subr.mxu0 0.0
  %2913 = vmatpush2.msra.mxu0 0.0
  %2914 = vmatprep.subr.mxu0 0.0
  %2915 = vmatpush2.msra.mxu0 0.0
  %2916 = vmatprep.subr.mxu0 0.0
  %2917 = vmatpush2.msra.mxu0 0.0
  %2918 = vmatprep.subr.mxu0 0.0
  %2919 = vmatpush2.msra.mxu0 0.0
  %2920 = vmatprep.subr.mxu0 0.0
  %2921 = vmatpush2.msra.mxu0 0.0
  %2922 = vmatprep.subr.mxu0 0.0
  %2923 = vmatpush2.msra.mxu0 0.0
  %2924 = vmatprep.subr.mxu0 0.0
  %2925 = vmatpush2.msra.mxu0 0.0
  %2926 = vmatprep.subr.mxu0 0.0
  %2927 = vmatpush2.msra.mxu0 0.0
  %2928 = vmatprep.subr.mxu0 0.0
  %2929 = vmatpush2.msra.mxu0 0.0
  %2930 = vmatprep.subr.mxu0 0.0
  %2931 = vmatpush2.msra.mxu0 0.0
  %2932 = vmatprep.subr.mxu0 0.0
  %2933 = vmatpush2.msra.mxu0 0.0
  %2934 = vmatprep.subr.mxu0 0.0
  %2935 = vmatpush2.msra.mxu0 0.0
  %2936 = vmatprep.subr.mxu0 0.0
  %2937 = vmatpush2.msra.mxu0 0.0
  %2938 = vmatprep.subr.mxu0 0.0
  %2939 = vmatpush2.msra.mxu0 0.0
  %2940 = vmatprep.subr.mxu0 0.0
  %2941 = vmatpush2.msra.mxu0 0.0
  %2942 = vmatprep.mubr.f32.mxu0 0.0
  %2943 = vmatmul.mubr.f32.gmra.mxu0 %v2876
  %v2944 = vpop.f32.mrf.mxu0
  %v2945 = vadd.f32 0.0, %v2944
  %v2946 = vpop.f32.mrf.mxu0
  %2947 = vdwg.mxu0
  %v2949 = vrot.slane %v2945, 6
  %v2951 = vadd.f32 %v2352, %v2949
  %v2952 = vmul.f32 %v2951, 0.5
  %v2953 = vtanh.pop %v2952
  %v2954 = vmul.f32 %v2953, 0.5
  %v2955 = vadd.f32 %v2954, 0.5
  %v2956 = vtanh.pop %v2951
  %v2958 = vrot.slane %v2866, 6
  %v2960 = vmul.f32 %v2955, %v2958
  %2962 = vrot.lane.b32.xlu0 %v2956, 80
  %v2963 = vpop.permute.xlu0 %2962
  %v2965 = vmul.f32 %v2955, %v2963
  %2967 = vrot.lane.b32.xlu0 %v2965, 16
  %v2968 = vpop.permute.xlu0 %2967
  %v2970 = vadd.f32 %v2960, %v2968
  %v2971 = vtanh.pop %v2970
  %2973 = vrot.lane.b32.xlu0 %v2971, 16
  %v2974 = vpop.permute.xlu0 %2973
  %v2976 = vmul.f32 %v2955, %v2974
  %v2978 = vrot.slane %v2976, 2
  %2979 = vrot.lane.b32.xlu0 %v2978, 96
  %v2980 = vpop.permute.xlu0 %2979
  %v2981 = vsel %vm263, %v2980, 0
  %2983 = vmatprep.subr.mxu0 0.0
  %2984 = vmatpush1.msra.mxu0 0.0
  %2985 = vmatprep.subr.mxu0 0.0
  %2986 = vmatpush1.msra.mxu0 0.0
  %2987 = vmatprep.subr.mxu0 0.0
  %2988 = vmatpush1.msra.mxu0 0.0
  %2989 = vmatprep.subr.mxu0 0.0
  %2990 = vmatpush1.msra.mxu0 0.0
  %2991 = vmatprep.subr.mxu0 0.0
  %2992 = vmatpush1.msra.mxu0 0.0
  %2993 = vmatprep.subr.mxu0 0.0
  %2994 = vmatpush1.msra.mxu0 0.0
  %2995 = vmatprep.subr.mxu0 0.0
  %2996 = vmatpush1.msra.mxu0 0.0
  %2997 = vmatprep.subr.mxu0 0.0
  %2998 = vmatpush1.msra.mxu0 0.0
  %2999 = vmatprep.subr.mxu0 0.0
  %3000 = vmatpush1.msra.mxu0 0.0
  %3001 = vmatprep.subr.mxu0 0.0
  %3002 = vmatpush1.msra.mxu0 0.0
  %3003 = vmatprep.subr.mxu0 0.0
  %3004 = vmatpush1.msra.mxu0 0.0
  %3005 = vmatprep.subr.mxu0 0.0
  %3006 = vmatpush1.msra.mxu0 0.0
  %3007 = vmatprep.subr.mxu0 0.0
  %3008 = vmatpush1.msra.mxu0 0.0
  %3009 = vmatprep.subr.mxu0 0.0
  %3010 = vmatpush1.msra.mxu0 0.0
  %3011 = vmatprep.subr.mxu0 0.0
  %3012 = vmatpush1.msra.mxu0 %v2274
  %3013 = vmatprep.subr.mxu0 0.0
  %3014 = vmatpush1.msra.mxu0 %v2273
  %3015 = vmatprep.subr.mxu0 0.0
  %3016 = vmatpush2.msra.mxu0 0.0
  %3017 = vmatprep.subr.mxu0 0.0
  %3018 = vmatpush2.msra.mxu0 0.0
  %3019 = vmatprep.subr.mxu0 0.0
  %3020 = vmatpush2.msra.mxu0 0.0
  %3021 = vmatprep.subr.mxu0 0.0
  %3022 = vmatpush2.msra.mxu0 0.0
  %3023 = vmatprep.subr.mxu0 0.0
  %3024 = vmatpush2.msra.mxu0 0.0
  %3025 = vmatprep.subr.mxu0 0.0
  %3026 = vmatpush2.msra.mxu0 0.0
  %3027 = vmatprep.subr.mxu0 0.0
  %3028 = vmatpush2.msra.mxu0 0.0
  %3029 = vmatprep.subr.mxu0 0.0
  %3030 = vmatpush2.msra.mxu0 0.0
  %3031 = vmatprep.subr.mxu0 0.0
  %3032 = vmatpush2.msra.mxu0 0.0
  %3033 = vmatprep.subr.mxu0 0.0
  %3034 = vmatpush2.msra.mxu0 0.0
  %3035 = vmatprep.subr.mxu0 0.0
  %3036 = vmatpush2.msra.mxu0 0.0
  %3037 = vmatprep.subr.mxu0 0.0
  %3038 = vmatpush2.msra.mxu0 0.0
  %3039 = vmatprep.subr.mxu0 0.0
  %3040 = vmatpush2.msra.mxu0 0.0
  %3041 = vmatprep.subr.mxu0 0.0
  %3042 = vmatpush2.msra.mxu0 0.0
  %3043 = vmatprep.subr.mxu0 0.0
  %3044 = vmatpush2.msra.mxu0 0.0
  %3045 = vmatprep.subr.mxu0 0.0
  %3046 = vmatpush2.msra.mxu0 0.0
  %3047 = vmatprep.mubr.f32.mxu0 0.0
  %3048 = vmatmul.mubr.f32.gmra.mxu0 %v2981
  %v3049 = vpop.f32.mrf.mxu0
  %v3050 = vadd.f32 0.0, %v3049
  %v3051 = vpop.f32.mrf.mxu0
  %3052 = vdwg.mxu0
  %v3054 = vrot.slane %v3050, 4
  %v3056 = vadd.f32 %v2352, %v3054
  %v3057 = vmul.f32 %v3056, 0.5
  %v3058 = vtanh.pop %v3057
  %v3059 = vmul.f32 %v3058, 0.5
  %v3060 = vadd.f32 %v3059, 0.5
  %v3061 = vtanh.pop %v3056
  %v3063 = vrot.slane %v2970, 6
  %v3065 = vmul.f32 %v3060, %v3063
  %3067 = vrot.lane.b32.xlu0 %v3061, 80
  %v3068 = vpop.permute.xlu0 %3067
  %v3070 = vmul.f32 %v3060, %v3068
  %3072 = vrot.lane.b32.xlu0 %v3070, 16
  %v3073 = vpop.permute.xlu0 %3072
  %v3075 = vadd.f32 %v3065, %v3073
  %v3076 = vtanh.pop %v3075
  %3078 = vrot.lane.b32.xlu0 %v3076, 16
  %v3079 = vpop.permute.xlu0 %3078
  %v3081 = vmul.f32 %v3060, %v3079
  %v3083 = vrot.slane %v3081, 4
  %3084 = vrot.lane.b32.xlu0 %v3083, 96
  %v3085 = vpop.permute.xlu0 %3084
  %v3086 = vsel %vm263, %v3085, 0
  %3088 = vmatprep.subr.mxu0 0.0
  %3089 = vmatpush1.msra.mxu0 0.0
  %3090 = vmatprep.subr.mxu0 0.0
  %3091 = vmatpush1.msra.mxu0 0.0
  %3092 = vmatprep.subr.mxu0 0.0
  %3093 = vmatpush1.msra.mxu0 0.0
  %3094 = vmatprep.subr.mxu0 0.0
  %3095 = vmatpush1.msra.mxu0 0.0
  %3096 = vmatprep.subr.mxu0 0.0
  %3097 = vmatpush1.msra.mxu0 0.0
  %3098 = vmatprep.subr.mxu0 0.0
  %3099 = vmatpush1.msra.mxu0 0.0
  %3100 = vmatprep.subr.mxu0 0.0
  %3101 = vmatpush1.msra.mxu0 0.0
  %3102 = vmatprep.subr.mxu0 0.0
  %3103 = vmatpush1.msra.mxu0 0.0
  %3104 = vmatprep.subr.mxu0 0.0
  %3105 = vmatpush1.msra.mxu0 0.0
  %3106 = vmatprep.subr.mxu0 0.0
  %3107 = vmatpush1.msra.mxu0 0.0
  %3108 = vmatprep.subr.mxu0 0.0
  %3109 = vmatpush1.msra.mxu0 0.0
  %3110 = vmatprep.subr.mxu0 0.0
  %3111 = vmatpush1.msra.mxu0 0.0
  %3112 = vmatprep.subr.mxu0 0.0
  %3113 = vmatpush1.msra.mxu0 0.0
  %3114 = vmatprep.subr.mxu0 0.0
  %3115 = vmatpush1.msra.mxu0 0.0
  %3116 = vmatprep.subr.mxu0 0.0
  %3117 = vmatpush1.msra.mxu0 %v2274
  %3118 = vmatprep.subr.mxu0 0.0
  %3119 = vmatpush1.msra.mxu0 %v2273
  %3120 = vmatprep.subr.mxu0 0.0
  %3121 = vmatpush2.msra.mxu0 0.0
  %3122 = vmatprep.subr.mxu0 0.0
  %3123 = vmatpush2.msra.mxu0 0.0
  %3124 = vmatprep.subr.mxu0 0.0
  %3125 = vmatpush2.msra.mxu0 0.0
  %3126 = vmatprep.subr.mxu0 0.0
  %3127 = vmatpush2.msra.mxu0 0.0
  %3128 = vmatprep.subr.mxu0 0.0
  %3129 = vmatpush2.msra.mxu0 0.0
  %3130 = vmatprep.subr.mxu0 0.0
  %3131 = vmatpush2.msra.mxu0 0.0
  %3132 = vmatprep.subr.mxu0 0.0
  %3133 = vmatpush2.msra.mxu0 0.0
  %3134 = vmatprep.subr.mxu0 0.0
  %3135 = vmatpush2.msra.mxu0 0.0
  %3136 = vmatprep.subr.mxu0 0.0
  %3137 = vmatpush2.msra.mxu0 0.0
  %3138 = vmatprep.subr.mxu0 0.0
  %3139 = vmatpush2.msra.mxu0 0.0
  %3140 = vmatprep.subr.mxu0 0.0
  %3141 = vmatpush2.msra.mxu0 0.0
  %3142 = vmatprep.subr.mxu0 0.0
  %3143 = vmatpush2.msra.mxu0 0.0
  %3144 = vmatprep.subr.mxu0 0.0
  %3145 = vmatpush2.msra.mxu0 0.0
  %3146 = vmatprep.subr.mxu0 0.0
  %3147 = vmatpush2.msra.mxu0 0.0
  %3148 = vmatprep.subr.mxu0 0.0
  %3149 = vmatpush2.msra.mxu0 0.0
  %3150 = vmatprep.subr.mxu0 0.0
  %3151 = vmatpush2.msra.mxu0 0.0
  %3152 = vmatprep.mubr.f32.mxu0 0.0
  %3153 = vmatmul.mubr.f32.gmra.mxu0 %v3086
  %v3154 = vpop.f32.mrf.mxu0
  %v3155 = vadd.f32 0.0, %v3154
  %v3156 = vpop.f32.mrf.mxu0
  %3157 = vdwg.mxu0
  %v3159 = vrot.slane %v3155, 2
  %v3161 = vadd.f32 %v2352, %v3159
  %v3162 = vmul.f32 %v3161, 0.5
  %v3163 = vtanh.pop %v3162
  %v3164 = vmul.f32 %v3163, 0.5
  %v3165 = vadd.f32 %v3164, 0.5
  %v3166 = vtanh.pop %v3161
  %v3168 = vrot.slane %v3075, 6
  %v3170 = vmul.f32 %v3165, %v3168
  %3172 = vrot.lane.b32.xlu0 %v3166, 80
  %v3173 = vpop.permute.xlu0 %3172
  %v3175 = vmul.f32 %v3165, %v3173
  %3177 = vrot.lane.b32.xlu0 %v3175, 16
  %v3178 = vpop.permute.xlu0 %3177
  %v3180 = vadd.f32 %v3170, %v3178
  %v3181 = vtanh.pop %v3180
  %3183 = vrot.lane.b32.xlu0 %v3181, 16
  %v3184 = vpop.permute.xlu0 %3183
  %v3186 = vmul.f32 %v3165, %v3184
  %v3187 = vsel %vm1922, %v2456, %v2560
  %v3188 = vsel %vm1924, %v3187, %v2665
  %v3189 = vsel %vm1926, %v3188, %v2770
  %v3190 = vsel %vm1922, %v2872, %v2976
  %v3191 = vsel %vm1924, %v3190, %v3081
  %v3192 = vsel %vm1926, %v3191, %v3186
  %v3193 = vld [vmem:[%s4 + $0xa0] sm:$0xff]
  %v3194 = vld [vmem:[%s4 + $0xa8] sm:$0xff]
  %v3195 = vld [vmem:[%s4 + $0xb0] sm:$0x1]
  %v3196 = vld [vmem:[%s4 + $0xb8] sm:$0xff]
  %v3197 = vld [vmem:[%s4 + $0xc0] sm:$0xff]
  %v3198 = vld [vmem:[%s4 + $0xc8] sm:$0xff]
  %v3199 = vld [vmem:[%s4 + $0xd0] sm:$0xff]
  %v3200 = vld [vmem:[%s4 + $0xd8] sm:$0xff]
  %v3201 = vld [vmem:[%s4 + $0xe0] sm:$0xff]
  %v3202 = vld [vmem:[%s4 + $0xe8] sm:$0xff]
  %v3203 = vld [vmem:[%s4 + $0xf0] sm:$0xff]
  %v3204 = vld [vmem:[%s4 + $0xf8] sm:$0xff]
  %v3205 = vld [vmem:[%s4 + $0x100] sm:$0xff]
  %v3206 = vld [vmem:[%s4 + $0x108] sm:$0xff]
  %v3207 = vld [vmem:[%s4 + $0x110] sm:$0xff]
  %v3208 = vld [vmem:[%s4 + $0x118] sm:$0xff]
  %v3209 = vld [vmem:[%s4 + $0x120] sm:$0xff]
  %v3210 = vld [vmem:[%s4 + $0x128] sm:$0xff]
  %v3211 = vld [vmem:[%s4 + $0x130] sm:$0xff]
  %v3212 = vld [vmem:[%s4 + $0x138] sm:$0x1]
  %v3213 = vlaneseq
  %v3214 = vshrl.u32 %v3213, 7
  %v3215 = vsub.s32 0, %v3214
  %v3216 = vrot.slane %v3195, %v3215
  %3219 = vrot.lane.b32.xlu0 %v3189, 96
  %v3220 = vpop.permute.xlu0 %3219
  %3221 = vrot.lane.b32.xlu0 %v3192, 96
  %v3222 = vpop.permute.xlu0 %3221
  %v3223 = vsel %vm263, %v3220, 0
  %v3225 = vsel %vm263, %v3222, 0
  %3227 = vmatprep.subr.mxu0 0.0
  %3228 = vmatpush1.msra.mxu0 0.0
  %3229 = vmatprep.subr.mxu0 0.0
  %3230 = vmatpush1.msra.mxu0 0.0
  %3231 = vmatprep.subr.mxu0 0.0
  %3232 = vmatpush1.msra.mxu0 0.0
  %3233 = vmatprep.subr.mxu0 0.0
  %3234 = vmatpush1.msra.mxu0 0.0
  %3235 = vmatprep.subr.mxu0 0.0
  %3236 = vmatpush1.msra.mxu0 0.0
  %3237 = vmatprep.subr.mxu0 0.0
  %3238 = vmatpush1.msra.mxu0 0.0
  %3239 = vmatprep.subr.mxu0 0.0
  %3240 = vmatpush1.msra.mxu0 0.0
  %3241 = vmatprep.subr.mxu0 0.0
  %3242 = vmatpush1.msra.mxu0 0.0
  %3243 = vmatprep.subr.mxu0 0.0
  %3244 = vmatpush1.msra.mxu0 0.0
  %3245 = vmatprep.subr.mxu0 0.0
  %3246 = vmatpush1.msra.mxu0 0.0
  %3247 = vmatprep.subr.mxu0 0.0
  %3248 = vmatpush1.msra.mxu0 0.0
  %3249 = vmatprep.subr.mxu0 0.0
  %3250 = vmatpush1.msra.mxu0 0.0
  %3251 = vmatprep.subr.mxu0 0.0
  %3252 = vmatpush1.msra.mxu0 0.0
  %3253 = vmatprep.subr.mxu0 0.0
  %3254 = vmatpush1.msra.mxu0 0.0
  %3255 = vmatprep.subr.mxu0 0.0
  %3256 = vmatpush1.msra.mxu0 %v3194
  %3257 = vmatprep.subr.mxu0 0.0
  %3258 = vmatpush1.msra.mxu0 %v3193
  %3259 = vmatprep.subr.mxu0 0.0
  %3260 = vmatpush2.msra.mxu0 0.0
  %3261 = vmatprep.subr.mxu0 0.0
  %3262 = vmatpush2.msra.mxu0 0.0
  %3263 = vmatprep.subr.mxu0 0.0
  %3264 = vmatpush2.msra.mxu0 0.0
  %3265 = vmatprep.subr.mxu0 0.0
  %3266 = vmatpush2.msra.mxu0 0.0
  %3267 = vmatprep.subr.mxu0 0.0
  %3268 = vmatpush2.msra.mxu0 0.0
  %3269 = vmatprep.subr.mxu0 0.0
  %3270 = vmatpush2.msra.mxu0 0.0
  %3271 = vmatprep.subr.mxu0 0.0
  %3272 = vmatpush2.msra.mxu0 0.0
  %3273 = vmatprep.subr.mxu0 0.0
  %3274 = vmatpush2.msra.mxu0 0.0
  %3275 = vmatprep.subr.mxu0 0.0
  %3276 = vmatpush2.msra.mxu0 0.0
  %3277 = vmatprep.subr.mxu0 0.0
  %3278 = vmatpush2.msra.mxu0 0.0
  %3279 = vmatprep.subr.mxu0 0.0
  %3280 = vmatpush2.msra.mxu0 0.0
  %3281 = vmatprep.subr.mxu0 0.0
  %3282 = vmatpush2.msra.mxu0 0.0
  %3283 = vmatprep.subr.mxu0 0.0
  %3284 = vmatpush2.msra.mxu0 0.0
  %3285 = vmatprep.subr.mxu0 0.0
  %3286 = vmatpush2.msra.mxu0 0.0
  %3287 = vmatprep.subr.mxu0 0.0
  %3288 = vmatpush2.msra.mxu0 0.0
  %3289 = vmatprep.subr.mxu0 0.0
  %3290 = vmatpush2.msra.mxu0 0.0
  %3291 = vmatprep.mubr.f32.mxu0 0.0
  %3292 = vmatmul.mubr.f32.gmra.mxu0 %v3223
  %v3293 = vpop.f32.mrf.mxu0
  %v3294 = vadd.f32 %v3216, %v3293
  %v3295 = vpop.f32.mrf.mxu0
  %3296 = vmatprep.mubr.f32.mxu0 0.0
  %3297 = vmatmul.mubr.f32.gmra.mxu0 %v3225
  %v3298 = vpop.f32.mrf.mxu0
  %v3299 = vadd.f32 %v3216, %v3298
  %v3300 = vpop.f32.mrf.mxu0
  %3301 = vdwg.mxu0
  %v3302 = vmax.f32 %v3294, 0.0
  %v3303 = vmax.f32 %v3299, 0.0
  %v3304 = vlaneseq
  %v3305 = vshrl.u32 %v3304, 7
  %v3306 = vsub.s32 0, %v3305
  %v3307 = vrot.slane %v3212, %v3306
  %3308 = vmatprep.subr.mxu0 0.0
  %3309 = vmatpush1.msra.mxu0 %v3211
  %3310 = vmatprep.subr.mxu0 0.0
  %3311 = vmatpush1.msra.mxu0 %v3210
  %3312 = vmatprep.subr.mxu0 0.0
  %3313 = vmatpush1.msra.mxu0 %v3209
  %3314 = vmatprep.subr.mxu0 0.0
  %3315 = vmatpush1.msra.mxu0 %v3208
  %3316 = vmatprep.subr.mxu0 0.0
  %3317 = vmatpush1.msra.mxu0 %v3207
  %3318 = vmatprep.subr.mxu0 0.0
  %3319 = vmatpush1.msra.mxu0 %v3206
  %3320 = vmatprep.subr.mxu0 0.0
  %3321 = vmatpush1.msra.mxu0 %v3205
  %3322 = vmatprep.subr.mxu0 0.0
  %3323 = vmatpush1.msra.mxu0 %v3204
  %3324 = vmatprep.subr.mxu0 0.0
  %3325 = vmatpush1.msra.mxu0 %v3203
  %3326 = vmatprep.subr.mxu0 0.0
  %3327 = vmatpush1.msra.mxu0 %v3202
  %3328 = vmatprep.subr.mxu0 0.0
  %3329 = vmatpush1.msra.mxu0 %v3201
  %3330 = vmatprep.subr.mxu0 0.0
  %3331 = vmatpush1.msra.mxu0 %v3200
  %3332 = vmatprep.subr.mxu0 0.0
  %3333 = vmatpush1.msra.mxu0 %v3199
  %3334 = vmatprep.subr.mxu0 0.0
  %3335 = vmatpush1.msra.mxu0 %v3198
  %3336 = vmatprep.subr.mxu0 0.0
  %3337 = vmatpush1.msra.mxu0 %v3197
  %3338 = vmatprep.subr.mxu0 0.0
  %3339 = vmatpush1.msra.mxu0 %v3196
  %3340 = vmatprep.subr.mxu0 0.0
  %3341 = vmatpush2.msra.mxu0 0.0
  %3342 = vmatprep.subr.mxu0 0.0
  %3343 = vmatpush2.msra.mxu0 0.0
  %3344 = vmatprep.subr.mxu0 0.0
  %3345 = vmatpush2.msra.mxu0 0.0
  %3346 = vmatprep.subr.mxu0 0.0
  %3347 = vmatpush2.msra.mxu0 0.0
  %3348 = vmatprep.subr.mxu0 0.0
  %3349 = vmatpush2.msra.mxu0 0.0
  %3350 = vmatprep.subr.mxu0 0.0
  %3351 = vmatpush2.msra.mxu0 0.0
  %3352 = vmatprep.subr.mxu0 0.0
  %3353 = vmatpush2.msra.mxu0 0.0
  %3354 = vmatprep.subr.mxu0 0.0
  %3355 = vmatpush2.msra.mxu0 0.0
  %3356 = vmatprep.subr.mxu0 0.0
  %3357 = vmatpush2.msra.mxu0 0.0
  %3358 = vmatprep.subr.mxu0 0.0
  %3359 = vmatpush2.msra.mxu0 0.0
  %3360 = vmatprep.subr.mxu0 0.0
  %3361 = vmatpush2.msra.mxu0 0.0
  %3362 = vmatprep.subr.mxu0 0.0
  %3363 = vmatpush2.msra.mxu0 0.0
  %3364 = vmatprep.subr.mxu0 0.0
  %3365 = vmatpush2.msra.mxu0 0.0
  %3366 = vmatprep.subr.mxu0 0.0
  %3367 = vmatpush2.msra.mxu0 0.0
  %3368 = vmatprep.subr.mxu0 0.0
  %3369 = vmatpush2.msra.mxu0 0.0
  %3370 = vmatprep.subr.mxu0 0.0
  %3371 = vmatpush2.msra.mxu0 0.0
  %3372 = vmatprep.mubr.f32.mxu0 0.0
  %3373 = vmatmul.mubr.f32.gmra.mxu0 %v3302
  %v3374 = vpop.f32.mrf.mxu0
  %v3375 = vadd.f32 %v3307, %v3374
  %v3376 = vpop.f32.mrf.mxu0
  %3377 = vmatprep.mubr.f32.mxu0 0.0
  %3378 = vmatmul.mubr.f32.gmra.mxu0 %v3303
  %v3379 = vpop.f32.mrf.mxu0
  %v3380 = vadd.f32 %v3307, %v3379
  %v3381 = vpop.f32.mrf.mxu0
  %3382 = vdwg.mxu0
  %3383 = vst [vmem:[%s6] sm:$0xff] %v3375
  %3384 = vst [vmem:[%s6 + $0x8] sm:$0xff] %v3380
  // Predicated region
  $region22: #{seq2seq_forward.1} parent=0 // pred_check
    _
  $region23: #{seq2seq_forward.1} parent=0 // pred_check_branch
    %3386 = sbr.rel (0) target = $region25
  $region24: #{seq2seq_forward.1} parent=0 // pred_region
    _
  $region25: #{seq2seq_forward.1} parent=0 // pred_fallthru
    _
  // Predicated region
  $region26: #{seq2seq_forward.1} parent=0 // pred_check
    _
  $region27: #{seq2seq_forward.1} parent=0 // pred_check_branch
    %3388 = sbr.rel (0) target = $region29
  $region28: #{seq2seq_forward.1} parent=0 // pred_region
    _
  $region29: #{seq2seq_forward.1} parent=0 // pred_fallthru
    _
  // Predicated region
  $region30: #{seq2seq_forward.1} parent=0 // pred_check
    _
  $region31: #{seq2seq_forward.1} parent=0 // pred_check_branch
    %3390 = sbr.rel (0) target = $region33
  $region32: #{seq2seq_forward.1} parent=0 // pred_region
    _
  $region33: #{seq2seq_forward.1} parent=0 // pred_fallthru
    _
  // Predicated region
  $region34: #{seq2seq_forward.1} parent=0 // pred_check
    _
  $region35: #{seq2seq_forward.1} parent=0 // pred_check_branch
    %3392 = sbr.rel (0) target = $region37
  $region36: #{seq2seq_forward.1} parent=0 // pred_region
    _
  $region37: #{seq2seq_forward.1} parent=0 // pred_fallthru
    _

</llo_original>
